<compile_context>
chip_gen: v5e
topology: v5e:2x2
jax: 0.10.0
libtpu: 0.0.40
codegen_flags: <defaults>
</compile_context>

<pallas_src>
import jax
import jax.numpy as jnp
import numpy as np
from jax import lax
from jax.experimental import pallas as pl
from jax.experimental.pallas import tpu as pltpu


# --------------------- in-kernel helpers (act on traced values) ---------------------

def _interleave(a, b, axis):
    """out[..., 2i, ...] = a[..., i, ...]; out[..., 2i+1, ...] = b[..., i, ...].
    Only lane-preserving reshapes + concatenates (Mosaic-friendly)."""
    sh = a.shape
    new_sh = sh[:axis + 1] + (1,) + sh[axis + 1:]
    ab = jnp.concatenate([a.reshape(new_sh), b.reshape(new_sh)], axis=axis + 1)
    return ab.reshape(sh[:axis] + (2 * sh[axis],) + sh[axis + 1:])


def _upsample2x(a):
    """Bilinear 2x, align_corners=False: 0.25/0.75 blend of clamped neighbours,
    applied separably along H then W. a: (H, W, C) -> (2H, 2W, C)."""
    def up0(v):
        prev = jnp.concatenate([v[:1], v[:-1]], axis=0)
        nxt = jnp.concatenate([v[1:], v[-1:]], axis=0)
        return _interleave(0.25 * prev + 0.75 * v, 0.75 * v + 0.25 * nxt, axis=0)

    def up1(v):
        prev = jnp.concatenate([v[:, :1], v[:, :-1]], axis=1)
        nxt = jnp.concatenate([v[:, 1:], v[:, -1:]], axis=1)
        return _interleave(0.25 * prev + 0.75 * v, 0.75 * v + 0.25 * nxt, axis=1)

    return up1(up0(a))


def _reflect_pad1(a):
    """ReflectionPad2d(1) on an (H, W, C) value."""
    a = jnp.concatenate([a[1:2], a, a[-2:-1]], axis=0)
    a = jnp.concatenate([a[:, 1:2], a, a[:, -2:-1]], axis=1)
    return a


def _conv3x3(a_pad, w_ref):
    """Valid 3x3 conv. a_pad: (H+2, W+2, Cin) f32 value; w_ref: (3, 3*Cin, Cout) f32 ref.
    Returns (H*W, Cout) f32. One im2col matmul per kh tap (K = 3*Cin)."""
    Hp, Wp, Cin = a_pad.shape
    Ho, Wo = Hp - 2, Wp - 2
    acc = None
    for kh in range(3):
        slab = jnp.concatenate(
            [a_pad[kh:kh + Ho, kw:kw + Wo, :] for kw in range(3)], axis=2)
        slab = slab.reshape(Ho * Wo, 3 * Cin)
        part = jnp.dot(slab, w_ref[kh], preferred_element_type=jnp.float32)
        acc = part if acc is None else acc + part
    return acc


# ------------------------------ fused kernel ---------------------------------------

def _make_kernel(d, F, num_layers):
    def kernel(*refs):
        x_ref, g0_ref, g0b_ref = refs[0], refs[1], refs[2]
        layer_refs = refs[3:3 + 4 * num_layers]
        wo_ref = refs[3 + 4 * num_layers]
        bo_ref = refs[4 + 4 * num_layers]
        o_ref = refs[5 + 4 * num_layers]

        # Stage 0: Linear + reshape + ReflectionPad + conv_in, folded offline into
        # one (d_model, d*d*F) matrix -> single f32 matmul, f32 accumulation.
        y = jnp.dot(x_ref[0], g0_ref[...],
                    preferred_element_type=jnp.float32) + g0b_ref[...]   # (1, d*d*F)
        # Spread the pixel-major lane vector into a (d, d, F) NHWC tile.
        rows = [y[:, p * F:(p + 1) * F] for p in range(d * d)]
        a = jnp.concatenate(rows, axis=0).reshape(d, d, F)

        for i in range(num_layers):
            w_r, b_r, s_r, t_r = layer_refs[4 * i:4 * i + 4]
            a = _upsample2x(a)                                           # (2H, 2W, C)
            acc = _conv3x3(_reflect_pad1(a), w_r)                        # (4HW, Cout)
            # conv -> dropout(eval: identity) -> ReLU -> BatchNorm(eval affine)
            acc = jnp.maximum(acc + b_r[...], 0.0) * s_r[...] + t_r[...]
            H = a.shape[0]
            a = acc.reshape(H, H, acc.shape[-1])

        acc = _conv3x3(_reflect_pad1(a), wo_ref)                         # (side^2, 3)
        o_ref[0] = jnp.tanh(acc + bo_ref[...])

    return kernel


def image_encoder_forward_pallas(x, prep, d_model, num_layers, f, d):
    B = x.shape[0]
    F = f * d_model
    side = d * 2 ** num_layers

    x3 = x.reshape(B, 1, d_model)
    inputs = [x3, prep["g0"], prep["g0b"]]
    in_specs = [
        pl.BlockSpec((1, 1, d_model), lambda b: (b, 0, 0)),
        pl.BlockSpec(prep["g0"].shape, lambda b: (0, 0)),
        pl.BlockSpec(prep["g0b"].shape, lambda b: (0, 0)),
    ]
    for (wf, bb, sc, sh) in prep["layers"]:
        inputs += [wf, bb, sc, sh]
        in_specs += [
            pl.BlockSpec(wf.shape, lambda b: (0, 0, 0)),
            pl.BlockSpec(bb.shape, lambda b: (0, 0)),
            pl.BlockSpec(sc.shape, lambda b: (0, 0)),
            pl.BlockSpec(sh.shape, lambda b: (0, 0)),
        ]
    inputs += [prep["wo"], prep["bo"]]
    in_specs += [
        pl.BlockSpec(prep["wo"].shape, lambda b: (0, 0, 0)),
        pl.BlockSpec(prep["bo"].shape, lambda b: (0, 0)),
    ]

    out_flat = pl.pallas_call(
        _make_kernel(d, F, num_layers),
        out_shape=jax.ShapeDtypeStruct((B, side * side, 3), jnp.float32),
        grid=(B,),
        in_specs=in_specs,
        out_specs=pl.BlockSpec((1, side * side, 3), lambda b: (b, 0, 0)),
        compiler_params=pltpu.CompilerParams(dimension_semantics=("parallel",)),
    )(*inputs)

    # Tiny NHWC-flat -> NCHW conversion left to XLA.
    return out_flat.reshape(B, side, side, 3).transpose(0, 3, 1, 2)


# --------------------------- parameters & offline folding --------------------------

def init_params(key, d_model, num_layers, f, d):
    F = f * d_model
    cin0 = d_model * f // d ** 2
    ks = iter(jax.random.split(key, 64))

    def nrm(shape, s=0.1):
        return (s * jax.random.normal(next(ks), shape)).astype(jnp.float32)

    params = {
        "ff_w": nrm((d_model, F)),
        "ff_b": nrm((F,)),
        "conv_in_w": nrm((3, 3, cin0, F)),          # HWIO
        "conv_in_b": nrm((F,)),
        "convs": [],
        "bn": [],
    }
    for i in range(num_layers):
        cin = F // 2 ** i
        cout = F // 2 ** (i + 1)
        params["convs"].append((nrm((3, 3, cin, cout)), nrm((cout,))))
        gamma = 1.0 + nrm((cout,))
        beta = nrm((cout,))
        rmean = nrm((cout,))
        rvar = 1.0 + jnp.abs(nrm((cout,)))
        params["bn"].append((gamma, beta, rmean, rvar))
    cin_out = F // 2 ** num_layers
    params["conv_out_w"] = nrm((3, 3, cin_out, 3))
    params["conv_out_b"] = nrm((3,))
    return params


def prepare_params(params, d_model, num_layers, f, d, eps=1e-5):
    """Offline (host/XLA) weight preprocessing: exact linear-algebra folding."""
    F = f * d_model
    cin0 = d_model * f // d ** 2
    n = cin0 * d * d  # == F

    # Fold Linear + reshape(B,-1,d,d) + ReflectionPad(1) + conv_in into one matrix
    # by evaluating the (linear) pad+conv path on basis vectors.
    eye = jnp.eye(n, dtype=jnp.float32)
    imgs = eye.reshape(n, cin0, d, d).transpose(0, 2, 3, 1)              # NCHW -> NHWC
    padded = jnp.pad(imgs, ((0, 0), (1, 1), (1, 1), (0, 0)), mode="reflect")
    resp = lax.conv_general_dilated(
        padded, params["conv_in_w"], (1, 1), "VALID",
        dimension_numbers=("NHWC", "HWIO", "NHWC"))                      # (n, d, d, F)
    A = resp.reshape(n, d * d * F)                                       # pixel-major, channel-minor
    g0 = (params["ff_w"] @ A).astype(jnp.float32)
    g0b = (params["ff_b"] @ A + jnp.tile(params["conv_in_b"], d * d))
    g0b = g0b.reshape(1, d * d * F).astype(jnp.float32)

    layers = []
    for i in range(num_layers):
        w, b = params["convs"][i]
        gamma, beta, rmean, rvar = params["bn"][i]
        cin, cout = w.shape[2], w.shape[3]
        wf = w.reshape(3, 3 * cin, cout).astype(jnp.float32)             # fold kw into K
        scale = gamma / jnp.sqrt(rvar + eps)
        shift = beta - rmean * scale
        layers.append((wf,
                       b.reshape(1, cout).astype(jnp.float32),
                       scale.reshape(1, cout).astype(jnp.float32),
                       shift.reshape(1, cout).astype(jnp.float32)))

    cin_out = F // 2 ** num_layers
    wo = params["conv_out_w"].reshape(3, 3 * cin_out, 3).astype(jnp.float32)
    bo = params["conv_out_b"].reshape(1, 3).astype(jnp.float32)
    return {"g0": g0, "g0b": g0b, "layers": layers, "wo": wo, "bo": bo}


# --------------------------- pure-JAX (f32) reference ------------------------------

def _reflect_pad_ref(x):
    return jnp.pad(x, ((0, 0), (1, 1), (1, 1), (0, 0)), mode="reflect")


def _upsample_bilinear_2x_ref(x):
    N, H, W, C = x.shape

    def coords(out_size, in_size):
        o = jnp.arange(out_size, dtype=jnp.float32)
        src = (o + 0.5) * (in_size / out_size) - 0.5
        src = jnp.maximum(src, 0.0)
        i0 = jnp.minimum(jnp.floor(src).astype(jnp.int32), in_size - 1)
        i1 = jnp.minimum(i0 + 1, in_size - 1)
        lam = src - i0.astype(jnp.float32)
        return i0, i1, lam

    h0, h1, lh = coords(2 * H, H)
    w0, w1, lw = coords(2 * W, W)
    xw = (x[:, :, w0, :] * (1.0 - lw)[None, None, :, None]
          + x[:, :, w1, :] * lw[None, None, :, None])
    return (xw[:, h0, :, :] * (1.0 - lh)[None, :, None, None]
            + xw[:, h1, :, :] * lh[None, :, None, None])


def _conv_ref(x_pad, w, b):
    return lax.conv_general_dilated(
        x_pad, w, window_strides=(1, 1), padding="VALID",
        dimension_numbers=("NHWC", "HWIO", "NHWC"),
        preferred_element_type=jnp.float32) + b


def image_encoder_reference(params, x, d_model, num_layers, f, d, eps=1e-5):
    B = x.shape[0]
    h = x @ params["ff_w"] + params["ff_b"]
    h = h.reshape(B, -1, d, d).transpose(0, 2, 3, 1)                     # NCHW -> NHWC
    h = _conv_ref(_reflect_pad_ref(h), params["conv_in_w"], params["conv_in_b"])
    for i in range(num_layers):
        h = _upsample_bilinear_2x_ref(h)
        w, b = params["convs"][i]
        h = _conv_ref(_reflect_pad_ref(h), w, b)
        gamma, beta, rmean, rvar = params["bn"][i]
        scale = gamma / jnp.sqrt(rvar + eps)
        shift = beta - rmean * scale
        # conv -> dropout(eval) -> ReLU -> BatchNorm(eval affine), per ImageEncoder.forward
        h = jnp.maximum(h, 0.0) * scale + shift
    h = jnp.tanh(_conv_ref(_reflect_pad_ref(h),
                           params["conv_out_w"], params["conv_out_b"]))
    return h.transpose(0, 3, 1, 2)                                       # NCHW


# ------------------------------------- main ----------------------------------------

if __name__ == "__main__":
    d_model, num_layers, f, d = 32, 2, 4, 4
    B = 2

    key = jax.random.PRNGKey(0)
    kx, kp = jax.random.split(key)
    x = jax.random.normal(kx, (B, d_model), dtype=jnp.float32)
    params = init_params(kp, d_model, num_layers, f, d)
    prep = prepare_params(params, d_model, num_layers, f, d)

    out = image_encoder_forward_pallas(x, prep, d_model, num_layers, f, d)
    out = jax.block_until_ready(out)

    ref = image_encoder_reference(params, x, d_model, num_layers, f, d)
    ref = jax.block_until_ready(ref)

    side = d * 2 ** num_layers
    assert out.shape == (B, 3, side, side), out.shape
    np.testing.assert_allclose(np.asarray(out), np.asarray(ref), rtol=2e-2, atol=2e-2)
    print("KERNEL_OK")
</pallas_src>

<mosaic_0001>
module attributes {stable_mosaic.version = 11 : i64} {
  func.func @kernel(%arg0: i32, %arg1: memref<1x1x32xf32, #tpu.memory_space<vmem>>, %arg2: memref<32x2048xf32, #tpu.memory_space<vmem>>, %arg3: memref<1x2048xf32, #tpu.memory_space<vmem>>, %arg4: memref<3x384x64xf32, #tpu.memory_space<vmem>>, %arg5: memref<1x64xf32, #tpu.memory_space<vmem>>, %arg6: memref<1x64xf32, #tpu.memory_space<vmem>>, %arg7: memref<1x64xf32, #tpu.memory_space<vmem>>, %arg8: memref<3x192x32xf32, #tpu.memory_space<vmem>>, %arg9: memref<1x32xf32, #tpu.memory_space<vmem>>, %arg10: memref<1x32xf32, #tpu.memory_space<vmem>>, %arg11: memref<1x32xf32, #tpu.memory_space<vmem>>, %arg12: memref<3x96x3xf32, #tpu.memory_space<vmem>>, %arg13: memref<1x3xf32, #tpu.memory_space<vmem>>, %arg14: memref<1x256x3xf32, #tpu.memory_space<vmem>>) attributes {dimension_semantics = [#tpu.dimension_semantics<parallel>], iteration_bounds = array<i64: 2>, scalar_prefetch = 0 : i64, scratch_operands = 0 : i64, tpu.core_type = #tpu.core_type<tc>, window_params = [{transform_indices = @transform_0, window_bounds = array<i64: 1, 1, 32>}, {pipeline_mode = #tpu.pipeline_mode<synchronous>, transform_indices = @transform_1, window_bounds = array<i64: 32, 2048>}, {pipeline_mode = #tpu.pipeline_mode<synchronous>, transform_indices = @transform_2, window_bounds = array<i64: 1, 2048>}, {pipeline_mode = #tpu.pipeline_mode<synchronous>, transform_indices = @transform_3, window_bounds = array<i64: 3, 384, 64>}, {pipeline_mode = #tpu.pipeline_mode<synchronous>, transform_indices = @transform_4, window_bounds = array<i64: 1, 64>}, {pipeline_mode = #tpu.pipeline_mode<synchronous>, transform_indices = @transform_5, window_bounds = array<i64: 1, 64>}, {pipeline_mode = #tpu.pipeline_mode<synchronous>, transform_indices = @transform_6, window_bounds = array<i64: 1, 64>}, {pipeline_mode = #tpu.pipeline_mode<synchronous>, transform_indices = @transform_7, window_bounds = array<i64: 3, 192, 32>}, {pipeline_mode = #tpu.pipeline_mode<synchronous>, transform_indices = @transform_8, window_bounds = array<i64: 1, 32>}, {pipeline_mode = #tpu.pipeline_mode<synchronous>, transform_indices = @transform_9, window_bounds = array<i64: 1, 32>}, {pipeline_mode = #tpu.pipeline_mode<synchronous>, transform_indices = @transform_10, window_bounds = array<i64: 1, 32>}, {pipeline_mode = #tpu.pipeline_mode<synchronous>, transform_indices = @transform_11, window_bounds = array<i64: 3, 96, 3>}, {pipeline_mode = #tpu.pipeline_mode<synchronous>, transform_indices = @transform_12, window_bounds = array<i64: 1, 3>}, {transform_indices = @transform_13, window_bounds = array<i64: 1, 256, 3>}]} {
    %c0 = arith.constant 0 : index
    %c0_0 = arith.constant 0 : index
    %c0_1 = arith.constant 0 : index
    %0 = vector.load %arg1[%c0, %c0_0, %c0_1] : memref<1x1x32xf32, #tpu.memory_space<vmem>>, vector<1x1x32xf32>
    %1 = vector.shape_cast %0 : vector<1x1x32xf32> to vector<1x32xf32>
    %c0_2 = arith.constant 0 : index
    %c0_3 = arith.constant 0 : index
    %2 = vector.load %arg2[%c0_2, %c0_3] : memref<32x2048xf32, #tpu.memory_space<vmem>>, vector<32x2048xf32>
    %cst = arith.constant dense<0.000000e+00> : vector<1x2048xf32>
    %3 = tpu.matmul %1, %2, %cst {dimension_numbers = #tpu.dot_dimension_numbers<[1], [0], [0], [1], [0, 0, 1, 1], [], []>} : vector<1x32xf32>, vector<32x2048xf32>, vector<1x2048xf32> -> vector<1x2048xf32>
    %c0_4 = arith.constant 0 : index
    %c0_5 = arith.constant 0 : index
    %4 = vector.load %arg3[%c0_4, %c0_5] : memref<1x2048xf32, #tpu.memory_space<vmem>>, vector<1x2048xf32>
    %5 = arith.addf %3, %4 : vector<1x2048xf32>
    %6 = vector.extract_strided_slice %5 {offsets = [0, 0], sizes = [1, 128], strides = [1, 1]} : vector<1x2048xf32> to vector<1x128xf32>
    %7 = vector.extract_strided_slice %5 {offsets = [0, 128], sizes = [1, 128], strides = [1, 1]} : vector<1x2048xf32> to vector<1x128xf32>
    %8 = vector.extract_strided_slice %5 {offsets = [0, 256], sizes = [1, 128], strides = [1, 1]} : vector<1x2048xf32> to vector<1x128xf32>
    %9 = vector.extract_strided_slice %5 {offsets = [0, 384], sizes = [1, 128], strides = [1, 1]} : vector<1x2048xf32> to vector<1x128xf32>
    %10 = vector.extract_strided_slice %5 {offsets = [0, 512], sizes = [1, 128], strides = [1, 1]} : vector<1x2048xf32> to vector<1x128xf32>
    %11 = vector.extract_strided_slice %5 {offsets = [0, 640], sizes = [1, 128], strides = [1, 1]} : vector<1x2048xf32> to vector<1x128xf32>
    %12 = vector.extract_strided_slice %5 {offsets = [0, 768], sizes = [1, 128], strides = [1, 1]} : vector<1x2048xf32> to vector<1x128xf32>
    %13 = vector.extract_strided_slice %5 {offsets = [0, 896], sizes = [1, 128], strides = [1, 1]} : vector<1x2048xf32> to vector<1x128xf32>
    %14 = vector.extract_strided_slice %5 {offsets = [0, 1024], sizes = [1, 128], strides = [1, 1]} : vector<1x2048xf32> to vector<1x128xf32>
    %15 = vector.extract_strided_slice %5 {offsets = [0, 1152], sizes = [1, 128], strides = [1, 1]} : vector<1x2048xf32> to vector<1x128xf32>
    %16 = vector.extract_strided_slice %5 {offsets = [0, 1280], sizes = [1, 128], strides = [1, 1]} : vector<1x2048xf32> to vector<1x128xf32>
    %17 = vector.extract_strided_slice %5 {offsets = [0, 1408], sizes = [1, 128], strides = [1, 1]} : vector<1x2048xf32> to vector<1x128xf32>
    %18 = vector.extract_strided_slice %5 {offsets = [0, 1536], sizes = [1, 128], strides = [1, 1]} : vector<1x2048xf32> to vector<1x128xf32>
    %19 = vector.extract_strided_slice %5 {offsets = [0, 1664], sizes = [1, 128], strides = [1, 1]} : vector<1x2048xf32> to vector<1x128xf32>
    %20 = vector.extract_strided_slice %5 {offsets = [0, 1792], sizes = [1, 128], strides = [1, 1]} : vector<1x2048xf32> to vector<1x128xf32>
    %21 = vector.extract_strided_slice %5 {offsets = [0, 1920], sizes = [1, 128], strides = [1, 1]} : vector<1x2048xf32> to vector<1x128xf32>
    %22 = tpu.concatenate %6, %7, %8, %9, %10, %11, %12, %13, %14, %15, %16, %17, %18, %19, %20, %21 in 0 : vector<1x128xf32>, vector<1x128xf32>, vector<1x128xf32>, vector<1x128xf32>, vector<1x128xf32>, vector<1x128xf32>, vector<1x128xf32>, vector<1x128xf32>, vector<1x128xf32>, vector<1x128xf32>, vector<1x128xf32>, vector<1x128xf32>, vector<1x128xf32>, vector<1x128xf32>, vector<1x128xf32>, vector<1x128xf32> -> vector<16x128xf32>
    %23 = vector.shape_cast %22 : vector<16x128xf32> to vector<4x4x128xf32>
    %24 = vector.extract_strided_slice %23 {offsets = [0, 0, 0], sizes = [1, 4, 128], strides = [1, 1, 1]} : vector<4x4x128xf32> to vector<1x4x128xf32>
    %25 = vector.extract_strided_slice %23 {offsets = [0, 0, 0], sizes = [3, 4, 128], strides = [1, 1, 1]} : vector<4x4x128xf32> to vector<3x4x128xf32>
    %26 = tpu.concatenate %24, %25 in 0 : vector<1x4x128xf32>, vector<3x4x128xf32> -> vector<4x4x128xf32>
    %27 = vector.extract_strided_slice %23 {offsets = [1, 0, 0], sizes = [3, 4, 128], strides = [1, 1, 1]} : vector<4x4x128xf32> to vector<3x4x128xf32>
    %28 = vector.extract_strided_slice %23 {offsets = [3, 0, 0], sizes = [1, 4, 128], strides = [1, 1, 1]} : vector<4x4x128xf32> to vector<1x4x128xf32>
    %29 = tpu.concatenate %27, %28 in 0 : vector<3x4x128xf32>, vector<1x4x128xf32> -> vector<4x4x128xf32>
    %cst_6 = arith.constant 2.500000e-01 : f32
    %30 = vector.broadcast %cst_6 : f32 to vector<4x4x128xf32>
    %31 = arith.mulf %30, %26 : vector<4x4x128xf32>
    %cst_7 = arith.constant 7.500000e-01 : f32
    %32 = vector.broadcast %cst_7 : f32 to vector<4x4x128xf32>
    %33 = arith.mulf %32, %23 : vector<4x4x128xf32>
    %34 = arith.addf %31, %33 : vector<4x4x128xf32>
    %cst_8 = arith.constant 7.500000e-01 : f32
    %35 = vector.broadcast %cst_8 : f32 to vector<4x4x128xf32>
    %36 = arith.mulf %35, %23 : vector<4x4x128xf32>
    %cst_9 = arith.constant 2.500000e-01 : f32
    %37 = vector.broadcast %cst_9 : f32 to vector<4x4x128xf32>
    %38 = arith.mulf %37, %29 : vector<4x4x128xf32>
    %39 = arith.addf %36, %38 : vector<4x4x128xf32>
    %40 = vector.shape_cast %34 : vector<4x4x128xf32> to vector<4x1x4x128xf32>
    %41 = vector.shape_cast %39 : vector<4x4x128xf32> to vector<4x1x4x128xf32>
    %42 = tpu.concatenate %40, %41 in 1 : vector<4x1x4x128xf32>, vector<4x1x4x128xf32> -> vector<4x2x4x128xf32>
    %43 = vector.shape_cast %42 : vector<4x2x4x128xf32> to vector<8x4x128xf32>
    %44 = vector.extract_strided_slice %43 {offsets = [0, 0, 0], sizes = [8, 1, 128], strides = [1, 1, 1]} : vector<8x4x128xf32> to vector<8x1x128xf32>
    %45 = vector.extract_strided_slice %43 {offsets = [0, 0, 0], sizes = [8, 3, 128], strides = [1, 1, 1]} : vector<8x4x128xf32> to vector<8x3x128xf32>
    %46 = tpu.concatenate %44, %45 in 1 : vector<8x1x128xf32>, vector<8x3x128xf32> -> vector<8x4x128xf32>
    %47 = vector.extract_strided_slice %43 {offsets = [0, 1, 0], sizes = [8, 3, 128], strides = [1, 1, 1]} : vector<8x4x128xf32> to vector<8x3x128xf32>
    %48 = vector.extract_strided_slice %43 {offsets = [0, 3, 0], sizes = [8, 1, 128], strides = [1, 1, 1]} : vector<8x4x128xf32> to vector<8x1x128xf32>
    %49 = tpu.concatenate %47, %48 in 1 : vector<8x3x128xf32>, vector<8x1x128xf32> -> vector<8x4x128xf32>
    %cst_10 = arith.constant 2.500000e-01 : f32
    %50 = vector.broadcast %cst_10 : f32 to vector<8x4x128xf32>
    %51 = arith.mulf %50, %46 : vector<8x4x128xf32>
    %cst_11 = arith.constant 7.500000e-01 : f32
    %52 = vector.broadcast %cst_11 : f32 to vector<8x4x128xf32>
    %53 = arith.mulf %52, %43 : vector<8x4x128xf32>
    %54 = arith.addf %51, %53 : vector<8x4x128xf32>
    %cst_12 = arith.constant 7.500000e-01 : f32
    %55 = vector.broadcast %cst_12 : f32 to vector<8x4x128xf32>
    %56 = arith.mulf %55, %43 : vector<8x4x128xf32>
    %cst_13 = arith.constant 2.500000e-01 : f32
    %57 = vector.broadcast %cst_13 : f32 to vector<8x4x128xf32>
    %58 = arith.mulf %57, %49 : vector<8x4x128xf32>
    %59 = arith.addf %56, %58 : vector<8x4x128xf32>
    %60 = vector.shape_cast %54 : vector<8x4x128xf32> to vector<8x4x1x128xf32>
    %61 = vector.shape_cast %59 : vector<8x4x128xf32> to vector<8x4x1x128xf32>
    %62 = tpu.concatenate %60, %61 in 2 : vector<8x4x1x128xf32>, vector<8x4x1x128xf32> -> vector<8x4x2x128xf32>
    %63 = vector.shape_cast %62 : vector<8x4x2x128xf32> to vector<8x8x128xf32>
    %64 = vector.extract_strided_slice %63 {offsets = [1, 0, 0], sizes = [1, 8, 128], strides = [1, 1, 1]} : vector<8x8x128xf32> to vector<1x8x128xf32>
    %65 = vector.extract_strided_slice %63 {offsets = [6, 0, 0], sizes = [1, 8, 128], strides = [1, 1, 1]} : vector<8x8x128xf32> to vector<1x8x128xf32>
    %66 = tpu.concatenate %64, %63, %65 in 0 : vector<1x8x128xf32>, vector<8x8x128xf32>, vector<1x8x128xf32> -> vector<10x8x128xf32>
    %67 = vector.extract_strided_slice %66 {offsets = [0, 1, 0], sizes = [10, 1, 128], strides = [1, 1, 1]} : vector<10x8x128xf32> to vector<10x1x128xf32>
    %68 = vector.extract_strided_slice %66 {offsets = [0, 6, 0], sizes = [10, 1, 128], strides = [1, 1, 1]} : vector<10x8x128xf32> to vector<10x1x128xf32>
    %69 = tpu.concatenate %67, %66, %68 in 1 : vector<10x1x128xf32>, vector<10x8x128xf32>, vector<10x1x128xf32> -> vector<10x10x128xf32>
    %70 = vector.extract_strided_slice %69 {offsets = [0, 0, 0], sizes = [8, 8, 128], strides = [1, 1, 1]} : vector<10x10x128xf32> to vector<8x8x128xf32>
    %71 = vector.extract_strided_slice %69 {offsets = [0, 1, 0], sizes = [8, 8, 128], strides = [1, 1, 1]} : vector<10x10x128xf32> to vector<8x8x128xf32>
    %72 = vector.extract_strided_slice %69 {offsets = [0, 2, 0], sizes = [8, 8, 128], strides = [1, 1, 1]} : vector<10x10x128xf32> to vector<8x8x128xf32>
    %73 = tpu.concatenate %70, %71, %72 in 2 : vector<8x8x128xf32>, vector<8x8x128xf32>, vector<8x8x128xf32> -> vector<8x8x384xf32>
    %74 = vector.shape_cast %73 : vector<8x8x384xf32> to vector<64x384xf32>
    %c0_14 = arith.constant 0 : index
    %c0_15 = arith.constant 0 : index
    %c0_16 = arith.constant 0 : index
    %75 = vector.load %arg4[%c0_14, %c0_15, %c0_16] : memref<3x384x64xf32, #tpu.memory_space<vmem>>, vector<1x384x64xf32>
    %76 = vector.shape_cast %75 : vector<1x384x64xf32> to vector<384x64xf32>
    %cst_17 = arith.constant dense<0.000000e+00> : vector<64x64xf32>
    %77 = tpu.matmul %74, %76, %cst_17 {dimension_numbers = #tpu.dot_dimension_numbers<[1], [0], [0], [1], [0, 0, 1, 1], [], []>} : vector<64x384xf32>, vector<384x64xf32>, vector<64x64xf32> -> vector<64x64xf32>
    %78 = vector.extract_strided_slice %69 {offsets = [1, 0, 0], sizes = [8, 8, 128], strides = [1, 1, 1]} : vector<10x10x128xf32> to vector<8x8x128xf32>
    %79 = vector.extract_strided_slice %69 {offsets = [1, 1, 0], sizes = [8, 8, 128], strides = [1, 1, 1]} : vector<10x10x128xf32> to vector<8x8x128xf32>
    %80 = vector.extract_strided_slice %69 {offsets = [1, 2, 0], sizes = [8, 8, 128], strides = [1, 1, 1]} : vector<10x10x128xf32> to vector<8x8x128xf32>
    %81 = tpu.concatenate %78, %79, %80 in 2 : vector<8x8x128xf32>, vector<8x8x128xf32>, vector<8x8x128xf32> -> vector<8x8x384xf32>
    %82 = vector.shape_cast %81 : vector<8x8x384xf32> to vector<64x384xf32>
    %c1 = arith.constant 1 : index
    %c0_18 = arith.constant 0 : index
    %c0_19 = arith.constant 0 : index
    %83 = vector.load %arg4[%c1, %c0_18, %c0_19] : memref<3x384x64xf32, #tpu.memory_space<vmem>>, vector<1x384x64xf32>
    %84 = vector.shape_cast %83 : vector<1x384x64xf32> to vector<384x64xf32>
    %cst_20 = arith.constant dense<0.000000e+00> : vector<64x64xf32>
    %85 = tpu.matmul %82, %84, %cst_20 {dimension_numbers = #tpu.dot_dimension_numbers<[1], [0], [0], [1], [0, 0, 1, 1], [], []>} : vector<64x384xf32>, vector<384x64xf32>, vector<64x64xf32> -> vector<64x64xf32>
    %86 = arith.addf %77, %85 : vector<64x64xf32>
    %87 = vector.extract_strided_slice %69 {offsets = [2, 0, 0], sizes = [8, 8, 128], strides = [1, 1, 1]} : vector<10x10x128xf32> to vector<8x8x128xf32>
    %88 = vector.extract_strided_slice %69 {offsets = [2, 1, 0], sizes = [8, 8, 128], strides = [1, 1, 1]} : vector<10x10x128xf32> to vector<8x8x128xf32>
    %89 = vector.extract_strided_slice %69 {offsets = [2, 2, 0], sizes = [8, 8, 128], strides = [1, 1, 1]} : vector<10x10x128xf32> to vector<8x8x128xf32>
    %90 = tpu.concatenate %87, %88, %89 in 2 : vector<8x8x128xf32>, vector<8x8x128xf32>, vector<8x8x128xf32> -> vector<8x8x384xf32>
    %91 = vector.shape_cast %90 : vector<8x8x384xf32> to vector<64x384xf32>
    %c2 = arith.constant 2 : index
    %c0_21 = arith.constant 0 : index
    %c0_22 = arith.constant 0 : index
    %92 = vector.load %arg4[%c2, %c0_21, %c0_22] : memref<3x384x64xf32, #tpu.memory_space<vmem>>, vector<1x384x64xf32>
    %93 = vector.shape_cast %92 : vector<1x384x64xf32> to vector<384x64xf32>
    %cst_23 = arith.constant dense<0.000000e+00> : vector<64x64xf32>
    %94 = tpu.matmul %91, %93, %cst_23 {dimension_numbers = #tpu.dot_dimension_numbers<[1], [0], [0], [1], [0, 0, 1, 1], [], []>} : vector<64x384xf32>, vector<384x64xf32>, vector<64x64xf32> -> vector<64x64xf32>
    %95 = arith.addf %86, %94 : vector<64x64xf32>
    %c0_24 = arith.constant 0 : index
    %c0_25 = arith.constant 0 : index
    %96 = vector.load %arg5[%c0_24, %c0_25] : memref<1x64xf32, #tpu.memory_space<vmem>>, vector<1x64xf32>
    %97 = vector.broadcast %96 : vector<1x64xf32> to vector<64x64xf32>
    %98 = arith.addf %95, %97 : vector<64x64xf32>
    %cst_26 = arith.constant 0.000000e+00 : f32
    %99 = vector.broadcast %cst_26 : f32 to vector<64x64xf32>
    %100 = arith.maximumf %98, %99 : vector<64x64xf32>
    %c0_27 = arith.constant 0 : index
    %c0_28 = arith.constant 0 : index
    %101 = vector.load %arg6[%c0_27, %c0_28] : memref<1x64xf32, #tpu.memory_space<vmem>>, vector<1x64xf32>
    %102 = vector.broadcast %101 : vector<1x64xf32> to vector<64x64xf32>
    %103 = arith.mulf %100, %102 : vector<64x64xf32>
    %c0_29 = arith.constant 0 : index
    %c0_30 = arith.constant 0 : index
    %104 = vector.load %arg7[%c0_29, %c0_30] : memref<1x64xf32, #tpu.memory_space<vmem>>, vector<1x64xf32>
    %105 = vector.broadcast %104 : vector<1x64xf32> to vector<64x64xf32>
    %106 = arith.addf %103, %105 : vector<64x64xf32>
    %107 = vector.shape_cast %106 : vector<64x64xf32> to vector<8x8x64xf32>
    %108 = vector.extract_strided_slice %107 {offsets = [0, 0, 0], sizes = [1, 8, 64], strides = [1, 1, 1]} : vector<8x8x64xf32> to vector<1x8x64xf32>
    %109 = vector.extract_strided_slice %107 {offsets = [0, 0, 0], sizes = [7, 8, 64], strides = [1, 1, 1]} : vector<8x8x64xf32> to vector<7x8x64xf32>
    %110 = tpu.concatenate %108, %109 in 0 : vector<1x8x64xf32>, vector<7x8x64xf32> -> vector<8x8x64xf32>
    %111 = vector.extract_strided_slice %107 {offsets = [1, 0, 0], sizes = [7, 8, 64], strides = [1, 1, 1]} : vector<8x8x64xf32> to vector<7x8x64xf32>
    %112 = vector.extract_strided_slice %107 {offsets = [7, 0, 0], sizes = [1, 8, 64], strides = [1, 1, 1]} : vector<8x8x64xf32> to vector<1x8x64xf32>
    %113 = tpu.concatenate %111, %112 in 0 : vector<7x8x64xf32>, vector<1x8x64xf32> -> vector<8x8x64xf32>
    %cst_31 = arith.constant 2.500000e-01 : f32
    %114 = vector.broadcast %cst_31 : f32 to vector<8x8x64xf32>
    %115 = arith.mulf %114, %110 : vector<8x8x64xf32>
    %cst_32 = arith.constant 7.500000e-01 : f32
    %116 = vector.broadcast %cst_32 : f32 to vector<8x8x64xf32>
    %117 = arith.mulf %116, %107 : vector<8x8x64xf32>
    %118 = arith.addf %115, %117 : vector<8x8x64xf32>
    %cst_33 = arith.constant 7.500000e-01 : f32
    %119 = vector.broadcast %cst_33 : f32 to vector<8x8x64xf32>
    %120 = arith.mulf %119, %107 : vector<8x8x64xf32>
    %cst_34 = arith.constant 2.500000e-01 : f32
    %121 = vector.broadcast %cst_34 : f32 to vector<8x8x64xf32>
    %122 = arith.mulf %121, %113 : vector<8x8x64xf32>
    %123 = arith.addf %120, %122 : vector<8x8x64xf32>
    %124 = vector.shape_cast %118 : vector<8x8x64xf32> to vector<8x1x8x64xf32>
    %125 = vector.shape_cast %123 : vector<8x8x64xf32> to vector<8x1x8x64xf32>
    %126 = tpu.concatenate %124, %125 in 1 : vector<8x1x8x64xf32>, vector<8x1x8x64xf32> -> vector<8x2x8x64xf32>
    %127 = vector.shape_cast %126 : vector<8x2x8x64xf32> to vector<16x8x64xf32>
    %128 = vector.extract_strided_slice %127 {offsets = [0, 0, 0], sizes = [16, 1, 64], strides = [1, 1, 1]} : vector<16x8x64xf32> to vector<16x1x64xf32>
    %129 = vector.extract_strided_slice %127 {offsets = [0, 0, 0], sizes = [16, 7, 64], strides = [1, 1, 1]} : vector<16x8x64xf32> to vector<16x7x64xf32>
    %130 = tpu.concatenate %128, %129 in 1 : vector<16x1x64xf32>, vector<16x7x64xf32> -> vector<16x8x64xf32>
    %131 = vector.extract_strided_slice %127 {offsets = [0, 1, 0], sizes = [16, 7, 64], strides = [1, 1, 1]} : vector<16x8x64xf32> to vector<16x7x64xf32>
    %132 = vector.extract_strided_slice %127 {offsets = [0, 7, 0], sizes = [16, 1, 64], strides = [1, 1, 1]} : vector<16x8x64xf32> to vector<16x1x64xf32>
    %133 = tpu.concatenate %131, %132 in 1 : vector<16x7x64xf32>, vector<16x1x64xf32> -> vector<16x8x64xf32>
    %cst_35 = arith.constant 2.500000e-01 : f32
    %134 = vector.broadcast %cst_35 : f32 to vector<16x8x64xf32>
    %135 = arith.mulf %134, %130 : vector<16x8x64xf32>
    %cst_36 = arith.constant 7.500000e-01 : f32
    %136 = vector.broadcast %cst_36 : f32 to vector<16x8x64xf32>
    %137 = arith.mulf %136, %127 : vector<16x8x64xf32>
    %138 = arith.addf %135, %137 : vector<16x8x64xf32>
    %cst_37 = arith.constant 7.500000e-01 : f32
    %139 = vector.broadcast %cst_37 : f32 to vector<16x8x64xf32>
    %140 = arith.mulf %139, %127 : vector<16x8x64xf32>
    %cst_38 = arith.constant 2.500000e-01 : f32
    %141 = vector.broadcast %cst_38 : f32 to vector<16x8x64xf32>
    %142 = arith.mulf %141, %133 : vector<16x8x64xf32>
    %143 = arith.addf %140, %142 : vector<16x8x64xf32>
    %144 = vector.shape_cast %138 : vector<16x8x64xf32> to vector<16x8x1x64xf32>
    %145 = vector.shape_cast %143 : vector<16x8x64xf32> to vector<16x8x1x64xf32>
    %146 = tpu.concatenate %144, %145 in 2 : vector<16x8x1x64xf32>, vector<16x8x1x64xf32> -> vector<16x8x2x64xf32>
    %147 = vector.shape_cast %146 : vector<16x8x2x64xf32> to vector<16x16x64xf32>
    %148 = vector.extract_strided_slice %147 {offsets = [1, 0, 0], sizes = [1, 16, 64], strides = [1, 1, 1]} : vector<16x16x64xf32> to vector<1x16x64xf32>
    %149 = vector.extract_strided_slice %147 {offsets = [14, 0, 0], sizes = [1, 16, 64], strides = [1, 1, 1]} : vector<16x16x64xf32> to vector<1x16x64xf32>
    %150 = tpu.concatenate %148, %147, %149 in 0 : vector<1x16x64xf32>, vector<16x16x64xf32>, vector<1x16x64xf32> -> vector<18x16x64xf32>
    %151 = vector.extract_strided_slice %150 {offsets = [0, 1, 0], sizes = [18, 1, 64], strides = [1, 1, 1]} : vector<18x16x64xf32> to vector<18x1x64xf32>
    %152 = vector.extract_strided_slice %150 {offsets = [0, 14, 0], sizes = [18, 1, 64], strides = [1, 1, 1]} : vector<18x16x64xf32> to vector<18x1x64xf32>
    %153 = tpu.concatenate %151, %150, %152 in 1 : vector<18x1x64xf32>, vector<18x16x64xf32>, vector<18x1x64xf32> -> vector<18x18x64xf32>
    %154 = vector.extract_strided_slice %153 {offsets = [0, 0, 0], sizes = [16, 16, 64], strides = [1, 1, 1]} : vector<18x18x64xf32> to vector<16x16x64xf32>
    %155 = vector.extract_strided_slice %153 {offsets = [0, 1, 0], sizes = [16, 16, 64], strides = [1, 1, 1]} : vector<18x18x64xf32> to vector<16x16x64xf32>
    %156 = vector.extract_strided_slice %153 {offsets = [0, 2, 0], sizes = [16, 16, 64], strides = [1, 1, 1]} : vector<18x18x64xf32> to vector<16x16x64xf32>
    %157 = tpu.concatenate %154, %155, %156 in 2 : vector<16x16x64xf32>, vector<16x16x64xf32>, vector<16x16x64xf32> -> vector<16x16x192xf32>
    %158 = vector.shape_cast %157 : vector<16x16x192xf32> to vector<256x192xf32>
    %c0_39 = arith.constant 0 : index
    %c0_40 = arith.constant 0 : index
    %c0_41 = arith.constant 0 : index
    %159 = vector.load %arg8[%c0_39, %c0_40, %c0_41] : memref<3x192x32xf32, #tpu.memory_space<vmem>>, vector<1x192x32xf32>
    %160 = vector.shape_cast %159 : vector<1x192x32xf32> to vector<192x32xf32>
    %cst_42 = arith.constant dense<0.000000e+00> : vector<256x32xf32>
    %161 = tpu.matmul %158, %160, %cst_42 {dimension_numbers = #tpu.dot_dimension_numbers<[1], [0], [0], [1], [0, 0, 1, 1], [], []>} : vector<256x192xf32>, vector<192x32xf32>, vector<256x32xf32> -> vector<256x32xf32>
    %162 = vector.extract_strided_slice %153 {offsets = [1, 0, 0], sizes = [16, 16, 64], strides = [1, 1, 1]} : vector<18x18x64xf32> to vector<16x16x64xf32>
    %163 = vector.extract_strided_slice %153 {offsets = [1, 1, 0], sizes = [16, 16, 64], strides = [1, 1, 1]} : vector<18x18x64xf32> to vector<16x16x64xf32>
    %164 = vector.extract_strided_slice %153 {offsets = [1, 2, 0], sizes = [16, 16, 64], strides = [1, 1, 1]} : vector<18x18x64xf32> to vector<16x16x64xf32>
    %165 = tpu.concatenate %162, %163, %164 in 2 : vector<16x16x64xf32>, vector<16x16x64xf32>, vector<16x16x64xf32> -> vector<16x16x192xf32>
    %166 = vector.shape_cast %165 : vector<16x16x192xf32> to vector<256x192xf32>
    %c1_43 = arith.constant 1 : index
    %c0_44 = arith.constant 0 : index
    %c0_45 = arith.constant 0 : index
    %167 = vector.load %arg8[%c1_43, %c0_44, %c0_45] : memref<3x192x32xf32, #tpu.memory_space<vmem>>, vector<1x192x32xf32>
    %168 = vector.shape_cast %167 : vector<1x192x32xf32> to vector<192x32xf32>
    %cst_46 = arith.constant dense<0.000000e+00> : vector<256x32xf32>
    %169 = tpu.matmul %166, %168, %cst_46 {dimension_numbers = #tpu.dot_dimension_numbers<[1], [0], [0], [1], [0, 0, 1, 1], [], []>} : vector<256x192xf32>, vector<192x32xf32>, vector<256x32xf32> -> vector<256x32xf32>
    %170 = arith.addf %161, %169 : vector<256x32xf32>
    %171 = vector.extract_strided_slice %153 {offsets = [2, 0, 0], sizes = [16, 16, 64], strides = [1, 1, 1]} : vector<18x18x64xf32> to vector<16x16x64xf32>
    %172 = vector.extract_strided_slice %153 {offsets = [2, 1, 0], sizes = [16, 16, 64], strides = [1, 1, 1]} : vector<18x18x64xf32> to vector<16x16x64xf32>
    %173 = vector.extract_strided_slice %153 {offsets = [2, 2, 0], sizes = [16, 16, 64], strides = [1, 1, 1]} : vector<18x18x64xf32> to vector<16x16x64xf32>
    %174 = tpu.concatenate %171, %172, %173 in 2 : vector<16x16x64xf32>, vector<16x16x64xf32>, vector<16x16x64xf32> -> vector<16x16x192xf32>
    %175 = vector.shape_cast %174 : vector<16x16x192xf32> to vector<256x192xf32>
    %c2_47 = arith.constant 2 : index
    %c0_48 = arith.constant 0 : index
    %c0_49 = arith.constant 0 : index
    %176 = vector.load %arg8[%c2_47, %c0_48, %c0_49] : memref<3x192x32xf32, #tpu.memory_space<vmem>>, vector<1x192x32xf32>
    %177 = vector.shape_cast %176 : vector<1x192x32xf32> to vector<192x32xf32>
    %cst_50 = arith.constant dense<0.000000e+00> : vector<256x32xf32>
    %178 = tpu.matmul %175, %177, %cst_50 {dimension_numbers = #tpu.dot_dimension_numbers<[1], [0], [0], [1], [0, 0, 1, 1], [], []>} : vector<256x192xf32>, vector<192x32xf32>, vector<256x32xf32> -> vector<256x32xf32>
    %179 = arith.addf %170, %178 : vector<256x32xf32>
    %c0_51 = arith.constant 0 : index
    %c0_52 = arith.constant 0 : index
    %180 = vector.load %arg9[%c0_51, %c0_52] : memref<1x32xf32, #tpu.memory_space<vmem>>, vector<1x32xf32>
    %181 = vector.broadcast %180 : vector<1x32xf32> to vector<256x32xf32>
    %182 = arith.addf %179, %181 : vector<256x32xf32>
    %cst_53 = arith.constant 0.000000e+00 : f32
    %183 = vector.broadcast %cst_53 : f32 to vector<256x32xf32>
    %184 = arith.maximumf %182, %183 : vector<256x32xf32>
    %c0_54 = arith.constant 0 : index
    %c0_55 = arith.constant 0 : index
    %185 = vector.load %arg10[%c0_54, %c0_55] : memref<1x32xf32, #tpu.memory_space<vmem>>, vector<1x32xf32>
    %186 = vector.broadcast %185 : vector<1x32xf32> to vector<256x32xf32>
    %187 = arith.mulf %184, %186 : vector<256x32xf32>
    %c0_56 = arith.constant 0 : index
    %c0_57 = arith.constant 0 : index
    %188 = vector.load %arg11[%c0_56, %c0_57] : memref<1x32xf32, #tpu.memory_space<vmem>>, vector<1x32xf32>
    %189 = vector.broadcast %188 : vector<1x32xf32> to vector<256x32xf32>
    %190 = arith.addf %187, %189 : vector<256x32xf32>
    %191 = vector.shape_cast %190 : vector<256x32xf32> to vector<16x16x32xf32>
    %192 = vector.extract_strided_slice %191 {offsets = [1, 0, 0], sizes = [1, 16, 32], strides = [1, 1, 1]} : vector<16x16x32xf32> to vector<1x16x32xf32>
    %193 = vector.extract_strided_slice %191 {offsets = [14, 0, 0], sizes = [1, 16, 32], strides = [1, 1, 1]} : vector<16x16x32xf32> to vector<1x16x32xf32>
    %194 = tpu.concatenate %192, %191, %193 in 0 : vector<1x16x32xf32>, vector<16x16x32xf32>, vector<1x16x32xf32> -> vector<18x16x32xf32>
    %195 = vector.extract_strided_slice %194 {offsets = [0, 1, 0], sizes = [18, 1, 32], strides = [1, 1, 1]} : vector<18x16x32xf32> to vector<18x1x32xf32>
    %196 = vector.extract_strided_slice %194 {offsets = [0, 14, 0], sizes = [18, 1, 32], strides = [1, 1, 1]} : vector<18x16x32xf32> to vector<18x1x32xf32>
    %197 = tpu.concatenate %195, %194, %196 in 1 : vector<18x1x32xf32>, vector<18x16x32xf32>, vector<18x1x32xf32> -> vector<18x18x32xf32>
    %198 = vector.extract_strided_slice %197 {offsets = [0, 0, 0], sizes = [16, 16, 32], strides = [1, 1, 1]} : vector<18x18x32xf32> to vector<16x16x32xf32>
    %199 = vector.extract_strided_slice %197 {offsets = [0, 1, 0], sizes = [16, 16, 32], strides = [1, 1, 1]} : vector<18x18x32xf32> to vector<16x16x32xf32>
    %200 = vector.extract_strided_slice %197 {offsets = [0, 2, 0], sizes = [16, 16, 32], strides = [1, 1, 1]} : vector<18x18x32xf32> to vector<16x16x32xf32>
    %201 = tpu.concatenate %198, %199, %200 in 2 : vector<16x16x32xf32>, vector<16x16x32xf32>, vector<16x16x32xf32> -> vector<16x16x96xf32>
    %202 = vector.shape_cast %201 : vector<16x16x96xf32> to vector<256x96xf32>
    %c0_58 = arith.constant 0 : index
    %c0_59 = arith.constant 0 : index
    %c0_60 = arith.constant 0 : index
    %203 = vector.load %arg12[%c0_58, %c0_59, %c0_60] : memref<3x96x3xf32, #tpu.memory_space<vmem>>, vector<1x96x3xf32>
    %204 = vector.shape_cast %203 : vector<1x96x3xf32> to vector<96x3xf32>
    %cst_61 = arith.constant dense<0.000000e+00> : vector<256x3xf32>
    %205 = tpu.matmul %202, %204, %cst_61 {dimension_numbers = #tpu.dot_dimension_numbers<[1], [0], [0], [1], [0, 0, 1, 1], [], []>} : vector<256x96xf32>, vector<96x3xf32>, vector<256x3xf32> -> vector<256x3xf32>
    %206 = vector.extract_strided_slice %197 {offsets = [1, 0, 0], sizes = [16, 16, 32], strides = [1, 1, 1]} : vector<18x18x32xf32> to vector<16x16x32xf32>
    %207 = vector.extract_strided_slice %197 {offsets = [1, 1, 0], sizes = [16, 16, 32], strides = [1, 1, 1]} : vector<18x18x32xf32> to vector<16x16x32xf32>
    %208 = vector.extract_strided_slice %197 {offsets = [1, 2, 0], sizes = [16, 16, 32], strides = [1, 1, 1]} : vector<18x18x32xf32> to vector<16x16x32xf32>
    %209 = tpu.concatenate %206, %207, %208 in 2 : vector<16x16x32xf32>, vector<16x16x32xf32>, vector<16x16x32xf32> -> vector<16x16x96xf32>
    %210 = vector.shape_cast %209 : vector<16x16x96xf32> to vector<256x96xf32>
    %c1_62 = arith.constant 1 : index
    %c0_63 = arith.constant 0 : index
    %c0_64 = arith.constant 0 : index
    %211 = vector.load %arg12[%c1_62, %c0_63, %c0_64] : memref<3x96x3xf32, #tpu.memory_space<vmem>>, vector<1x96x3xf32>
    %212 = vector.shape_cast %211 : vector<1x96x3xf32> to vector<96x3xf32>
    %cst_65 = arith.constant dense<0.000000e+00> : vector<256x3xf32>
    %213 = tpu.matmul %210, %212, %cst_65 {dimension_numbers = #tpu.dot_dimension_numbers<[1], [0], [0], [1], [0, 0, 1, 1], [], []>} : vector<256x96xf32>, vector<96x3xf32>, vector<256x3xf32> -> vector<256x3xf32>
    %214 = arith.addf %205, %213 : vector<256x3xf32>
    %215 = vector.extract_strided_slice %197 {offsets = [2, 0, 0], sizes = [16, 16, 32], strides = [1, 1, 1]} : vector<18x18x32xf32> to vector<16x16x32xf32>
    %216 = vector.extract_strided_slice %197 {offsets = [2, 1, 0], sizes = [16, 16, 32], strides = [1, 1, 1]} : vector<18x18x32xf32> to vector<16x16x32xf32>
    %217 = vector.extract_strided_slice %197 {offsets = [2, 2, 0], sizes = [16, 16, 32], strides = [1, 1, 1]} : vector<18x18x32xf32> to vector<16x16x32xf32>
    %218 = tpu.concatenate %215, %216, %217 in 2 : vector<16x16x32xf32>, vector<16x16x32xf32>, vector<16x16x32xf32> -> vector<16x16x96xf32>
    %219 = vector.shape_cast %218 : vector<16x16x96xf32> to vector<256x96xf32>
    %c2_66 = arith.constant 2 : index
    %c0_67 = arith.constant 0 : index
    %c0_68 = arith.constant 0 : index
    %220 = vector.load %arg12[%c2_66, %c0_67, %c0_68] : memref<3x96x3xf32, #tpu.memory_space<vmem>>, vector<1x96x3xf32>
    %221 = vector.shape_cast %220 : vector<1x96x3xf32> to vector<96x3xf32>
    %cst_69 = arith.constant dense<0.000000e+00> : vector<256x3xf32>
    %222 = tpu.matmul %219, %221, %cst_69 {dimension_numbers = #tpu.dot_dimension_numbers<[1], [0], [0], [1], [0, 0, 1, 1], [], []>} : vector<256x96xf32>, vector<96x3xf32>, vector<256x3xf32> -> vector<256x3xf32>
    %223 = arith.addf %214, %222 : vector<256x3xf32>
    %c0_70 = arith.constant 0 : index
    %c0_71 = arith.constant 0 : index
    %224 = vector.load %arg13[%c0_70, %c0_71] : memref<1x3xf32, #tpu.memory_space<vmem>>, vector<1x3xf32>
    %225 = vector.broadcast %224 : vector<1x3xf32> to vector<256x3xf32>
    %226 = arith.addf %223, %225 : vector<256x3xf32>
    %227 = math.tanh %226 : vector<256x3xf32>
    %c0_72 = arith.constant 0 : index
    %c0_73 = arith.constant 0 : index
    %c0_74 = arith.constant 0 : index
    %228 = vector.load %arg14[%c0_72, %c0_73, %c0_74] : memref<1x256x3xf32, #tpu.memory_space<vmem>>, vector<1x256x3xf32>
    %229 = vector.shape_cast %228 : vector<1x256x3xf32> to vector<256x3xf32>
    %230 = vector.shape_cast %227 : vector<256x3xf32> to vector<1x256x3xf32>
    tpu.vector_store %arg14[%c0_72, %c0_73, %c0_74], %230 {strides = array<i32>} : memref<1x256x3xf32, #tpu.memory_space<vmem>>, vector<1x256x3xf32>,
    return
  }
  func.func @transform_0(%arg0: i32) -> (i32, i32, i32) {
    %c0_i32 = arith.constant 0 : i32
    %c0_i32_0 = arith.constant 0 : i32
    %c0_i32_1 = arith.constant 0 : i32
    return %arg0, %c0_i32, %c0_i32_0 : i32, i32, i32
  }
  func.func @transform_1(%arg0: i32) -> (i32, i32) {
    %c0_i32 = arith.constant 0 : i32
    %c0_i32_0 = arith.constant 0 : i32
    %c0_i32_1 = arith.constant 0 : i32
    return %c0_i32, %c0_i32_0 : i32, i32
  }
  func.func @transform_2(%arg0: i32) -> (i32, i32) {
    %c0_i32 = arith.constant 0 : i32
    %c0_i32_0 = arith.constant 0 : i32
    %c0_i32_1 = arith.constant 0 : i32
    return %c0_i32, %c0_i32_0 : i32, i32
  }
  func.func @transform_3(%arg0: i32) -> (i32, i32, i32) {
    %c0_i32 = arith.constant 0 : i32
    %c0_i32_0 = arith.constant 0 : i32
    %c0_i32_1 = arith.constant 0 : i32
    %c0_i32_2 = arith.constant 0 : i32
    return %c0_i32, %c0_i32_0, %c0_i32_1 : i32, i32, i32
  }
  func.func @transform_4(%arg0: i32) -> (i32, i32) {
    %c0_i32 = arith.constant 0 : i32
    %c0_i32_0 = arith.constant 0 : i32
    %c0_i32_1 = arith.constant 0 : i32
    return %c0_i32, %c0_i32_0 : i32, i32
  }
  func.func @transform_5(%arg0: i32) -> (i32, i32) {
    %c0_i32 = arith.constant 0 : i32
    %c0_i32_0 = arith.constant 0 : i32
    %c0_i32_1 = arith.constant 0 : i32
    return %c0_i32, %c0_i32_0 : i32, i32
  }
  func.func @transform_6(%arg0: i32) -> (i32, i32) {
    %c0_i32 = arith.constant 0 : i32
    %c0_i32_0 = arith.constant 0 : i32
    %c0_i32_1 = arith.constant 0 : i32
    return %c0_i32, %c0_i32_0 : i32, i32
  }
  func.func @transform_7(%arg0: i32) -> (i32, i32, i32) {
    %c0_i32 = arith.constant 0 : i32
    %c0_i32_0 = arith.constant 0 : i32
    %c0_i32_1 = arith.constant 0 : i32
    %c0_i32_2 = arith.constant 0 : i32
    return %c0_i32, %c0_i32_0, %c0_i32_1 : i32, i32, i32
  }
  func.func @transform_8(%arg0: i32) -> (i32, i32) {
    %c0_i32 = arith.constant 0 : i32
    %c0_i32_0 = arith.constant 0 : i32
    %c0_i32_1 = arith.constant 0 : i32
    return %c0_i32, %c0_i32_0 : i32, i32
  }
  func.func @transform_9(%arg0: i32) -> (i32, i32) {
    %c0_i32 = arith.constant 0 : i32
    %c0_i32_0 = arith.constant 0 : i32
    %c0_i32_1 = arith.constant 0 : i32
    return %c0_i32, %c0_i32_0 : i32, i32
  }
  func.func @transform_10(%arg0: i32) -> (i32, i32) {
    %c0_i32 = arith.constant 0 : i32
    %c0_i32_0 = arith.constant 0 : i32
    %c0_i32_1 = arith.constant 0 : i32
    return %c0_i32, %c0_i32_0 : i32, i32
  }
  func.func @transform_11(%arg0: i32) -> (i32, i32, i32) {
    %c0_i32 = arith.constant 0 : i32
    %c0_i32_0 = arith.constant 0 : i32
    %c0_i32_1 = arith.constant 0 : i32
    %c0_i32_2 = arith.constant 0 : i32
    return %c0_i32, %c0_i32_0, %c0_i32_1 : i32, i32, i32
  }
  func.func @transform_12(%arg0: i32) -> (i32, i32) {
    %c0_i32 = arith.constant 0 : i32
    %c0_i32_0 = arith.constant 0 : i32
    %c0_i32_1 = arith.constant 0 : i32
    return %c0_i32, %c0_i32_0 : i32, i32
  }
  func.func @transform_13(%arg0: i32) -> (i32, i32, i32) {
    %c0_i32 = arith.constant 0 : i32
    %c0_i32_0 = arith.constant 0 : i32
    %c0_i32_1 = arith.constant 0 : i32
    return %arg0, %c0_i32, %c0_i32_0 : i32, i32, i32
  }
}

</mosaic_0001>

<llo_original>
// kernel: tpu_custom_call.1
$region0: #{tpu_custom_call.1}
  #allocation0 [shape = 'u32[]', space=smem, size = 0x4, offset = 0x4, fixed_abs, tag = 'smem constant byte address 0x4 - core index']
  #allocation1 [shape = 'u32[72,128]{1,0:T(1,128)}', space=vmem, size = 0x9000, scoped, tag = 'internal scratch']
  %s0 = inlined_call_operand.vmem [shape: f32[2,1,32], index: 0, kind: input, shape index: {}]
  %s1 = inlined_call_operand.vmem [shape: f32[32,2048], index: 1, kind: input, shape index: {}]
  %s2 = inlined_call_operand.vmem [shape: f32[1,2048], index: 2, kind: input, shape index: {}]
  %s3 = inlined_call_operand.vmem [shape: f32[3,384,64], index: 3, kind: input, shape index: {}]
  %s4 = inlined_call_operand.vmem [shape: f32[1,64], index: 4, kind: input, shape index: {}]
  %s5 = inlined_call_operand.vmem [shape: f32[1,64], index: 5, kind: input, shape index: {}]
  %s6 = inlined_call_operand.vmem [shape: f32[1,64], index: 6, kind: input, shape index: {}]
  %s7 = inlined_call_operand.vmem [shape: f32[3,192,32], index: 7, kind: input, shape index: {}]
  %s8 = inlined_call_operand.vmem [shape: f32[1,32], index: 8, kind: input, shape index: {}]
  %s9 = inlined_call_operand.vmem [shape: f32[1,32], index: 9, kind: input, shape index: {}]
  %s10 = inlined_call_operand.vmem [shape: f32[1,32], index: 10, kind: input, shape index: {}]
  %s11 = inlined_call_operand.vmem [shape: f32[3,96,3], index: 11, kind: input, shape index: {}]
  %s12 = inlined_call_operand.vmem [shape: f32[1,3], index: 12, kind: input, shape index: {}]
  %s13 = inlined_call_operand.vmem [shape: f32[2,256,3], index: 13, kind: output, shape index: {}]
  %s14 = sld [smem:[#allocation0]]
  $region85: #{tpu_custom_call.1} parent=0
    _
  %s16 = ssub.s32 1, %s14
  %s17 = scalar_select 0, %s16, %s14
  loop: start=0, step=1, limit=4
  $region2: #{tpu_custom_call.1} parent=0 // loop_pre_header
    _
  $region3: #{tpu_custom_call.1} parent=0 // loop_header
    %s19 = sphi 0, %s23
    %p20 = scmp.ge.s32.totalorder %s19, 4
    %s29 = sphi 0, %s31
    %s32 = sphi 0, %s29
    %s33 = sphi 0, %s32
    %s49 = sphi 0, %s33
    %s53 = sphi 0, %s53
    %s55 = sphi 0, %s53
    %s56 = sphi 0, %s55
    %s70 = sphi 0, %s56
    %s74 = sphi 0, %s74
    %s76 = sphi 0, %s74
    %s77 = sphi 0, %s76
    %s91 = sphi 0, %s77
    %s95 = sphi 0, %s95
    %s97 = sphi 0, %s95
    %s98 = sphi 0, %s97
    %s112 = sphi 0, %s98
    %s116 = sphi 0, %s116
    %s118 = sphi 0, %s116
    %s119 = sphi 0, %s118
    %s133 = sphi 0, %s119
    %s137 = sphi 0, %s137
    %s139 = sphi 0, %s137
    %s140 = sphi 0, %s139
    %s154 = sphi 0, %s140
    %s158 = sphi 0, %s158
    %s160 = sphi 0, %s158
    %s161 = sphi 0, %s160
    %s175 = sphi 0, %s161
    %s179 = sphi 0, %s179
    %s181 = sphi 0, %s179
    %s182 = sphi 0, %s181
    %s196 = sphi 0, %s182
    %s200 = sphi 0, %s200
    %s202 = sphi 0, %s200
    %s203 = sphi 0, %s202
    %s217 = sphi 0, %s203
    %s221 = sphi 0, %s221
    %s223 = sphi 0, %s221
    %s224 = sphi 0, %s223
    %s238 = sphi 0, %s224
    %s242 = sphi 0, %s242
    %s244 = sphi 0, %s242
    %s245 = sphi 0, %s244
    %s259 = sphi 0, %s245
    %s263 = sphi 0, %s263
    %s265 = sphi 0, %s263
    %s266 = sphi 0, %s265
    %s280 = sphi 0, %s266
    %s284 = sphi 0, %s284
    %s286 = sphi 0, %s284
    %s287 = sphi 0, %s286
    %s301 = sphi 0, %s287
    %s307 = sphi 0, %s309
    %s310 = sphi 0, %s307
    %s311 = sphi 0, %s310
    %s327 = sphi 0, %s311
  $region4: #{tpu_custom_call.1} parent=0 // loop_header_branch
    %22 = sbr.rel (%p20) target = $region8
  $region5: #{tpu_custom_call.1} parent=0 // loop_body
    %s24 = ssub.s32 %s19, 1
    %s25 = ssub.s32 %s19, 2
    %s26 = sadd.s32 %s19, 1
    %s27 = ssub.s32 %s19, %s26
    %p28 = scmp.eq.s32.totalorder %s27, 0
    %s30 = sadd.s32 %s29, 1
    %s31 = scalar_select %p28, %s29, %s30
    %p34 = pneg %p28
    %p35 = scmp.eq.s32.totalorder %s19, 1
    %p36 = por %p34, %p35
    %p37 = scmp.ne.s32.totalorder %s29, %s32
    %p38 = scmp.eq.s32.totalorder %s19, 0
    %p39 = por %p37, %p38
    %p40 = scmp.ne.s32.totalorder %s29, %s32
    %p41 = scmp.eq.s32.totalorder %s24, 1
    %p42 = por %p40, %p41
    %p43 = scmp.ne.s32.totalorder %s32, %s33
    %p44 = scmp.eq.s32.totalorder %s24, 0
    %p45 = por %p43, %p44
    %p46 = scmp.ne.s32.totalorder %s32, %s33
    %p47 = scmp.eq.s32.totalorder %s25, 1
    %p48 = por %p46, %p47
    %p50 = scmp.ne.s32.totalorder %s33, %s49
    %p51 = scmp.eq.s32.totalorder %s25, 0
    %p52 = por %p50, %p51
    %s54 = sadd.s32 %s53, 1
    %p57 = scmp.eq.s32.totalorder %s19, 1
    %p58 = scmp.ne.s32.totalorder %s53, %s55
    %p59 = scmp.eq.s32.totalorder %s19, 0
    %p60 = por %p58, %p59
    %p61 = scmp.ne.s32.totalorder %s53, %s55
    %p62 = scmp.eq.s32.totalorder %s24, 1
    %p63 = por %p61, %p62
    %p64 = scmp.ne.s32.totalorder %s55, %s56
    %p65 = scmp.eq.s32.totalorder %s24, 0
    %p66 = por %p64, %p65
    %p67 = scmp.ne.s32.totalorder %s55, %s56
    %p68 = scmp.eq.s32.totalorder %s25, 1
    %p69 = por %p67, %p68
    %p71 = scmp.ne.s32.totalorder %s56, %s70
    %p72 = scmp.eq.s32.totalorder %s25, 0
    %p73 = por %p71, %p72
    %s75 = sadd.s32 %s74, 1
    %p78 = scmp.eq.s32.totalorder %s19, 1
    %p79 = scmp.ne.s32.totalorder %s74, %s76
    %p80 = scmp.eq.s32.totalorder %s19, 0
    %p81 = por %p79, %p80
    %p82 = scmp.ne.s32.totalorder %s74, %s76
    %p83 = scmp.eq.s32.totalorder %s24, 1
    %p84 = por %p82, %p83
    %p85 = scmp.ne.s32.totalorder %s76, %s77
    %p86 = scmp.eq.s32.totalorder %s24, 0
    %p87 = por %p85, %p86
    %p88 = scmp.ne.s32.totalorder %s76, %s77
    %p89 = scmp.eq.s32.totalorder %s25, 1
    %p90 = por %p88, %p89
    %p92 = scmp.ne.s32.totalorder %s77, %s91
    %p93 = scmp.eq.s32.totalorder %s25, 0
    %p94 = por %p92, %p93
    %s96 = sadd.s32 %s95, 1
    %p99 = scmp.eq.s32.totalorder %s19, 1
    %p100 = scmp.ne.s32.totalorder %s95, %s97
    %p101 = scmp.eq.s32.totalorder %s19, 0
    %p102 = por %p100, %p101
    %p103 = scmp.ne.s32.totalorder %s95, %s97
    %p104 = scmp.eq.s32.totalorder %s24, 1
    %p105 = por %p103, %p104
    %p106 = scmp.ne.s32.totalorder %s97, %s98
    %p107 = scmp.eq.s32.totalorder %s24, 0
    %p108 = por %p106, %p107
    %p109 = scmp.ne.s32.totalorder %s97, %s98
    %p110 = scmp.eq.s32.totalorder %s25, 1
    %p111 = por %p109, %p110
    %p113 = scmp.ne.s32.totalorder %s98, %s112
    %p114 = scmp.eq.s32.totalorder %s25, 0
    %p115 = por %p113, %p114
    %s117 = sadd.s32 %s116, 1
    %p120 = scmp.eq.s32.totalorder %s19, 1
    %p121 = scmp.ne.s32.totalorder %s116, %s118
    %p122 = scmp.eq.s32.totalorder %s19, 0
    %p123 = por %p121, %p122
    %p124 = scmp.ne.s32.totalorder %s116, %s118
    %p125 = scmp.eq.s32.totalorder %s24, 1
    %p126 = por %p124, %p125
    %p127 = scmp.ne.s32.totalorder %s118, %s119
    %p128 = scmp.eq.s32.totalorder %s24, 0
    %p129 = por %p127, %p128
    %p130 = scmp.ne.s32.totalorder %s118, %s119
    %p131 = scmp.eq.s32.totalorder %s25, 1
    %p132 = por %p130, %p131
    %p134 = scmp.ne.s32.totalorder %s119, %s133
    %p135 = scmp.eq.s32.totalorder %s25, 0
    %p136 = por %p134, %p135
    %s138 = sadd.s32 %s137, 1
    %p141 = scmp.eq.s32.totalorder %s19, 1
    %p142 = scmp.ne.s32.totalorder %s137, %s139
    %p143 = scmp.eq.s32.totalorder %s19, 0
    %p144 = por %p142, %p143
    %p145 = scmp.ne.s32.totalorder %s137, %s139
    %p146 = scmp.eq.s32.totalorder %s24, 1
    %p147 = por %p145, %p146
    %p148 = scmp.ne.s32.totalorder %s139, %s140
    %p149 = scmp.eq.s32.totalorder %s24, 0
    %p150 = por %p148, %p149
    %p151 = scmp.ne.s32.totalorder %s139, %s140
    %p152 = scmp.eq.s32.totalorder %s25, 1
    %p153 = por %p151, %p152
    %p155 = scmp.ne.s32.totalorder %s140, %s154
    %p156 = scmp.eq.s32.totalorder %s25, 0
    %p157 = por %p155, %p156
    %s159 = sadd.s32 %s158, 1
    %p162 = scmp.eq.s32.totalorder %s19, 1
    %p163 = scmp.ne.s32.totalorder %s158, %s160
    %p164 = scmp.eq.s32.totalorder %s19, 0
    %p165 = por %p163, %p164
    %p166 = scmp.ne.s32.totalorder %s158, %s160
    %p167 = scmp.eq.s32.totalorder %s24, 1
    %p168 = por %p166, %p167
    %p169 = scmp.ne.s32.totalorder %s160, %s161
    %p170 = scmp.eq.s32.totalorder %s24, 0
    %p171 = por %p169, %p170
    %p172 = scmp.ne.s32.totalorder %s160, %s161
    %p173 = scmp.eq.s32.totalorder %s25, 1
    %p174 = por %p172, %p173
    %p176 = scmp.ne.s32.totalorder %s161, %s175
    %p177 = scmp.eq.s32.totalorder %s25, 0
    %p178 = por %p176, %p177
    %s180 = sadd.s32 %s179, 1
    %p183 = scmp.eq.s32.totalorder %s19, 1
    %p184 = scmp.ne.s32.totalorder %s179, %s181
    %p185 = scmp.eq.s32.totalorder %s19, 0
    %p186 = por %p184, %p185
    %p187 = scmp.ne.s32.totalorder %s179, %s181
    %p188 = scmp.eq.s32.totalorder %s24, 1
    %p189 = por %p187, %p188
    %p190 = scmp.ne.s32.totalorder %s181, %s182
    %p191 = scmp.eq.s32.totalorder %s24, 0
    %p192 = por %p190, %p191
    %p193 = scmp.ne.s32.totalorder %s181, %s182
    %p194 = scmp.eq.s32.totalorder %s25, 1
    %p195 = por %p193, %p194
    %p197 = scmp.ne.s32.totalorder %s182, %s196
    %p198 = scmp.eq.s32.totalorder %s25, 0
    %p199 = por %p197, %p198
    %s201 = sadd.s32 %s200, 1
    %p204 = scmp.eq.s32.totalorder %s19, 1
    %p205 = scmp.ne.s32.totalorder %s200, %s202
    %p206 = scmp.eq.s32.totalorder %s19, 0
    %p207 = por %p205, %p206
    %p208 = scmp.ne.s32.totalorder %s200, %s202
    %p209 = scmp.eq.s32.totalorder %s24, 1
    %p210 = por %p208, %p209
    %p211 = scmp.ne.s32.totalorder %s202, %s203
    %p212 = scmp.eq.s32.totalorder %s24, 0
    %p213 = por %p211, %p212
    %p214 = scmp.ne.s32.totalorder %s202, %s203
    %p215 = scmp.eq.s32.totalorder %s25, 1
    %p216 = por %p214, %p215
    %p218 = scmp.ne.s32.totalorder %s203, %s217
    %p219 = scmp.eq.s32.totalorder %s25, 0
    %p220 = por %p218, %p219
    %s222 = sadd.s32 %s221, 1
    %p225 = scmp.eq.s32.totalorder %s19, 1
    %p226 = scmp.ne.s32.totalorder %s221, %s223
    %p227 = scmp.eq.s32.totalorder %s19, 0
    %p228 = por %p226, %p227
    %p229 = scmp.ne.s32.totalorder %s221, %s223
    %p230 = scmp.eq.s32.totalorder %s24, 1
    %p231 = por %p229, %p230
    %p232 = scmp.ne.s32.totalorder %s223, %s224
    %p233 = scmp.eq.s32.totalorder %s24, 0
    %p234 = por %p232, %p233
    %p235 = scmp.ne.s32.totalorder %s223, %s224
    %p236 = scmp.eq.s32.totalorder %s25, 1
    %p237 = por %p235, %p236
    %p239 = scmp.ne.s32.totalorder %s224, %s238
    %p240 = scmp.eq.s32.totalorder %s25, 0
    %p241 = por %p239, %p240
    %s243 = sadd.s32 %s242, 1
    %p246 = scmp.eq.s32.totalorder %s19, 1
    %p247 = scmp.ne.s32.totalorder %s242, %s244
    %p248 = scmp.eq.s32.totalorder %s19, 0
    %p249 = por %p247, %p248
    %p250 = scmp.ne.s32.totalorder %s242, %s244
    %p251 = scmp.eq.s32.totalorder %s24, 1
    %p252 = por %p250, %p251
    %p253 = scmp.ne.s32.totalorder %s244, %s245
    %p254 = scmp.eq.s32.totalorder %s24, 0
    %p255 = por %p253, %p254
    %p256 = scmp.ne.s32.totalorder %s244, %s245
    %p257 = scmp.eq.s32.totalorder %s25, 1
    %p258 = por %p256, %p257
    %p260 = scmp.ne.s32.totalorder %s245, %s259
    %p261 = scmp.eq.s32.totalorder %s25, 0
    %p262 = por %p260, %p261
    %s264 = sadd.s32 %s263, 1
    %p267 = scmp.eq.s32.totalorder %s19, 1
    %p268 = scmp.ne.s32.totalorder %s263, %s265
    %p269 = scmp.eq.s32.totalorder %s19, 0
    %p270 = por %p268, %p269
    %p271 = scmp.ne.s32.totalorder %s263, %s265
    %p272 = scmp.eq.s32.totalorder %s24, 1
    %p273 = por %p271, %p272
    %p274 = scmp.ne.s32.totalorder %s265, %s266
    %p275 = scmp.eq.s32.totalorder %s24, 0
    %p276 = por %p274, %p275
    %p277 = scmp.ne.s32.totalorder %s265, %s266
    %p278 = scmp.eq.s32.totalorder %s25, 1
    %p279 = por %p277, %p278
    %p281 = scmp.ne.s32.totalorder %s266, %s280
    %p282 = scmp.eq.s32.totalorder %s25, 0
    %p283 = por %p281, %p282
    %s285 = sadd.s32 %s284, 1
    %p288 = scmp.eq.s32.totalorder %s19, 1
    %p289 = scmp.ne.s32.totalorder %s284, %s286
    %p290 = scmp.eq.s32.totalorder %s19, 0
    %p291 = por %p289, %p290
    %p292 = scmp.ne.s32.totalorder %s284, %s286
    %p293 = scmp.eq.s32.totalorder %s24, 1
    %p294 = por %p292, %p293
    %p295 = scmp.ne.s32.totalorder %s286, %s287
    %p296 = scmp.eq.s32.totalorder %s24, 0
    %p297 = por %p295, %p296
    %p298 = scmp.ne.s32.totalorder %s286, %s287
    %p299 = scmp.eq.s32.totalorder %s25, 1
    %p300 = por %p298, %p299
    %p302 = scmp.ne.s32.totalorder %s287, %s301
    %p303 = scmp.eq.s32.totalorder %s25, 0
    %p304 = por %p302, %p303
    %s305 = ssub.s32 %s19, %s26
    %p306 = scmp.eq.s32.totalorder %s305, 0
    %s308 = sadd.s32 %s307, 1
    %s309 = scalar_select %p306, %s307, %s308
    %p312 = pneg %p306
    %p313 = scmp.eq.s32.totalorder %s19, 1
    %p314 = por %p312, %p313
    %p315 = scmp.ne.s32.totalorder %s307, %s310
    %p316 = scmp.eq.s32.totalorder %s19, 0
    %p317 = por %p315, %p316
    %p318 = scmp.ne.s32.totalorder %s307, %s310
    %p319 = scmp.eq.s32.totalorder %s24, 1
    %p320 = por %p318, %p319
    %p321 = scmp.ne.s32.totalorder %s310, %s311
    %p322 = scmp.eq.s32.totalorder %s24, 0
    %p323 = por %p321, %p322
    %p324 = scmp.ne.s32.totalorder %s310, %s311
    %p325 = scmp.eq.s32.totalorder %s25, 1
    %p326 = por %p324, %p325
    %p328 = scmp.ne.s32.totalorder %s311, %s327
    %p329 = scmp.eq.s32.totalorder %s25, 0
    %p330 = por %p328, %p329
    %p331 = scmp.le.s32.totalorder 1, %s19
    %p332 = scmp.lt.s32.totalorder %s19, 3
    %p333 = pnand %p331, %p332
    %p334 = pneg %p333
    // Predicated region
    $region9: #{tpu_custom_call.1} parent=5 // pred_check
      _
    $region10: #{tpu_custom_call.1} parent=5 // pred_check_branch
      %336 = sbr.rel (%p333) target = $region12
    $region11: #{tpu_custom_call.1} parent=5 // pred_region
      %s337 = ssub.s32 %s19, 1
      // Predicated region
      $region13: #{tpu_custom_call.1} parent=11 // pred_check
        %p338 = pneg %p66
      $region14: #{tpu_custom_call.1} parent=11 // pred_check_branch
        %340 = sbr.rel (%p338) target = $region16
      $region15: #{tpu_custom_call.1} parent=11 // pred_region
        _
      $region16: #{tpu_custom_call.1} parent=11 // pred_fallthru
        _
      // Predicated region
      $region17: #{tpu_custom_call.1} parent=11 // pred_check
        %p341 = pneg %p87
      $region18: #{tpu_custom_call.1} parent=11 // pred_check_branch
        %343 = sbr.rel (%p341) target = $region20
      $region19: #{tpu_custom_call.1} parent=11 // pred_region
        _
      $region20: #{tpu_custom_call.1} parent=11 // pred_fallthru
        _
      // Predicated region
      $region21: #{tpu_custom_call.1} parent=11 // pred_check
        %p344 = pneg %p108
      $region22: #{tpu_custom_call.1} parent=11 // pred_check_branch
        %346 = sbr.rel (%p344) target = $region24
      $region23: #{tpu_custom_call.1} parent=11 // pred_region
        _
      $region24: #{tpu_custom_call.1} parent=11 // pred_fallthru
        _
      // Predicated region
      $region25: #{tpu_custom_call.1} parent=11 // pred_check
        %p347 = pneg %p129
      $region26: #{tpu_custom_call.1} parent=11 // pred_check_branch
        %349 = sbr.rel (%p347) target = $region28
      $region27: #{tpu_custom_call.1} parent=11 // pred_region
        _
      $region28: #{tpu_custom_call.1} parent=11 // pred_fallthru
        _
      // Predicated region
      $region29: #{tpu_custom_call.1} parent=11 // pred_check
        %p350 = pneg %p150
      $region30: #{tpu_custom_call.1} parent=11 // pred_check_branch
        %352 = sbr.rel (%p350) target = $region32
      $region31: #{tpu_custom_call.1} parent=11 // pred_region
        _
      $region32: #{tpu_custom_call.1} parent=11 // pred_fallthru
        _
      // Predicated region
      $region33: #{tpu_custom_call.1} parent=11 // pred_check
        %p353 = pneg %p171
      $region34: #{tpu_custom_call.1} parent=11 // pred_check_branch
        %355 = sbr.rel (%p353) target = $region36
      $region35: #{tpu_custom_call.1} parent=11 // pred_region
        _
      $region36: #{tpu_custom_call.1} parent=11 // pred_fallthru
        _
      // Predicated region
      $region37: #{tpu_custom_call.1} parent=11 // pred_check
        %p356 = pneg %p192
      $region38: #{tpu_custom_call.1} parent=11 // pred_check_branch
        %358 = sbr.rel (%p356) target = $region40
      $region39: #{tpu_custom_call.1} parent=11 // pred_region
        _
      $region40: #{tpu_custom_call.1} parent=11 // pred_fallthru
        _
      // Predicated region
      $region41: #{tpu_custom_call.1} parent=11 // pred_check
        %p359 = pneg %p213
      $region42: #{tpu_custom_call.1} parent=11 // pred_check_branch
        %361 = sbr.rel (%p359) target = $region44
      $region43: #{tpu_custom_call.1} parent=11 // pred_region
        _
      $region44: #{tpu_custom_call.1} parent=11 // pred_fallthru
        _
      // Predicated region
      $region45: #{tpu_custom_call.1} parent=11 // pred_check
        %p362 = pneg %p234
      $region46: #{tpu_custom_call.1} parent=11 // pred_check_branch
        %364 = sbr.rel (%p362) target = $region48
      $region47: #{tpu_custom_call.1} parent=11 // pred_region
        _
      $region48: #{tpu_custom_call.1} parent=11 // pred_fallthru
        _
      // Predicated region
      $region49: #{tpu_custom_call.1} parent=11 // pred_check
        %p365 = pneg %p255
      $region50: #{tpu_custom_call.1} parent=11 // pred_check_branch
        %367 = sbr.rel (%p365) target = $region52
      $region51: #{tpu_custom_call.1} parent=11 // pred_region
        _
      $region52: #{tpu_custom_call.1} parent=11 // pred_fallthru
        _
      // Predicated region
      $region53: #{tpu_custom_call.1} parent=11 // pred_check
        %p368 = pneg %p276
      $region54: #{tpu_custom_call.1} parent=11 // pred_check_branch
        %370 = sbr.rel (%p368) target = $region56
      $region55: #{tpu_custom_call.1} parent=11 // pred_region
        _
      $region56: #{tpu_custom_call.1} parent=11 // pred_fallthru
        _
      // Predicated region
      $region57: #{tpu_custom_call.1} parent=11 // pred_check
        %p371 = pneg %p297
      $region58: #{tpu_custom_call.1} parent=11 // pred_check_branch
        %373 = sbr.rel (%p371) target = $region60
      $region59: #{tpu_custom_call.1} parent=11 // pred_region
        _
      $region60: #{tpu_custom_call.1} parent=11 // pred_fallthru
        _
    $region12: #{tpu_custom_call.1} parent=5 // pred_fallthru
      _
    %p374 = scmp.lt.s32.totalorder %s19, 2
    // Predicated region
    $region61: #{tpu_custom_call.1} parent=5 // pred_check
      %p375 = pneg %p374
    $region62: #{tpu_custom_call.1} parent=5 // pred_check_branch
      %377 = sbr.rel (%p375) target = $region64
    $region63: #{tpu_custom_call.1} parent=5 // pred_region
      // Predicated region
      $region65: #{tpu_custom_call.1} parent=63 // pred_check
        %p378 = pneg %p39
      $region66: #{tpu_custom_call.1} parent=63 // pred_check_branch
        %380 = sbr.rel (%p378) target = $region68
      $region67: #{tpu_custom_call.1} parent=63 // pred_region
        %p381 = scmp.lt.s32.totalorder %s19, 1
        %s382 = scalar_select %p381, %s19, 1
        %s383 = scalar_lea.vmem %s0, %s382
      $region68: #{tpu_custom_call.1} parent=63 // pred_fallthru
        _
    $region64: #{tpu_custom_call.1} parent=5 // pred_fallthru
      _
    %p384 = scmp.le.s32.totalorder 1, %s19
    %p385 = scmp.lt.s32.totalorder %s19, 3
    %p386 = pnand %p384, %p385
    %p387 = pneg %p386
    // Predicated region
    $region69: #{tpu_custom_call.1} parent=5 // pred_check
      _
    $region70: #{tpu_custom_call.1} parent=5 // pred_check_branch
      %389 = sbr.rel (%p386) target = $region72
    $region71: #{tpu_custom_call.1} parent=5 // pred_region
      %s390 = ssub.s32 %s19, 1
      %p391 = scmp.lt.s32.totalorder %s24, 1
      %s392 = scalar_select %p391, %s24, 1
      %s393 = scalar_lea.vmem %s0, %s392
      %p394 = pneg %p45
      %p395 = pneg %p42
      %p396 = pneg %p66
      %p397 = pneg %p63
      %p398 = pneg %p87
      %p399 = pneg %p84
      %p400 = pneg %p108
      %p401 = pneg %p105
      %p402 = pneg %p129
      %p403 = pneg %p126
      %p404 = pneg %p150
      %p405 = pneg %p147
      %p406 = pneg %p171
      %p407 = pneg %p168
      %p408 = pneg %p192
      %p409 = pneg %p189
      %p410 = pneg %p213
      %p411 = pneg %p210
      %p412 = pneg %p234
      %p413 = pneg %p231
      %p414 = pneg %p255
      %p415 = pneg %p252
      %p416 = pneg %p276
      %p417 = pneg %p273
      %p418 = pneg %p297
      %p419 = pneg %p294
      %p420 = pneg %p323
      %p421 = pneg %p320
      %p422 = scmp.lt.s32.totalorder %s24, 1
      %s423 = scalar_select %p422, %s24, 1
      %s424 = smul.addr %s423, 32
      %s425 = smul.addr %s424, 8
      %s426 = scalar_lea.vmem %s13, %s425
      %p427 = scmp.lt.s32.totalorder %s24, 1
      %s428 = scalar_select %p427, %s24, 1
      %s429 = scalar_lea.vmem %s0, %s428
      %p430 = scmp.lt.s32.totalorder %s24, 1
      %s431 = scalar_select %p430, %s24, 1
      %s432 = smul.addr %s431, 32
      %s433 = smul.addr %s432, 8
      %s434 = scalar_lea.vmem %s13, %s433
      %v435 = vld [vmem:[%s429] sm:$0x1]
      %v436 = vld [vmem:[%s1] sm:$0xff]
      %v437 = vld [vmem:[%s1 + $0x8] sm:$0xff]
      %v438 = vld [vmem:[%s1 + $0x10] sm:$0xff]
      %v439 = vld [vmem:[%s1 + $0x18] sm:$0xff]
      %v440 = vld [vmem:[%s1 + $0x20] sm:$0xff]
      %v441 = vld [vmem:[%s1 + $0x28] sm:$0xff]
      %v442 = vld [vmem:[%s1 + $0x30] sm:$0xff]
      %v443 = vld [vmem:[%s1 + $0x38] sm:$0xff]
      %v444 = vld [vmem:[%s1 + $0x40] sm:$0xff]
      %v445 = vld [vmem:[%s1 + $0x48] sm:$0xff]
      %v446 = vld [vmem:[%s1 + $0x50] sm:$0xff]
      %v447 = vld [vmem:[%s1 + $0x58] sm:$0xff]
      %v448 = vld [vmem:[%s1 + $0x60] sm:$0xff]
      %v449 = vld [vmem:[%s1 + $0x68] sm:$0xff]
      %v450 = vld [vmem:[%s1 + $0x70] sm:$0xff]
      %v451 = vld [vmem:[%s1 + $0x78] sm:$0xff]
      %v452 = vld [vmem:[%s1 + $0x80] sm:$0xff]
      %v453 = vld [vmem:[%s1 + $0x88] sm:$0xff]
      %v454 = vld [vmem:[%s1 + $0x90] sm:$0xff]
      %v455 = vld [vmem:[%s1 + $0x98] sm:$0xff]
      %v456 = vld [vmem:[%s1 + $0xa0] sm:$0xff]
      %v457 = vld [vmem:[%s1 + $0xa8] sm:$0xff]
      %v458 = vld [vmem:[%s1 + $0xb0] sm:$0xff]
      %v459 = vld [vmem:[%s1 + $0xb8] sm:$0xff]
      %v460 = vld [vmem:[%s1 + $0xc0] sm:$0xff]
      %v461 = vld [vmem:[%s1 + $0xc8] sm:$0xff]
      %v462 = vld [vmem:[%s1 + $0xd0] sm:$0xff]
      %v463 = vld [vmem:[%s1 + $0xd8] sm:$0xff]
      %v464 = vld [vmem:[%s1 + $0xe0] sm:$0xff]
      %v465 = vld [vmem:[%s1 + $0xe8] sm:$0xff]
      %v466 = vld [vmem:[%s1 + $0xf0] sm:$0xff]
      %v467 = vld [vmem:[%s1 + $0xf8] sm:$0xff]
      %v468 = vld [vmem:[%s1 + $0x100] sm:$0xff]
      %v469 = vld [vmem:[%s1 + $0x108] sm:$0xff]
      %v470 = vld [vmem:[%s1 + $0x110] sm:$0xff]
      %v471 = vld [vmem:[%s1 + $0x118] sm:$0xff]
      %v472 = vld [vmem:[%s1 + $0x120] sm:$0xff]
      %v473 = vld [vmem:[%s1 + $0x128] sm:$0xff]
      %v474 = vld [vmem:[%s1 + $0x130] sm:$0xff]
      %v475 = vld [vmem:[%s1 + $0x138] sm:$0xff]
      %v476 = vld [vmem:[%s1 + $0x140] sm:$0xff]
      %v477 = vld [vmem:[%s1 + $0x148] sm:$0xff]
      %v478 = vld [vmem:[%s1 + $0x150] sm:$0xff]
      %v479 = vld [vmem:[%s1 + $0x158] sm:$0xff]
      %v480 = vld [vmem:[%s1 + $0x160] sm:$0xff]
      %v481 = vld [vmem:[%s1 + $0x168] sm:$0xff]
      %v482 = vld [vmem:[%s1 + $0x170] sm:$0xff]
      %v483 = vld [vmem:[%s1 + $0x178] sm:$0xff]
      %v484 = vld [vmem:[%s1 + $0x180] sm:$0xff]
      %v485 = vld [vmem:[%s1 + $0x188] sm:$0xff]
      %v486 = vld [vmem:[%s1 + $0x190] sm:$0xff]
      %v487 = vld [vmem:[%s1 + $0x198] sm:$0xff]
      %v488 = vld [vmem:[%s1 + $0x1a0] sm:$0xff]
      %v489 = vld [vmem:[%s1 + $0x1a8] sm:$0xff]
      %v490 = vld [vmem:[%s1 + $0x1b0] sm:$0xff]
      %v491 = vld [vmem:[%s1 + $0x1b8] sm:$0xff]
      %v492 = vld [vmem:[%s1 + $0x1c0] sm:$0xff]
      %v493 = vld [vmem:[%s1 + $0x1c8] sm:$0xff]
      %v494 = vld [vmem:[%s1 + $0x1d0] sm:$0xff]
      %v495 = vld [vmem:[%s1 + $0x1d8] sm:$0xff]
      %v496 = vld [vmem:[%s1 + $0x1e0] sm:$0xff]
      %v497 = vld [vmem:[%s1 + $0x1e8] sm:$0xff]
      %v498 = vld [vmem:[%s1 + $0x1f0] sm:$0xff]
      %v499 = vld [vmem:[%s1 + $0x1f8] sm:$0xff]
      %v500 = vld [vmem:[%s2] sm:$0xff]
      %v501 = vld [vmem:[%s2 + $0x8] sm:$0xff]
      %v504 = vperm.slane %v500, 0
      %v505 = vperm.slane %v500, 1
      %v506 = vperm.slane %v500, 2
      %v507 = vperm.slane %v500, 3
      %v508 = vperm.slane %v500, 4
      %v509 = vperm.slane %v500, 5
      %v510 = vperm.slane %v500, 6
      %v511 = vperm.slane %v500, 7
      %v512 = vperm.slane %v501, 0
      %v513 = vperm.slane %v501, 1
      %v514 = vperm.slane %v501, 2
      %v515 = vperm.slane %v501, 3
      %v516 = vperm.slane %v501, 4
      %v517 = vperm.slane %v501, 5
      %v518 = vperm.slane %v501, 6
      %v519 = vperm.slane %v501, 7
      %vm536 = vcmask 261120
      %v538 = vsel %vm536, %v435, 0
      %540 = vmatpush.msra.mxu0 0.0
      %541 = vmatpush.msra.mxu0 0.0
      %542 = vmatpush.msra.mxu0 0.0
      %543 = vmatpush.msra.mxu0 0.0
      %544 = vmatpush.msra.mxu0 0.0
      %545 = vmatpush.msra.mxu0 0.0
      %546 = vmatpush.msra.mxu0 0.0
      %547 = vmatpush.msra.mxu0 0.0
      %548 = vmatpush.msra.mxu0 0.0
      %549 = vmatpush.msra.mxu0 0.0
      %550 = vmatpush.msra.mxu0 0.0
      %551 = vmatpush.msra.mxu0 0.0
      %552 = vmatpush.msra.mxu0 %v484
      %553 = vmatpush.msra.mxu0 %v468
      %554 = vmatpush.msra.mxu0 %v452
      %555 = vmatpush.msra.mxu0 %v436
      %556 = vmatmul.f32.gmra.mxu0 %v538
      %v557 = vpop.f32.mrf.mxu0
      %v558 = vadd.f32 %v504, %v557
      %559 = vdwg.mxu0
      %560 = vmatpush.msra.mxu0 0.0
      %561 = vmatpush.msra.mxu0 0.0
      %562 = vmatpush.msra.mxu0 0.0
      %563 = vmatpush.msra.mxu0 0.0
      %564 = vmatpush.msra.mxu0 0.0
      %565 = vmatpush.msra.mxu0 0.0
      %566 = vmatpush.msra.mxu0 0.0
      %567 = vmatpush.msra.mxu0 0.0
      %568 = vmatpush.msra.mxu0 0.0
      %569 = vmatpush.msra.mxu0 0.0
      %570 = vmatpush.msra.mxu0 0.0
      %571 = vmatpush.msra.mxu0 0.0
      %572 = vmatpush.msra.mxu0 %v485
      %573 = vmatpush.msra.mxu0 %v469
      %574 = vmatpush.msra.mxu0 %v453
      %575 = vmatpush.msra.mxu0 %v437
      %576 = vmatmul.f32.gmra.mxu0 %v538
      %v577 = vpop.f32.mrf.mxu0
      %v578 = vadd.f32 %v505, %v577
      %579 = vdwg.mxu0
      %580 = vmatpush.msra.mxu0 0.0
      %581 = vmatpush.msra.mxu0 0.0
      %582 = vmatpush.msra.mxu0 0.0
      %583 = vmatpush.msra.mxu0 0.0
      %584 = vmatpush.msra.mxu0 0.0
      %585 = vmatpush.msra.mxu0 0.0
      %586 = vmatpush.msra.mxu0 0.0
      %587 = vmatpush.msra.mxu0 0.0
      %588 = vmatpush.msra.mxu0 0.0
      %589 = vmatpush.msra.mxu0 0.0
      %590 = vmatpush.msra.mxu0 0.0
      %591 = vmatpush.msra.mxu0 0.0
      %592 = vmatpush.msra.mxu0 %v486
      %593 = vmatpush.msra.mxu0 %v470
      %594 = vmatpush.msra.mxu0 %v454
      %595 = vmatpush.msra.mxu0 %v438
      %596 = vmatmul.f32.gmra.mxu0 %v538
      %v597 = vpop.f32.mrf.mxu0
      %v598 = vadd.f32 %v506, %v597
      %599 = vdwg.mxu0
      %600 = vmatpush.msra.mxu0 0.0
      %601 = vmatpush.msra.mxu0 0.0
      %602 = vmatpush.msra.mxu0 0.0
      %603 = vmatpush.msra.mxu0 0.0
      %604 = vmatpush.msra.mxu0 0.0
      %605 = vmatpush.msra.mxu0 0.0
      %606 = vmatpush.msra.mxu0 0.0
      %607 = vmatpush.msra.mxu0 0.0
      %608 = vmatpush.msra.mxu0 0.0
      %609 = vmatpush.msra.mxu0 0.0
      %610 = vmatpush.msra.mxu0 0.0
      %611 = vmatpush.msra.mxu0 0.0
      %612 = vmatpush.msra.mxu0 %v487
      %613 = vmatpush.msra.mxu0 %v471
      %614 = vmatpush.msra.mxu0 %v455
      %615 = vmatpush.msra.mxu0 %v439
      %616 = vmatmul.f32.gmra.mxu0 %v538
      %v617 = vpop.f32.mrf.mxu0
      %v618 = vadd.f32 %v507, %v617
      %619 = vdwg.mxu0
      %620 = vmatpush.msra.mxu0 0.0
      %621 = vmatpush.msra.mxu0 0.0
      %622 = vmatpush.msra.mxu0 0.0
      %623 = vmatpush.msra.mxu0 0.0
      %624 = vmatpush.msra.mxu0 0.0
      %625 = vmatpush.msra.mxu0 0.0
      %626 = vmatpush.msra.mxu0 0.0
      %627 = vmatpush.msra.mxu0 0.0
      %628 = vmatpush.msra.mxu0 0.0
      %629 = vmatpush.msra.mxu0 0.0
      %630 = vmatpush.msra.mxu0 0.0
      %631 = vmatpush.msra.mxu0 0.0
      %632 = vmatpush.msra.mxu0 %v488
      %633 = vmatpush.msra.mxu0 %v472
      %634 = vmatpush.msra.mxu0 %v456
      %635 = vmatpush.msra.mxu0 %v440
      %636 = vmatmul.f32.gmra.mxu0 %v538
      %v637 = vpop.f32.mrf.mxu0
      %v638 = vadd.f32 %v508, %v637
      %639 = vdwg.mxu0
      %640 = vmatpush.msra.mxu0 0.0
      %641 = vmatpush.msra.mxu0 0.0
      %642 = vmatpush.msra.mxu0 0.0
      %643 = vmatpush.msra.mxu0 0.0
      %644 = vmatpush.msra.mxu0 0.0
      %645 = vmatpush.msra.mxu0 0.0
      %646 = vmatpush.msra.mxu0 0.0
      %647 = vmatpush.msra.mxu0 0.0
      %648 = vmatpush.msra.mxu0 0.0
      %649 = vmatpush.msra.mxu0 0.0
      %650 = vmatpush.msra.mxu0 0.0
      %651 = vmatpush.msra.mxu0 0.0
      %652 = vmatpush.msra.mxu0 %v489
      %653 = vmatpush.msra.mxu0 %v473
      %654 = vmatpush.msra.mxu0 %v457
      %655 = vmatpush.msra.mxu0 %v441
      %656 = vmatmul.f32.gmra.mxu0 %v538
      %v657 = vpop.f32.mrf.mxu0
      %v658 = vadd.f32 %v509, %v657
      %659 = vdwg.mxu0
      %660 = vmatpush.msra.mxu0 0.0
      %661 = vmatpush.msra.mxu0 0.0
      %662 = vmatpush.msra.mxu0 0.0
      %663 = vmatpush.msra.mxu0 0.0
      %664 = vmatpush.msra.mxu0 0.0
      %665 = vmatpush.msra.mxu0 0.0
      %666 = vmatpush.msra.mxu0 0.0
      %667 = vmatpush.msra.mxu0 0.0
      %668 = vmatpush.msra.mxu0 0.0
      %669 = vmatpush.msra.mxu0 0.0
      %670 = vmatpush.msra.mxu0 0.0
      %671 = vmatpush.msra.mxu0 0.0
      %672 = vmatpush.msra.mxu0 %v490
      %673 = vmatpush.msra.mxu0 %v474
      %674 = vmatpush.msra.mxu0 %v458
      %675 = vmatpush.msra.mxu0 %v442
      %676 = vmatmul.f32.gmra.mxu0 %v538
      %v677 = vpop.f32.mrf.mxu0
      %v678 = vadd.f32 %v510, %v677
      %679 = vdwg.mxu0
      %680 = vmatpush.msra.mxu0 0.0
      %681 = vmatpush.msra.mxu0 0.0
      %682 = vmatpush.msra.mxu0 0.0
      %683 = vmatpush.msra.mxu0 0.0
      %684 = vmatpush.msra.mxu0 0.0
      %685 = vmatpush.msra.mxu0 0.0
      %686 = vmatpush.msra.mxu0 0.0
      %687 = vmatpush.msra.mxu0 0.0
      %688 = vmatpush.msra.mxu0 0.0
      %689 = vmatpush.msra.mxu0 0.0
      %690 = vmatpush.msra.mxu0 0.0
      %691 = vmatpush.msra.mxu0 0.0
      %692 = vmatpush.msra.mxu0 %v491
      %693 = vmatpush.msra.mxu0 %v475
      %694 = vmatpush.msra.mxu0 %v459
      %695 = vmatpush.msra.mxu0 %v443
      %696 = vmatmul.f32.gmra.mxu0 %v538
      %v697 = vpop.f32.mrf.mxu0
      %v698 = vadd.f32 %v511, %v697
      %699 = vdwg.mxu0
      %700 = vmatpush.msra.mxu0 0.0
      %701 = vmatpush.msra.mxu0 0.0
      %702 = vmatpush.msra.mxu0 0.0
      %703 = vmatpush.msra.mxu0 0.0
      %704 = vmatpush.msra.mxu0 0.0
      %705 = vmatpush.msra.mxu0 0.0
      %706 = vmatpush.msra.mxu0 0.0
      %707 = vmatpush.msra.mxu0 0.0
      %708 = vmatpush.msra.mxu0 0.0
      %709 = vmatpush.msra.mxu0 0.0
      %710 = vmatpush.msra.mxu0 0.0
      %711 = vmatpush.msra.mxu0 0.0
      %712 = vmatpush.msra.mxu0 %v492
      %713 = vmatpush.msra.mxu0 %v476
      %714 = vmatpush.msra.mxu0 %v460
      %715 = vmatpush.msra.mxu0 %v444
      %716 = vmatmul.f32.gmra.mxu0 %v538
      %v717 = vpop.f32.mrf.mxu0
      %v718 = vadd.f32 %v512, %v717
      %719 = vdwg.mxu0
      %720 = vmatpush.msra.mxu0 0.0
      %721 = vmatpush.msra.mxu0 0.0
      %722 = vmatpush.msra.mxu0 0.0
      %723 = vmatpush.msra.mxu0 0.0
      %724 = vmatpush.msra.mxu0 0.0
      %725 = vmatpush.msra.mxu0 0.0
      %726 = vmatpush.msra.mxu0 0.0
      %727 = vmatpush.msra.mxu0 0.0
      %728 = vmatpush.msra.mxu0 0.0
      %729 = vmatpush.msra.mxu0 0.0
      %730 = vmatpush.msra.mxu0 0.0
      %731 = vmatpush.msra.mxu0 0.0
      %732 = vmatpush.msra.mxu0 %v493
      %733 = vmatpush.msra.mxu0 %v477
      %734 = vmatpush.msra.mxu0 %v461
      %735 = vmatpush.msra.mxu0 %v445
      %736 = vmatmul.f32.gmra.mxu0 %v538
      %v737 = vpop.f32.mrf.mxu0
      %v738 = vadd.f32 %v513, %v737
      %739 = vdwg.mxu0
      %740 = vmatpush.msra.mxu0 0.0
      %741 = vmatpush.msra.mxu0 0.0
      %742 = vmatpush.msra.mxu0 0.0
      %743 = vmatpush.msra.mxu0 0.0
      %744 = vmatpush.msra.mxu0 0.0
      %745 = vmatpush.msra.mxu0 0.0
      %746 = vmatpush.msra.mxu0 0.0
      %747 = vmatpush.msra.mxu0 0.0
      %748 = vmatpush.msra.mxu0 0.0
      %749 = vmatpush.msra.mxu0 0.0
      %750 = vmatpush.msra.mxu0 0.0
      %751 = vmatpush.msra.mxu0 0.0
      %752 = vmatpush.msra.mxu0 %v494
      %753 = vmatpush.msra.mxu0 %v478
      %754 = vmatpush.msra.mxu0 %v462
      %755 = vmatpush.msra.mxu0 %v446
      %756 = vmatmul.f32.gmra.mxu0 %v538
      %v757 = vpop.f32.mrf.mxu0
      %v758 = vadd.f32 %v514, %v757
      %759 = vdwg.mxu0
      %760 = vmatpush.msra.mxu0 0.0
      %761 = vmatpush.msra.mxu0 0.0
      %762 = vmatpush.msra.mxu0 0.0
      %763 = vmatpush.msra.mxu0 0.0
      %764 = vmatpush.msra.mxu0 0.0
      %765 = vmatpush.msra.mxu0 0.0
      %766 = vmatpush.msra.mxu0 0.0
      %767 = vmatpush.msra.mxu0 0.0
      %768 = vmatpush.msra.mxu0 0.0
      %769 = vmatpush.msra.mxu0 0.0
      %770 = vmatpush.msra.mxu0 0.0
      %771 = vmatpush.msra.mxu0 0.0
      %772 = vmatpush.msra.mxu0 %v495
      %773 = vmatpush.msra.mxu0 %v479
      %774 = vmatpush.msra.mxu0 %v463
      %775 = vmatpush.msra.mxu0 %v447
      %776 = vmatmul.f32.gmra.mxu0 %v538
      %v777 = vpop.f32.mrf.mxu0
      %v778 = vadd.f32 %v515, %v777
      %779 = vdwg.mxu0
      %780 = vmatpush.msra.mxu0 0.0
      %781 = vmatpush.msra.mxu0 0.0
      %782 = vmatpush.msra.mxu0 0.0
      %783 = vmatpush.msra.mxu0 0.0
      %784 = vmatpush.msra.mxu0 0.0
      %785 = vmatpush.msra.mxu0 0.0
      %786 = vmatpush.msra.mxu0 0.0
      %787 = vmatpush.msra.mxu0 0.0
      %788 = vmatpush.msra.mxu0 0.0
      %789 = vmatpush.msra.mxu0 0.0
      %790 = vmatpush.msra.mxu0 0.0
      %791 = vmatpush.msra.mxu0 0.0
      %792 = vmatpush.msra.mxu0 %v496
      %793 = vmatpush.msra.mxu0 %v480
      %794 = vmatpush.msra.mxu0 %v464
      %795 = vmatpush.msra.mxu0 %v448
      %796 = vmatmul.f32.gmra.mxu0 %v538
      %v797 = vpop.f32.mrf.mxu0
      %v798 = vadd.f32 %v516, %v797
      %799 = vdwg.mxu0
      %800 = vmatpush.msra.mxu0 0.0
      %801 = vmatpush.msra.mxu0 0.0
      %802 = vmatpush.msra.mxu0 0.0
      %803 = vmatpush.msra.mxu0 0.0
      %804 = vmatpush.msra.mxu0 0.0
      %805 = vmatpush.msra.mxu0 0.0
      %806 = vmatpush.msra.mxu0 0.0
      %807 = vmatpush.msra.mxu0 0.0
      %808 = vmatpush.msra.mxu0 0.0
      %809 = vmatpush.msra.mxu0 0.0
      %810 = vmatpush.msra.mxu0 0.0
      %811 = vmatpush.msra.mxu0 0.0
      %812 = vmatpush.msra.mxu0 %v497
      %813 = vmatpush.msra.mxu0 %v481
      %814 = vmatpush.msra.mxu0 %v465
      %815 = vmatpush.msra.mxu0 %v449
      %816 = vmatmul.f32.gmra.mxu0 %v538
      %v817 = vpop.f32.mrf.mxu0
      %v818 = vadd.f32 %v517, %v817
      %819 = vdwg.mxu0
      %820 = vmatpush.msra.mxu0 0.0
      %821 = vmatpush.msra.mxu0 0.0
      %822 = vmatpush.msra.mxu0 0.0
      %823 = vmatpush.msra.mxu0 0.0
      %824 = vmatpush.msra.mxu0 0.0
      %825 = vmatpush.msra.mxu0 0.0
      %826 = vmatpush.msra.mxu0 0.0
      %827 = vmatpush.msra.mxu0 0.0
      %828 = vmatpush.msra.mxu0 0.0
      %829 = vmatpush.msra.mxu0 0.0
      %830 = vmatpush.msra.mxu0 0.0
      %831 = vmatpush.msra.mxu0 0.0
      %832 = vmatpush.msra.mxu0 %v498
      %833 = vmatpush.msra.mxu0 %v482
      %834 = vmatpush.msra.mxu0 %v466
      %835 = vmatpush.msra.mxu0 %v450
      %836 = vmatmul.f32.gmra.mxu0 %v538
      %v837 = vpop.f32.mrf.mxu0
      %v838 = vadd.f32 %v518, %v837
      %839 = vdwg.mxu0
      %840 = vmatpush.msra.mxu0 0.0
      %841 = vmatpush.msra.mxu0 0.0
      %842 = vmatpush.msra.mxu0 0.0
      %843 = vmatpush.msra.mxu0 0.0
      %844 = vmatpush.msra.mxu0 0.0
      %845 = vmatpush.msra.mxu0 0.0
      %846 = vmatpush.msra.mxu0 0.0
      %847 = vmatpush.msra.mxu0 0.0
      %848 = vmatpush.msra.mxu0 0.0
      %849 = vmatpush.msra.mxu0 0.0
      %850 = vmatpush.msra.mxu0 0.0
      %851 = vmatpush.msra.mxu0 0.0
      %852 = vmatpush.msra.mxu0 %v499
      %853 = vmatpush.msra.mxu0 %v483
      %854 = vmatpush.msra.mxu0 %v467
      %855 = vmatpush.msra.mxu0 %v451
      %856 = vmatmul.f32.gmra.mxu0 %v538
      %v857 = vpop.f32.mrf.mxu0
      %v858 = vadd.f32 %v519, %v857
      %859 = vdwg.mxu0
      %v861 = vrot.slane %v578, 7
      %v864 = vrot.slane %v598, 6
      %v867 = vrot.slane %v618, 5
      %v870 = vrot.slane %v638, 4
      %v873 = vrot.slane %v658, 3
      %v876 = vrot.slane %v678, 2
      %v879 = vrot.slane %v698, 1
      %v882 = vrot.slane %v738, 7
      %v885 = vrot.slane %v758, 6
      %v888 = vrot.slane %v778, 5
      %v891 = vrot.slane %v798, 4
      %v894 = vrot.slane %v818, 3
      %v897 = vrot.slane %v838, 2
      %v900 = vrot.slane %v858, 1
      %vm902 = vcmask 1040384
      %v903 = vsel %vm902, %v558, %v861
      %vm904 = vcmask 1041408
      %v905 = vsel %vm904, %v903, %v864
      %vm906 = vcmask 1042432
      %v907 = vsel %vm906, %v905, %v867
      %vm908 = vcmask 1043456
      %v909 = vsel %vm908, %v907, %v870
      %vm910 = vcmask 1044480
      %v911 = vsel %vm910, %v909, %v873
      %vm912 = vcmask 1045504
      %v913 = vsel %vm912, %v911, %v876
      %vm914 = vcmask 1046528
      %v915 = vsel %vm914, %v913, %v879
      %v916 = vsel %vm902, %v718, %v882
      %v917 = vsel %vm904, %v916, %v885
      %v918 = vsel %vm906, %v917, %v888
      %v919 = vsel %vm908, %v918, %v891
      %v920 = vsel %vm910, %v919, %v894
      %v921 = vsel %vm912, %v920, %v897
      %v922 = vsel %vm914, %v921, %v900
      %v925 = vrot.slane %v915, 4
      %v926 = vrot.slane %v922, 4
      %v929 = vmul.f32 %v915, 0.25
      %v930 = vmul.f32 %v925, 0.25
      %v931 = vmul.f32 %v922, 0.25
      %v932 = vmul.f32 %v915, 0.75
      %v933 = vmul.f32 %v925, 0.75
      %v934 = vmul.f32 %v922, 0.75
      %v935 = vmul.f32 %v926, 0.75
      %v936 = vadd.f32 %v929, %v932
      %v937 = vadd.f32 %v929, %v933
      %v938 = vadd.f32 %v930, %v934
      %v939 = vadd.f32 %v931, %v935
      %v940 = vmul.f32 %v926, 0.25
      %v941 = vadd.f32 %v932, %v930
      %v942 = vadd.f32 %v933, %v931
      %v943 = vadd.f32 %v934, %v940
      %v944 = vadd.f32 %v935, %v940
      %953 = vst [vmem:[#allocation1] ss:$2 sm:$0xff] %v936
      %v954 = vld.sshfl [vmem:[#allocation1] sm:$0xff pattern:$0x75316420]
      %s955 = scalar_lea.vmem [#allocation1], 16
      %956 = vst [vmem:[%s955] ss:$2 sm:$0xff] %v941
      %v957 = vld.sshfl [vmem:[#allocation1 + $0x10] sm:$0xff pattern:$0x75316420]
      %s958 = scalar_lea.vmem [#allocation1], 32
      %959 = vst [vmem:[%s958] ss:$2 sm:$0xff] %v937
      %v960 = vld.sshfl [vmem:[#allocation1 + $0x20] sm:$0xff pattern:$0x75316420]
      %s961 = scalar_lea.vmem [#allocation1], 48
      %962 = vst [vmem:[%s961] ss:$2 sm:$0xff] %v942
      %v963 = vld.sshfl [vmem:[#allocation1 + $0x30] sm:$0xff pattern:$0x75316420]
      %964 = vst [vmem:[#allocation1] ss:$2 sm:$0xff] %v938
      %v965 = vld.sshfl [vmem:[#allocation1] sm:$0xff pattern:$0x75316420]
      %966 = vst [vmem:[%s955] ss:$2 sm:$0xff] %v943
      %v967 = vld.sshfl [vmem:[#allocation1 + $0x10] sm:$0xff pattern:$0x75316420]
      %968 = vst [vmem:[%s958] ss:$2 sm:$0xff] %v939
      %v969 = vld.sshfl [vmem:[#allocation1 + $0x20] sm:$0xff pattern:$0x75316420]
      %970 = vst [vmem:[%s961] ss:$2 sm:$0xff] %v944
      %v971 = vld.sshfl [vmem:[#allocation1 + $0x30] sm:$0xff pattern:$0x75316420]
      %v972 = vrot.slane %v954, 7
      %v973 = vrot.slane %v957, 7
      %v974 = vrot.slane %v960, 7
      %v975 = vrot.slane %v963, 7
      %v976 = vrot.slane %v965, 7
      %v977 = vrot.slane %v967, 7
      %v978 = vrot.slane %v969, 7
      %v979 = vrot.slane %v971, 7
      %v988 = vsel %vm902, %v936, %v972
      %v989 = vsel %vm902, %v941, %v973
      %v990 = vsel %vm902, %v937, %v974
      %v991 = vsel %vm902, %v942, %v975
      %v992 = vsel %vm902, %v938, %v976
      %v993 = vsel %vm902, %v943, %v977
      %v994 = vsel %vm902, %v939, %v978
      %v995 = vsel %vm902, %v944, %v979
      %996 = vst [vmem:[#allocation1] ss:$2 sm:$0xff] %v936
      %v997 = vld.sshfl [vmem:[#allocation1] sm:$0xff pattern:$0x75316420]
      %s998 = scalar_lea.vmem [#allocation1], 16
      %999 = vst [vmem:[%s998] ss:$2 sm:$0xff] %v941
      %v1000 = vld.sshfl [vmem:[#allocation1 + $0x10] sm:$0xff pattern:$0x75316420]
      %s1001 = scalar_lea.vmem [#allocation1], 32
      %1002 = vst [vmem:[%s1001] ss:$2 sm:$0xff] %v937
      %v1003 = vld.sshfl [vmem:[#allocation1 + $0x20] sm:$0xff pattern:$0x75316420]
      %s1004 = scalar_lea.vmem [#allocation1], 48
      %1005 = vst [vmem:[%s1004] ss:$2 sm:$0xff] %v942
      %v1006 = vld.sshfl [vmem:[#allocation1 + $0x30] sm:$0xff pattern:$0x75316420]
      %1007 = vst [vmem:[#allocation1] ss:$2 sm:$0xff] %v938
      %v1008 = vld.sshfl [vmem:[#allocation1] sm:$0xff pattern:$0x75316420]
      %1009 = vst [vmem:[%s998] ss:$2 sm:$0xff] %v943
      %v1010 = vld.sshfl [vmem:[#allocation1 + $0x10] sm:$0xff pattern:$0x75316420]
      %1011 = vst [vmem:[%s1001] ss:$2 sm:$0xff] %v939
      %v1012 = vld.sshfl [vmem:[#allocation1 + $0x20] sm:$0xff pattern:$0x75316420]
      %1013 = vst [vmem:[%s1004] ss:$2 sm:$0xff] %v944
      %v1014 = vld.sshfl [vmem:[#allocation1 + $0x30] sm:$0xff pattern:$0x75316420]
      %v1015 = vrot.slane %v997, 1
      %v1016 = vrot.slane %v1000, 1
      %v1017 = vrot.slane %v1003, 1
      %v1018 = vrot.slane %v1006, 1
      %v1019 = vrot.slane %v1008, 1
      %v1020 = vrot.slane %v1010, 1
      %v1021 = vrot.slane %v1012, 1
      %v1022 = vrot.slane %v1014, 1
      %v1031 = vsel %vm906, %v1015, %v936
      %v1032 = vsel %vm906, %v1016, %v941
      %v1033 = vsel %vm906, %v1017, %v937
      %v1034 = vsel %vm906, %v1018, %v942
      %v1035 = vsel %vm906, %v1019, %v938
      %v1036 = vsel %vm906, %v1020, %v943
      %v1037 = vsel %vm906, %v1021, %v939
      %v1038 = vsel %vm906, %v1022, %v944
      %v1039 = vmul.f32 %v988, 0.25
      %v1040 = vmul.f32 %v989, 0.25
      %v1041 = vmul.f32 %v990, 0.25
      %v1042 = vmul.f32 %v991, 0.25
      %v1043 = vmul.f32 %v992, 0.25
      %v1044 = vmul.f32 %v993, 0.25
      %v1045 = vmul.f32 %v994, 0.25
      %v1046 = vmul.f32 %v995, 0.25
      %v1047 = vmul.f32 %v936, 0.75
      %v1048 = vmul.f32 %v941, 0.75
      %v1049 = vmul.f32 %v937, 0.75
      %v1050 = vmul.f32 %v942, 0.75
      %v1051 = vmul.f32 %v938, 0.75
      %v1052 = vmul.f32 %v943, 0.75
      %v1053 = vmul.f32 %v939, 0.75
      %v1054 = vmul.f32 %v944, 0.75
      %v1055 = vadd.f32 %v1039, %v1047
      %v1056 = vadd.f32 %v1040, %v1048
      %v1057 = vadd.f32 %v1041, %v1049
      %v1058 = vadd.f32 %v1042, %v1050
      %v1059 = vadd.f32 %v1043, %v1051
      %v1060 = vadd.f32 %v1044, %v1052
      %v1061 = vadd.f32 %v1045, %v1053
      %v1062 = vadd.f32 %v1046, %v1054
      %v1063 = vmul.f32 %v1031, 0.25
      %v1064 = vmul.f32 %v1032, 0.25
      %v1065 = vmul.f32 %v1033, 0.25
      %v1066 = vmul.f32 %v1034, 0.25
      %v1067 = vmul.f32 %v1035, 0.25
      %v1068 = vmul.f32 %v1036, 0.25
      %v1069 = vmul.f32 %v1037, 0.25
      %v1070 = vmul.f32 %v1038, 0.25
      %v1071 = vadd.f32 %v1047, %v1063
      %v1072 = vadd.f32 %v1048, %v1064
      %v1073 = vadd.f32 %v1049, %v1065
      %v1074 = vadd.f32 %v1050, %v1066
      %v1075 = vadd.f32 %v1051, %v1067
      %v1076 = vadd.f32 %v1052, %v1068
      %v1077 = vadd.f32 %v1053, %v1069
      %v1078 = vadd.f32 %v1054, %v1070
      %v1087 = vrot.slane %v1055, 1
      %v1088 = vrot.slane %v1055, 2
      %v1089 = vrot.slane %v1055, 3
      %v1090 = vrot.slane %v1056, 1
      %v1091 = vrot.slane %v1056, 2
      %v1092 = vrot.slane %v1056, 3
      %v1093 = vrot.slane %v1057, 1
      %v1094 = vrot.slane %v1057, 2
      %v1095 = vrot.slane %v1057, 3
      %v1096 = vrot.slane %v1058, 1
      %v1097 = vrot.slane %v1058, 2
      %v1098 = vrot.slane %v1058, 3
      %v1099 = vrot.slane %v1059, 1
      %v1100 = vrot.slane %v1059, 2
      %v1101 = vrot.slane %v1059, 3
      %v1102 = vrot.slane %v1060, 1
      %v1103 = vrot.slane %v1060, 2
      %v1104 = vrot.slane %v1060, 3
      %v1105 = vrot.slane %v1061, 1
      %v1106 = vrot.slane %v1061, 2
      %v1107 = vrot.slane %v1061, 3
      %v1108 = vrot.slane %v1062, 1
      %v1109 = vrot.slane %v1062, 2
      %v1110 = vrot.slane %v1062, 3
      %v1143 = vrot.slane %v1071, 3
      %v1144 = vrot.slane %v1072, 3
      %v1145 = vrot.slane %v1073, 3
      %v1146 = vrot.slane %v1074, 3
      %v1147 = vrot.slane %v1075, 3
      %v1148 = vrot.slane %v1076, 3
      %v1149 = vrot.slane %v1077, 3
      %v1150 = vrot.slane %v1078, 3
      %v1151 = vsel %vm902, %v1071, %v1143
      %vm1152 = vcmask 1041409
      %v1153 = vsel %vm1152, %v1071, %v1143
      %v1154 = vrot.slane %v1153, 1
      %vm1155 = vcmask 1042434
      %v1156 = vsel %vm1155, %v1071, %v1143
      %v1157 = vrot.slane %v1156, 2
      %vm1158 = vcmask 1043459
      %v1159 = vsel %vm1158, %v1071, %v1143
      %v1160 = vrot.slane %v1159, 3
      %v1161 = vsel %vm902, %v1072, %v1144
      %v1162 = vsel %vm1152, %v1072, %v1144
      %v1163 = vrot.slane %v1162, 1
      %v1164 = vsel %vm1155, %v1072, %v1144
      %v1165 = vrot.slane %v1164, 2
      %v1166 = vsel %vm1158, %v1072, %v1144
      %v1167 = vrot.slane %v1166, 3
      %v1168 = vsel %vm902, %v1073, %v1145
      %v1169 = vsel %vm1152, %v1073, %v1145
      %v1170 = vrot.slane %v1169, 1
      %v1171 = vsel %vm1155, %v1073, %v1145
      %v1172 = vrot.slane %v1171, 2
      %v1173 = vsel %vm1158, %v1073, %v1145
      %v1174 = vrot.slane %v1173, 3
      %v1175 = vsel %vm902, %v1074, %v1146
      %v1176 = vsel %vm1152, %v1074, %v1146
      %v1177 = vrot.slane %v1176, 1
      %v1178 = vsel %vm1155, %v1074, %v1146
      %v1179 = vrot.slane %v1178, 2
      %v1180 = vsel %vm1158, %v1074, %v1146
      %v1181 = vrot.slane %v1180, 3
      %v1182 = vsel %vm902, %v1075, %v1147
      %v1183 = vsel %vm1152, %v1075, %v1147
      %v1184 = vrot.slane %v1183, 1
      %v1185 = vsel %vm1155, %v1075, %v1147
      %v1186 = vrot.slane %v1185, 2
      %v1187 = vsel %vm1158, %v1075, %v1147
      %v1188 = vrot.slane %v1187, 3
      %v1189 = vsel %vm902, %v1076, %v1148
      %v1190 = vsel %vm1152, %v1076, %v1148
      %v1191 = vrot.slane %v1190, 1
      %v1192 = vsel %vm1155, %v1076, %v1148
      %v1193 = vrot.slane %v1192, 2
      %v1194 = vsel %vm1158, %v1076, %v1148
      %v1195 = vrot.slane %v1194, 3
      %v1196 = vsel %vm902, %v1077, %v1149
      %v1197 = vsel %vm1152, %v1077, %v1149
      %v1198 = vrot.slane %v1197, 1
      %v1199 = vsel %vm1155, %v1077, %v1149
      %v1200 = vrot.slane %v1199, 2
      %v1201 = vsel %vm1158, %v1077, %v1149
      %v1202 = vrot.slane %v1201, 3
      %v1203 = vsel %vm902, %v1078, %v1150
      %v1204 = vsel %vm1152, %v1078, %v1150
      %v1205 = vrot.slane %v1204, 1
      %v1206 = vsel %vm1155, %v1078, %v1150
      %v1207 = vrot.slane %v1206, 2
      %v1208 = vsel %vm1158, %v1078, %v1150
      %v1209 = vrot.slane %v1208, 3
      %v1210 = vperm.slane %v1151, 0
      %v1211 = vperm.slane %v1154, 0
      %v1212 = vperm.slane %v1157, 0
      %v1213 = vperm.slane %v1160, 0
      %v1214 = vperm.slane %v1161, 0
      %v1215 = vperm.slane %v1163, 0
      %v1216 = vperm.slane %v1165, 0
      %v1217 = vperm.slane %v1167, 0
      %v1218 = vperm.slane %v1168, 0
      %v1219 = vperm.slane %v1170, 0
      %v1220 = vperm.slane %v1172, 0
      %v1221 = vperm.slane %v1174, 0
      %v1222 = vperm.slane %v1175, 0
      %v1223 = vperm.slane %v1177, 0
      %v1224 = vperm.slane %v1179, 0
      %v1225 = vperm.slane %v1181, 0
      %v1226 = vperm.slane %v1182, 0
      %v1227 = vperm.slane %v1184, 0
      %v1228 = vperm.slane %v1186, 0
      %v1229 = vperm.slane %v1188, 0
      %v1230 = vperm.slane %v1189, 0
      %v1231 = vperm.slane %v1191, 0
      %v1232 = vperm.slane %v1193, 0
      %v1233 = vperm.slane %v1195, 0
      %v1234 = vperm.slane %v1196, 0
      %v1235 = vperm.slane %v1198, 0
      %v1236 = vperm.slane %v1200, 0
      %v1237 = vperm.slane %v1202, 0
      %v1238 = vperm.slane %v1203, 0
      %v1239 = vperm.slane %v1205, 0
      %v1240 = vperm.slane %v1207, 0
      %v1241 = vperm.slane %v1209, 0
      %v1274 = vsel %vm902, %v1055, %v1210
      %v1275 = vsel %vm902, %v1087, %v1211
      %v1276 = vsel %vm902, %v1088, %v1212
      %v1277 = vsel %vm902, %v1089, %v1213
      %v1278 = vsel %vm902, %v1056, %v1214
      %v1279 = vsel %vm902, %v1090, %v1215
      %v1280 = vsel %vm902, %v1091, %v1216
      %v1281 = vsel %vm902, %v1092, %v1217
      %v1282 = vsel %vm902, %v1057, %v1218
      %v1283 = vsel %vm902, %v1093, %v1219
      %v1284 = vsel %vm902, %v1094, %v1220
      %v1285 = vsel %vm902, %v1095, %v1221
      %v1286 = vsel %vm902, %v1058, %v1222
      %v1287 = vsel %vm902, %v1096, %v1223
      %v1288 = vsel %vm902, %v1097, %v1224
      %v1289 = vsel %vm902, %v1098, %v1225
      %v1290 = vsel %vm902, %v1059, %v1226
      %v1291 = vsel %vm902, %v1099, %v1227
      %v1292 = vsel %vm902, %v1100, %v1228
      %v1293 = vsel %vm902, %v1101, %v1229
      %v1294 = vsel %vm902, %v1060, %v1230
      %v1295 = vsel %vm902, %v1102, %v1231
      %v1296 = vsel %vm902, %v1103, %v1232
      %v1297 = vsel %vm902, %v1104, %v1233
      %v1298 = vsel %vm902, %v1061, %v1234
      %v1299 = vsel %vm902, %v1105, %v1235
      %v1300 = vsel %vm902, %v1106, %v1236
      %v1301 = vsel %vm902, %v1107, %v1237
      %v1302 = vsel %vm902, %v1062, %v1238
      %v1303 = vsel %vm902, %v1108, %v1239
      %v1304 = vsel %vm902, %v1109, %v1240
      %v1305 = vsel %vm902, %v1110, %v1241
      %v1314 = vperm.slane %v1278, 1
      %v1315 = vperm.slane %v1274, 1
      %v1316 = vperm.slane %v1282, 1
      %v1317 = vperm.slane %v1286, 1
      %v1318 = vperm.slane %v1290, 1
      %v1319 = vperm.slane %v1294, 1
      %v1320 = vperm.slane %v1298, 1
      %v1321 = vperm.slane %v1302, 1
      %1354 = vst [vmem:[#allocation1] ss:$4 sm:$0xff] %v1278
      %s1355 = scalar_lea.vmem [#allocation1], 1
      %1356 = vst [vmem:[%s1355] ss:$4 sm:$0xff] %v1279
      %s1357 = scalar_lea.vmem [#allocation1], 2
      %1358 = vst [vmem:[%s1357] ss:$4 sm:$0xff] %v1280
      %s1359 = scalar_lea.vmem [#allocation1], 3
      %1360 = vst [vmem:[%s1359] ss:$4 sm:$0xff] %v1281
      %v1361 = vld.sshfl [vmem:[#allocation1] sm:$0xff pattern:$0x73625140]
      %s1362 = scalar_lea.vmem [#allocation1], 32
      %1363 = vst [vmem:[%s1362] ss:$4 sm:$0xff] %v1274
      %s1364 = scalar_lea.vmem [#allocation1], 33
      %1365 = vst [vmem:[%s1364] ss:$4 sm:$0xff] %v1275
      %s1366 = scalar_lea.vmem [#allocation1], 34
      %1367 = vst [vmem:[%s1366] ss:$4 sm:$0xff] %v1276
      %s1368 = scalar_lea.vmem [#allocation1], 35
      %1369 = vst [vmem:[%s1368] ss:$4 sm:$0xff] %v1277
      %v1370 = vld.sshfl [vmem:[#allocation1 + $0x20] sm:$0xff pattern:$0x73625140]
      %1371 = vst [vmem:[#allocation1] ss:$4 sm:$0xff] %v1278
      %1372 = vst [vmem:[%s1355] ss:$4 sm:$0xff] %v1279
      %1373 = vst [vmem:[%s1357] ss:$4 sm:$0xff] %v1280
      %1374 = vst [vmem:[%s1359] ss:$4 sm:$0xff] %v1281
      %v1375 = vld.sshfl [vmem:[#allocation1] sm:$0xff pattern:$0x73625140]
      %1376 = vst [vmem:[%s1362] ss:$4 sm:$0xff] %v1282
      %1377 = vst [vmem:[%s1364] ss:$4 sm:$0xff] %v1283
      %1378 = vst [vmem:[%s1366] ss:$4 sm:$0xff] %v1284
      %1379 = vst [vmem:[%s1368] ss:$4 sm:$0xff] %v1285
      %v1380 = vld.sshfl [vmem:[#allocation1 + $0x20] sm:$0xff pattern:$0x73625140]
      %1381 = vst [vmem:[#allocation1] ss:$4 sm:$0xff] %v1286
      %1382 = vst [vmem:[%s1355] ss:$4 sm:$0xff] %v1287
      %1383 = vst [vmem:[%s1357] ss:$4 sm:$0xff] %v1288
      %1384 = vst [vmem:[%s1359] ss:$4 sm:$0xff] %v1289
      %v1385 = vld.sshfl [vmem:[#allocation1] sm:$0xff pattern:$0x73625140]
      %1386 = vst [vmem:[%s1362] ss:$4 sm:$0xff] %v1290
      %1387 = vst [vmem:[%s1364] ss:$4 sm:$0xff] %v1291
      %1388 = vst [vmem:[%s1366] ss:$4 sm:$0xff] %v1292
      %1389 = vst [vmem:[%s1368] ss:$4 sm:$0xff] %v1293
      %v1390 = vld.sshfl [vmem:[#allocation1 + $0x20] sm:$0xff pattern:$0x73625140]
      %1391 = vst [vmem:[#allocation1] ss:$4 sm:$0xff] %v1294
      %1392 = vst [vmem:[%s1355] ss:$4 sm:$0xff] %v1295
      %1393 = vst [vmem:[%s1357] ss:$4 sm:$0xff] %v1296
      %1394 = vst [vmem:[%s1359] ss:$4 sm:$0xff] %v1297
      %v1395 = vld.sshfl [vmem:[#allocation1] sm:$0xff pattern:$0x73625140]
      %1396 = vst [vmem:[%s1362] ss:$4 sm:$0xff] %v1298
      %1397 = vst [vmem:[%s1364] ss:$4 sm:$0xff] %v1299
      %1398 = vst [vmem:[%s1366] ss:$4 sm:$0xff] %v1300
      %1399 = vst [vmem:[%s1368] ss:$4 sm:$0xff] %v1301
      %v1400 = vld.sshfl [vmem:[#allocation1 + $0x20] sm:$0xff pattern:$0x73625140]
      %1401 = vst [vmem:[#allocation1] ss:$4 sm:$0xff] %v1302
      %1402 = vst [vmem:[%s1355] ss:$4 sm:$0xff] %v1303
      %1403 = vst [vmem:[%s1357] ss:$4 sm:$0xff] %v1304
      %1404 = vst [vmem:[%s1359] ss:$4 sm:$0xff] %v1305
      %v1405 = vld.sshfl [vmem:[#allocation1] sm:$0xff pattern:$0x73625140]
      %1406 = vst [vmem:[%s1362] ss:$4 sm:$0xff] %v1298
      %1407 = vst [vmem:[%s1364] ss:$4 sm:$0xff] %v1299
      %1408 = vst [vmem:[%s1366] ss:$4 sm:$0xff] %v1300
      %1409 = vst [vmem:[%s1368] ss:$4 sm:$0xff] %v1301
      %v1410 = vld.sshfl [vmem:[#allocation1 + $0x20] sm:$0xff pattern:$0x73625140]
      %v1411 = vrot.slane %v1361, 7
      %v1412 = vrot.slane %v1370, 7
      %v1413 = vrot.slane %v1375, 7
      %v1414 = vrot.slane %v1380, 7
      %v1415 = vrot.slane %v1385, 7
      %v1416 = vrot.slane %v1390, 7
      %v1417 = vrot.slane %v1395, 7
      %v1418 = vrot.slane %v1400, 7
      %v1419 = vrot.slane %v1405, 7
      %v1420 = vrot.slane %v1410, 7
      %v1431 = vperm.slane %v1281, 0
      %v1432 = vperm.slane %v1277, 0
      %v1433 = vperm.slane %v1285, 0
      %v1434 = vperm.slane %v1289, 0
      %v1435 = vperm.slane %v1293, 0
      %v1436 = vperm.slane %v1297, 0
      %v1437 = vperm.slane %v1301, 0
      %v1438 = vperm.slane %v1305, 0
      %v1447 = vsel %vm902, %v1314, %v1411
      %v1448 = vsel %vm902, %v1315, %v1412
      %v1449 = vsel %vm902, %v1314, %v1413
      %v1450 = vsel %vm902, %v1316, %v1414
      %v1451 = vsel %vm902, %v1317, %v1415
      %v1452 = vsel %vm902, %v1318, %v1416
      %v1453 = vsel %vm902, %v1319, %v1417
      %v1454 = vsel %vm902, %v1320, %v1418
      %v1455 = vsel %vm902, %v1321, %v1419
      %v1456 = vsel %vm902, %v1320, %v1420
      %v1457 = vsel %vm902, %v1411, %v1431
      %v1458 = vsel %vm902, %v1412, %v1432
      %v1459 = vsel %vm902, %v1413, %v1431
      %v1460 = vsel %vm902, %v1414, %v1433
      %v1461 = vsel %vm902, %v1415, %v1434
      %v1462 = vsel %vm902, %v1416, %v1435
      %v1463 = vsel %vm902, %v1417, %v1436
      %v1464 = vsel %vm902, %v1418, %v1437
      %v1465 = vsel %vm902, %v1419, %v1438
      %v1466 = vsel %vm902, %v1420, %v1437
      %v1483 = vrot.slane %v1447, 1
      %v1484 = vrot.slane %v1457, 1
      %v1485 = vsel %vm914, %v1483, %v1484
      %v1486 = vrot.slane %v1448, 1
      %v1487 = vrot.slane %v1458, 1
      %v1488 = vsel %vm914, %v1486, %v1487
      %v1489 = vrot.slane %v1449, 1
      %v1490 = vrot.slane %v1459, 1
      %v1491 = vsel %vm914, %v1489, %v1490
      %v1492 = vrot.slane %v1450, 1
      %v1493 = vrot.slane %v1460, 1
      %v1494 = vsel %vm914, %v1492, %v1493
      %v1495 = vrot.slane %v1451, 1
      %v1496 = vrot.slane %v1461, 1
      %v1497 = vsel %vm914, %v1495, %v1496
      %v1498 = vrot.slane %v1452, 1
      %v1499 = vrot.slane %v1462, 1
      %v1500 = vsel %vm914, %v1498, %v1499
      %v1501 = vrot.slane %v1453, 1
      %v1502 = vrot.slane %v1463, 1
      %v1503 = vsel %vm914, %v1501, %v1502
      %v1504 = vrot.slane %v1454, 1
      %v1505 = vrot.slane %v1464, 1
      %v1506 = vsel %vm914, %v1504, %v1505
      %v1515 = vrot.slane %v1447, 2
      %v1516 = vrot.slane %v1457, 2
      %v1517 = vsel %vm912, %v1515, %v1516
      %v1518 = vrot.slane %v1448, 2
      %v1519 = vrot.slane %v1458, 2
      %v1520 = vsel %vm912, %v1518, %v1519
      %v1521 = vrot.slane %v1449, 2
      %v1522 = vrot.slane %v1459, 2
      %v1523 = vsel %vm912, %v1521, %v1522
      %v1524 = vrot.slane %v1450, 2
      %v1525 = vrot.slane %v1460, 2
      %v1526 = vsel %vm912, %v1524, %v1525
      %v1527 = vrot.slane %v1451, 2
      %v1528 = vrot.slane %v1461, 2
      %v1529 = vsel %vm912, %v1527, %v1528
      %v1530 = vrot.slane %v1452, 2
      %v1531 = vrot.slane %v1462, 2
      %v1532 = vsel %vm912, %v1530, %v1531
      %v1533 = vrot.slane %v1453, 2
      %v1534 = vrot.slane %v1463, 2
      %v1535 = vsel %vm912, %v1533, %v1534
      %v1536 = vrot.slane %v1454, 2
      %v1537 = vrot.slane %v1464, 2
      %v1538 = vsel %vm912, %v1536, %v1537
      %v1547 = vld [vmem:[%s3] sm:$0xff]
      %v1548 = vld [vmem:[%s3 + $0x8] sm:$0xff]
      %v1549 = vld [vmem:[%s3 + $0x10] sm:$0xff]
      %v1550 = vld [vmem:[%s3 + $0x18] sm:$0xff]
      %v1551 = vld [vmem:[%s3 + $0x20] sm:$0xff]
      %v1552 = vld [vmem:[%s3 + $0x28] sm:$0xff]
      %v1553 = vld [vmem:[%s3 + $0x30] sm:$0xff]
      %v1554 = vld [vmem:[%s3 + $0x38] sm:$0xff]
      %v1555 = vld [vmem:[%s3 + $0x40] sm:$0xff]
      %v1556 = vld [vmem:[%s3 + $0x48] sm:$0xff]
      %v1557 = vld [vmem:[%s3 + $0x50] sm:$0xff]
      %v1558 = vld [vmem:[%s3 + $0x58] sm:$0xff]
      %v1559 = vld [vmem:[%s3 + $0x60] sm:$0xff]
      %v1560 = vld [vmem:[%s3 + $0x68] sm:$0xff]
      %v1561 = vld [vmem:[%s3 + $0x70] sm:$0xff]
      %v1562 = vld [vmem:[%s3 + $0x78] sm:$0xff]
      %v1563 = vld [vmem:[%s3 + $0x80] sm:$0xff]
      %v1564 = vld [vmem:[%s3 + $0x88] sm:$0xff]
      %v1565 = vld [vmem:[%s3 + $0x90] sm:$0xff]
      %v1566 = vld [vmem:[%s3 + $0x98] sm:$0xff]
      %v1567 = vld [vmem:[%s3 + $0xa0] sm:$0xff]
      %v1568 = vld [vmem:[%s3 + $0xa8] sm:$0xff]
      %v1569 = vld [vmem:[%s3 + $0xb0] sm:$0xff]
      %v1570 = vld [vmem:[%s3 + $0xb8] sm:$0xff]
      %v1571 = vld [vmem:[%s3 + $0xc0] sm:$0xff]
      %v1572 = vld [vmem:[%s3 + $0xc8] sm:$0xff]
      %v1573 = vld [vmem:[%s3 + $0xd0] sm:$0xff]
      %v1574 = vld [vmem:[%s3 + $0xd8] sm:$0xff]
      %v1575 = vld [vmem:[%s3 + $0xe0] sm:$0xff]
      %v1576 = vld [vmem:[%s3 + $0xe8] sm:$0xff]
      %v1577 = vld [vmem:[%s3 + $0xf0] sm:$0xff]
      %v1578 = vld [vmem:[%s3 + $0xf8] sm:$0xff]
      %v1579 = vld [vmem:[%s3 + $0x100] sm:$0xff]
      %v1580 = vld [vmem:[%s3 + $0x108] sm:$0xff]
      %v1581 = vld [vmem:[%s3 + $0x110] sm:$0xff]
      %v1582 = vld [vmem:[%s3 + $0x118] sm:$0xff]
      %v1583 = vld [vmem:[%s3 + $0x120] sm:$0xff]
      %v1584 = vld [vmem:[%s3 + $0x128] sm:$0xff]
      %v1585 = vld [vmem:[%s3 + $0x130] sm:$0xff]
      %v1586 = vld [vmem:[%s3 + $0x138] sm:$0xff]
      %v1587 = vld [vmem:[%s3 + $0x140] sm:$0xff]
      %v1588 = vld [vmem:[%s3 + $0x148] sm:$0xff]
      %v1589 = vld [vmem:[%s3 + $0x150] sm:$0xff]
      %v1590 = vld [vmem:[%s3 + $0x158] sm:$0xff]
      %v1591 = vld [vmem:[%s3 + $0x160] sm:$0xff]
      %v1592 = vld [vmem:[%s3 + $0x168] sm:$0xff]
      %v1593 = vld [vmem:[%s3 + $0x170] sm:$0xff]
      %v1594 = vld [vmem:[%s3 + $0x178] sm:$0xff]
      %v1597 = vrot.slane %v1455, 1
      %v1598 = vrot.slane %v1465, 1
      %v1599 = vsel %vm914, %v1597, %v1598
      %v1601 = vrot.slane %v1455, 2
      %v1602 = vrot.slane %v1465, 2
      %v1603 = vsel %vm912, %v1601, %v1602
      %s1605 = scalar_lea.vmem %s3, 384
      %v1606 = vld [vmem:[%s1605] sm:$0xff]
      %v1607 = vld [vmem:[%s1605 + $0x8] sm:$0xff]
      %v1608 = vld [vmem:[%s1605 + $0x10] sm:$0xff]
      %v1609 = vld [vmem:[%s1605 + $0x18] sm:$0xff]
      %v1610 = vld [vmem:[%s1605 + $0x20] sm:$0xff]
      %v1611 = vld [vmem:[%s1605 + $0x28] sm:$0xff]
      %v1612 = vld [vmem:[%s1605 + $0x30] sm:$0xff]
      %v1613 = vld [vmem:[%s1605 + $0x38] sm:$0xff]
      %v1614 = vld [vmem:[%s1605 + $0x40] sm:$0xff]
      %v1615 = vld [vmem:[%s1605 + $0x48] sm:$0xff]
      %v1616 = vld [vmem:[%s1605 + $0x50] sm:$0xff]
      %v1617 = vld [vmem:[%s1605 + $0x58] sm:$0xff]
      %v1618 = vld [vmem:[%s1605 + $0x60] sm:$0xff]
      %v1619 = vld [vmem:[%s1605 + $0x68] sm:$0xff]
      %v1620 = vld [vmem:[%s1605 + $0x70] sm:$0xff]
      %v1621 = vld [vmem:[%s1605 + $0x78] sm:$0xff]
      %v1622 = vld [vmem:[%s1605 + $0x80] sm:$0xff]
      %v1623 = vld [vmem:[%s1605 + $0x88] sm:$0xff]
      %v1624 = vld [vmem:[%s1605 + $0x90] sm:$0xff]
      %v1625 = vld [vmem:[%s1605 + $0x98] sm:$0xff]
      %v1626 = vld [vmem:[%s1605 + $0xa0] sm:$0xff]
      %v1627 = vld [vmem:[%s1605 + $0xa8] sm:$0xff]
      %v1628 = vld [vmem:[%s1605 + $0xb0] sm:$0xff]
      %v1629 = vld [vmem:[%s1605 + $0xb8] sm:$0xff]
      %v1630 = vld [vmem:[%s1605 + $0xc0] sm:$0xff]
      %v1631 = vld [vmem:[%s1605 + $0xc8] sm:$0xff]
      %v1632 = vld [vmem:[%s1605 + $0xd0] sm:$0xff]
      %v1633 = vld [vmem:[%s1605 + $0xd8] sm:$0xff]
      %v1634 = vld [vmem:[%s1605 + $0xe0] sm:$0xff]
      %v1635 = vld [vmem:[%s1605 + $0xe8] sm:$0xff]
      %v1636 = vld [vmem:[%s1605 + $0xf0] sm:$0xff]
      %v1637 = vld [vmem:[%s1605 + $0xf8] sm:$0xff]
      %v1638 = vld [vmem:[%s1605 + $0x100] sm:$0xff]
      %v1639 = vld [vmem:[%s1605 + $0x108] sm:$0xff]
      %v1640 = vld [vmem:[%s1605 + $0x110] sm:$0xff]
      %v1641 = vld [vmem:[%s1605 + $0x118] sm:$0xff]
      %v1642 = vld [vmem:[%s1605 + $0x120] sm:$0xff]
      %v1643 = vld [vmem:[%s1605 + $0x128] sm:$0xff]
      %v1644 = vld [vmem:[%s1605 + $0x130] sm:$0xff]
      %v1645 = vld [vmem:[%s1605 + $0x138] sm:$0xff]
      %v1646 = vld [vmem:[%s1605 + $0x140] sm:$0xff]
      %v1647 = vld [vmem:[%s1605 + $0x148] sm:$0xff]
      %v1648 = vld [vmem:[%s1605 + $0x150] sm:$0xff]
      %v1649 = vld [vmem:[%s1605 + $0x158] sm:$0xff]
      %v1650 = vld [vmem:[%s1605 + $0x160] sm:$0xff]
      %v1651 = vld [vmem:[%s1605 + $0x168] sm:$0xff]
      %v1652 = vld [vmem:[%s1605 + $0x170] sm:$0xff]
      %v1653 = vld [vmem:[%s1605 + $0x178] sm:$0xff]
      %1654 = vmatpush.msra.mxu0 %v1621
      %1655 = vmatpush.msra.mxu0 %v1620
      %1656 = vmatpush.msra.mxu0 %v1619
      %1657 = vmatpush.msra.mxu0 %v1618
      %1658 = vmatpush.msra.mxu0 %v1617
      %1659 = vmatpush.msra.mxu0 %v1616
      %1660 = vmatpush.msra.mxu0 %v1615
      %1661 = vmatpush.msra.mxu0 %v1614
      %1662 = vmatpush.msra.mxu0 %v1613
      %1663 = vmatpush.msra.mxu0 %v1612
      %1664 = vmatpush.msra.mxu0 %v1611
      %1665 = vmatpush.msra.mxu0 %v1610
      %1666 = vmatpush.msra.mxu0 %v1609
      %1667 = vmatpush.msra.mxu0 %v1608
      %1668 = vmatpush.msra.mxu0 %v1607
      %1669 = vmatpush.msra.mxu0 %v1606
      %1670 = vmatmul.f32.gmra.mxu0 %v1448
      %v1671 = vpop.f32.mrf.mxu0
      %v1672 = vadd.f32 0.0, %v1671
      %1673 = vmatmul.f32.gmra.mxu0 %v1449
      %v1674 = vpop.f32.mrf.mxu0
      %v1675 = vadd.f32 0.0, %v1674
      %1676 = vmatmul.f32.gmra.mxu0 %v1450
      %v1677 = vpop.f32.mrf.mxu0
      %v1678 = vadd.f32 0.0, %v1677
      %1679 = vmatmul.f32.gmra.mxu0 %v1451
      %v1680 = vpop.f32.mrf.mxu0
      %v1681 = vadd.f32 0.0, %v1680
      %1682 = vmatmul.f32.gmra.mxu0 %v1452
      %v1683 = vpop.f32.mrf.mxu0
      %v1684 = vadd.f32 0.0, %v1683
      %1685 = vmatmul.f32.gmra.mxu0 %v1453
      %v1686 = vpop.f32.mrf.mxu0
      %v1687 = vadd.f32 0.0, %v1686
      %1688 = vmatmul.f32.gmra.mxu0 %v1454
      %v1689 = vpop.f32.mrf.mxu0
      %v1690 = vadd.f32 0.0, %v1689
      %1691 = vmatmul.f32.gmra.mxu0 %v1455
      %v1692 = vpop.f32.mrf.mxu0
      %v1693 = vadd.f32 0.0, %v1692
      %1694 = vdwg.mxu0
      %1695 = vmatpush.msra.mxu0 %v1637
      %1696 = vmatpush.msra.mxu0 %v1636
      %1697 = vmatpush.msra.mxu0 %v1635
      %1698 = vmatpush.msra.mxu0 %v1634
      %1699 = vmatpush.msra.mxu0 %v1633
      %1700 = vmatpush.msra.mxu0 %v1632
      %1701 = vmatpush.msra.mxu0 %v1631
      %1702 = vmatpush.msra.mxu0 %v1630
      %1703 = vmatpush.msra.mxu0 %v1629
      %1704 = vmatpush.msra.mxu0 %v1628
      %1705 = vmatpush.msra.mxu0 %v1627
      %1706 = vmatpush.msra.mxu0 %v1626
      %1707 = vmatpush.msra.mxu0 %v1625
      %1708 = vmatpush.msra.mxu0 %v1624
      %1709 = vmatpush.msra.mxu0 %v1623
      %1710 = vmatpush.msra.mxu0 %v1622
      %1711 = vmatmul.f32.gmra.mxu0 %v1488
      %v1712 = vpop.f32.mrf.mxu0
      %v1713 = vadd.f32 %v1672, %v1712
      %1714 = vmatmul.f32.gmra.mxu0 %v1491
      %v1715 = vpop.f32.mrf.mxu0
      %v1716 = vadd.f32 %v1675, %v1715
      %1717 = vmatmul.f32.gmra.mxu0 %v1494
      %v1718 = vpop.f32.mrf.mxu0
      %v1719 = vadd.f32 %v1678, %v1718
      %1720 = vmatmul.f32.gmra.mxu0 %v1497
      %v1721 = vpop.f32.mrf.mxu0
      %v1722 = vadd.f32 %v1681, %v1721
      %1723 = vmatmul.f32.gmra.mxu0 %v1500
      %v1724 = vpop.f32.mrf.mxu0
      %v1725 = vadd.f32 %v1684, %v1724
      %1726 = vmatmul.f32.gmra.mxu0 %v1503
      %v1727 = vpop.f32.mrf.mxu0
      %v1728 = vadd.f32 %v1687, %v1727
      %1729 = vmatmul.f32.gmra.mxu0 %v1506
      %v1730 = vpop.f32.mrf.mxu0
      %v1731 = vadd.f32 %v1690, %v1730
      %1732 = vmatmul.f32.gmra.mxu0 %v1599
      %v1733 = vpop.f32.mrf.mxu0
      %v1734 = vadd.f32 %v1693, %v1733
      %1735 = vdwg.mxu0
      %1736 = vmatpush.msra.mxu0 %v1653
      %1737 = vmatpush.msra.mxu0 %v1652
      %1738 = vmatpush.msra.mxu0 %v1651
      %1739 = vmatpush.msra.mxu0 %v1650
      %1740 = vmatpush.msra.mxu0 %v1649
      %1741 = vmatpush.msra.mxu0 %v1648
      %1742 = vmatpush.msra.mxu0 %v1647
      %1743 = vmatpush.msra.mxu0 %v1646
      %1744 = vmatpush.msra.mxu0 %v1645
      %1745 = vmatpush.msra.mxu0 %v1644
      %1746 = vmatpush.msra.mxu0 %v1643
      %1747 = vmatpush.msra.mxu0 %v1642
      %1748 = vmatpush.msra.mxu0 %v1641
      %1749 = vmatpush.msra.mxu0 %v1640
      %1750 = vmatpush.msra.mxu0 %v1639
      %1751 = vmatpush.msra.mxu0 %v1638
      %1752 = vmatmul.f32.gmra.mxu0 %v1520
      %v1753 = vpop.f32.mrf.mxu0
      %v1754 = vadd.f32 %v1713, %v1753
      %1755 = vmatmul.f32.gmra.mxu0 %v1523
      %v1756 = vpop.f32.mrf.mxu0
      %v1757 = vadd.f32 %v1716, %v1756
      %1758 = vmatmul.f32.gmra.mxu0 %v1526
      %v1759 = vpop.f32.mrf.mxu0
      %v1760 = vadd.f32 %v1719, %v1759
      %1761 = vmatmul.f32.gmra.mxu0 %v1529
      %v1762 = vpop.f32.mrf.mxu0
      %v1763 = vadd.f32 %v1722, %v1762
      %1764 = vmatmul.f32.gmra.mxu0 %v1532
      %v1765 = vpop.f32.mrf.mxu0
      %v1766 = vadd.f32 %v1725, %v1765
      %1767 = vmatmul.f32.gmra.mxu0 %v1535
      %v1768 = vpop.f32.mrf.mxu0
      %v1769 = vadd.f32 %v1728, %v1768
      %1770 = vmatmul.f32.gmra.mxu0 %v1538
      %v1771 = vpop.f32.mrf.mxu0
      %v1772 = vadd.f32 %v1731, %v1771
      %1773 = vmatmul.f32.gmra.mxu0 %v1603
      %v1774 = vpop.f32.mrf.mxu0
      %v1775 = vadd.f32 %v1734, %v1774
      %1776 = vdwg.mxu0
      %1777 = vmatpush.msra.mxu0 %v1562
      %1778 = vmatpush.msra.mxu0 %v1561
      %1779 = vmatpush.msra.mxu0 %v1560
      %1780 = vmatpush.msra.mxu0 %v1559
      %1781 = vmatpush.msra.mxu0 %v1558
      %1782 = vmatpush.msra.mxu0 %v1557
      %1783 = vmatpush.msra.mxu0 %v1556
      %1784 = vmatpush.msra.mxu0 %v1555
      %1785 = vmatpush.msra.mxu0 %v1554
      %1786 = vmatpush.msra.mxu0 %v1553
      %1787 = vmatpush.msra.mxu0 %v1552
      %1788 = vmatpush.msra.mxu0 %v1551
      %1789 = vmatpush.msra.mxu0 %v1550
      %1790 = vmatpush.msra.mxu0 %v1549
      %1791 = vmatpush.msra.mxu0 %v1548
      %1792 = vmatpush.msra.mxu0 %v1547
      %1793 = vmatmul.f32.gmra.mxu0 %v1447
      %v1794 = vpop.f32.mrf.mxu0
      %v1795 = vadd.f32 %v1754, %v1794
      %1796 = vmatmul.f32.gmra.mxu0 %v1448
      %v1797 = vpop.f32.mrf.mxu0
      %v1798 = vadd.f32 %v1757, %v1797
      %1799 = vmatmul.f32.gmra.mxu0 %v1449
      %v1800 = vpop.f32.mrf.mxu0
      %v1801 = vadd.f32 %v1760, %v1800
      %1802 = vmatmul.f32.gmra.mxu0 %v1450
      %v1803 = vpop.f32.mrf.mxu0
      %v1804 = vadd.f32 %v1763, %v1803
      %1805 = vmatmul.f32.gmra.mxu0 %v1451
      %v1806 = vpop.f32.mrf.mxu0
      %v1807 = vadd.f32 %v1766, %v1806
      %1808 = vmatmul.f32.gmra.mxu0 %v1452
      %v1809 = vpop.f32.mrf.mxu0
      %v1810 = vadd.f32 %v1769, %v1809
      %1811 = vmatmul.f32.gmra.mxu0 %v1453
      %v1812 = vpop.f32.mrf.mxu0
      %v1813 = vadd.f32 %v1772, %v1812
      %1814 = vmatmul.f32.gmra.mxu0 %v1454
      %v1815 = vpop.f32.mrf.mxu0
      %v1816 = vadd.f32 %v1775, %v1815
      %1817 = vdwg.mxu0
      %1818 = vmatpush.msra.mxu0 %v1578
      %1819 = vmatpush.msra.mxu0 %v1577
      %1820 = vmatpush.msra.mxu0 %v1576
      %1821 = vmatpush.msra.mxu0 %v1575
      %1822 = vmatpush.msra.mxu0 %v1574
      %1823 = vmatpush.msra.mxu0 %v1573
      %1824 = vmatpush.msra.mxu0 %v1572
      %1825 = vmatpush.msra.mxu0 %v1571
      %1826 = vmatpush.msra.mxu0 %v1570
      %1827 = vmatpush.msra.mxu0 %v1569
      %1828 = vmatpush.msra.mxu0 %v1568
      %1829 = vmatpush.msra.mxu0 %v1567
      %1830 = vmatpush.msra.mxu0 %v1566
      %1831 = vmatpush.msra.mxu0 %v1565
      %1832 = vmatpush.msra.mxu0 %v1564
      %1833 = vmatpush.msra.mxu0 %v1563
      %1834 = vmatmul.f32.gmra.mxu0 %v1485
      %v1835 = vpop.f32.mrf.mxu0
      %v1836 = vadd.f32 %v1795, %v1835
      %1837 = vmatmul.f32.gmra.mxu0 %v1488
      %v1838 = vpop.f32.mrf.mxu0
      %v1839 = vadd.f32 %v1798, %v1838
      %1840 = vmatmul.f32.gmra.mxu0 %v1491
      %v1841 = vpop.f32.mrf.mxu0
      %v1842 = vadd.f32 %v1801, %v1841
      %1843 = vmatmul.f32.gmra.mxu0 %v1494
      %v1844 = vpop.f32.mrf.mxu0
      %v1845 = vadd.f32 %v1804, %v1844
      %1846 = vmatmul.f32.gmra.mxu0 %v1497
      %v1847 = vpop.f32.mrf.mxu0
      %v1848 = vadd.f32 %v1807, %v1847
      %1849 = vmatmul.f32.gmra.mxu0 %v1500
      %v1850 = vpop.f32.mrf.mxu0
      %v1851 = vadd.f32 %v1810, %v1850
      %1852 = vmatmul.f32.gmra.mxu0 %v1503
      %v1853 = vpop.f32.mrf.mxu0
      %v1854 = vadd.f32 %v1813, %v1853
      %1855 = vmatmul.f32.gmra.mxu0 %v1506
      %v1856 = vpop.f32.mrf.mxu0
      %v1857 = vadd.f32 %v1816, %v1856
      %1858 = vdwg.mxu0
      %1859 = vmatpush.msra.mxu0 %v1594
      %1860 = vmatpush.msra.mxu0 %v1593
      %1861 = vmatpush.msra.mxu0 %v1592
      %1862 = vmatpush.msra.mxu0 %v1591
      %1863 = vmatpush.msra.mxu0 %v1590
      %1864 = vmatpush.msra.mxu0 %v1589
      %1865 = vmatpush.msra.mxu0 %v1588
      %1866 = vmatpush.msra.mxu0 %v1587
      %1867 = vmatpush.msra.mxu0 %v1586
      %1868 = vmatpush.msra.mxu0 %v1585
      %1869 = vmatpush.msra.mxu0 %v1584
      %1870 = vmatpush.msra.mxu0 %v1583
      %1871 = vmatpush.msra.mxu0 %v1582
      %1872 = vmatpush.msra.mxu0 %v1581
      %1873 = vmatpush.msra.mxu0 %v1580
      %1874 = vmatpush.msra.mxu0 %v1579
      %1875 = vmatmul.f32.gmra.mxu0 %v1517
      %v1876 = vpop.f32.mrf.mxu0
      %v1877 = vadd.f32 %v1836, %v1876
      %1878 = vmatmul.f32.gmra.mxu0 %v1520
      %v1879 = vpop.f32.mrf.mxu0
      %v1880 = vadd.f32 %v1839, %v1879
      %1881 = vmatmul.f32.gmra.mxu0 %v1523
      %v1882 = vpop.f32.mrf.mxu0
      %v1883 = vadd.f32 %v1842, %v1882
      %1884 = vmatmul.f32.gmra.mxu0 %v1526
      %v1885 = vpop.f32.mrf.mxu0
      %v1886 = vadd.f32 %v1845, %v1885
      %1887 = vmatmul.f32.gmra.mxu0 %v1529
      %v1888 = vpop.f32.mrf.mxu0
      %v1889 = vadd.f32 %v1848, %v1888
      %1890 = vmatmul.f32.gmra.mxu0 %v1532
      %v1891 = vpop.f32.mrf.mxu0
      %v1892 = vadd.f32 %v1851, %v1891
      %1893 = vmatmul.f32.gmra.mxu0 %v1535
      %v1894 = vpop.f32.mrf.mxu0
      %v1895 = vadd.f32 %v1854, %v1894
      %1896 = vmatmul.f32.gmra.mxu0 %v1538
      %v1897 = vpop.f32.mrf.mxu0
      %v1898 = vadd.f32 %v1857, %v1897
      %1899 = vdwg.mxu0
      %v1902 = vrot.slane %v1456, 1
      %v1903 = vrot.slane %v1466, 1
      %v1904 = vsel %vm914, %v1902, %v1903
      %v1906 = vrot.slane %v1456, 2
      %v1907 = vrot.slane %v1466, 2
      %v1908 = vsel %vm912, %v1906, %v1907
      %s1910 = scalar_lea.vmem %s3, 768
      %v1911 = vld [vmem:[%s1910] sm:$0xff]
      %v1912 = vld [vmem:[%s1910 + $0x8] sm:$0xff]
      %v1913 = vld [vmem:[%s1910 + $0x10] sm:$0xff]
      %v1914 = vld [vmem:[%s1910 + $0x18] sm:$0xff]
      %v1915 = vld [vmem:[%s1910 + $0x20] sm:$0xff]
      %v1916 = vld [vmem:[%s1910 + $0x28] sm:$0xff]
      %v1917 = vld [vmem:[%s1910 + $0x30] sm:$0xff]
      %v1918 = vld [vmem:[%s1910 + $0x38] sm:$0xff]
      %v1919 = vld [vmem:[%s1910 + $0x40] sm:$0xff]
      %v1920 = vld [vmem:[%s1910 + $0x48] sm:$0xff]
      %v1921 = vld [vmem:[%s1910 + $0x50] sm:$0xff]
      %v1922 = vld [vmem:[%s1910 + $0x58] sm:$0xff]
      %v1923 = vld [vmem:[%s1910 + $0x60] sm:$0xff]
      %v1924 = vld [vmem:[%s1910 + $0x68] sm:$0xff]
      %v1925 = vld [vmem:[%s1910 + $0x70] sm:$0xff]
      %v1926 = vld [vmem:[%s1910 + $0x78] sm:$0xff]
      %v1927 = vld [vmem:[%s1910 + $0x80] sm:$0xff]
      %v1928 = vld [vmem:[%s1910 + $0x88] sm:$0xff]
      %v1929 = vld [vmem:[%s1910 + $0x90] sm:$0xff]
      %v1930 = vld [vmem:[%s1910 + $0x98] sm:$0xff]
      %v1931 = vld [vmem:[%s1910 + $0xa0] sm:$0xff]
      %v1932 = vld [vmem:[%s1910 + $0xa8] sm:$0xff]
      %v1933 = vld [vmem:[%s1910 + $0xb0] sm:$0xff]
      %v1934 = vld [vmem:[%s1910 + $0xb8] sm:$0xff]
      %v1935 = vld [vmem:[%s1910 + $0xc0] sm:$0xff]
      %v1936 = vld [vmem:[%s1910 + $0xc8] sm:$0xff]
      %v1937 = vld [vmem:[%s1910 + $0xd0] sm:$0xff]
      %v1938 = vld [vmem:[%s1910 + $0xd8] sm:$0xff]
      %v1939 = vld [vmem:[%s1910 + $0xe0] sm:$0xff]
      %v1940 = vld [vmem:[%s1910 + $0xe8] sm:$0xff]
      %v1941 = vld [vmem:[%s1910 + $0xf0] sm:$0xff]
      %v1942 = vld [vmem:[%s1910 + $0xf8] sm:$0xff]
      %v1943 = vld [vmem:[%s1910 + $0x100] sm:$0xff]
      %v1944 = vld [vmem:[%s1910 + $0x108] sm:$0xff]
      %v1945 = vld [vmem:[%s1910 + $0x110] sm:$0xff]
      %v1946 = vld [vmem:[%s1910 + $0x118] sm:$0xff]
      %v1947 = vld [vmem:[%s1910 + $0x120] sm:$0xff]
      %v1948 = vld [vmem:[%s1910 + $0x128] sm:$0xff]
      %v1949 = vld [vmem:[%s1910 + $0x130] sm:$0xff]
      %v1950 = vld [vmem:[%s1910 + $0x138] sm:$0xff]
      %v1951 = vld [vmem:[%s1910 + $0x140] sm:$0xff]
      %v1952 = vld [vmem:[%s1910 + $0x148] sm:$0xff]
      %v1953 = vld [vmem:[%s1910 + $0x150] sm:$0xff]
      %v1954 = vld [vmem:[%s1910 + $0x158] sm:$0xff]
      %v1955 = vld [vmem:[%s1910 + $0x160] sm:$0xff]
      %v1956 = vld [vmem:[%s1910 + $0x168] sm:$0xff]
      %v1957 = vld [vmem:[%s1910 + $0x170] sm:$0xff]
      %v1958 = vld [vmem:[%s1910 + $0x178] sm:$0xff]
      %1959 = vmatpush.msra.mxu0 %v1926
      %1960 = vmatpush.msra.mxu0 %v1925
      %1961 = vmatpush.msra.mxu0 %v1924
      %1962 = vmatpush.msra.mxu0 %v1923
      %1963 = vmatpush.msra.mxu0 %v1922
      %1964 = vmatpush.msra.mxu0 %v1921
      %1965 = vmatpush.msra.mxu0 %v1920
      %1966 = vmatpush.msra.mxu0 %v1919
      %1967 = vmatpush.msra.mxu0 %v1918
      %1968 = vmatpush.msra.mxu0 %v1917
      %1969 = vmatpush.msra.mxu0 %v1916
      %1970 = vmatpush.msra.mxu0 %v1915
      %1971 = vmatpush.msra.mxu0 %v1914
      %1972 = vmatpush.msra.mxu0 %v1913
      %1973 = vmatpush.msra.mxu0 %v1912
      %1974 = vmatpush.msra.mxu0 %v1911
      %1975 = vmatmul.f32.gmra.mxu0 %v1449
      %v1976 = vpop.f32.mrf.mxu0
      %v1977 = vadd.f32 0.0, %v1976
      %1978 = vmatmul.f32.gmra.mxu0 %v1450
      %v1979 = vpop.f32.mrf.mxu0
      %v1980 = vadd.f32 0.0, %v1979
      %1981 = vmatmul.f32.gmra.mxu0 %v1451
      %v1982 = vpop.f32.mrf.mxu0
      %v1983 = vadd.f32 0.0, %v1982
      %1984 = vmatmul.f32.gmra.mxu0 %v1452
      %v1985 = vpop.f32.mrf.mxu0
      %v1986 = vadd.f32 0.0, %v1985
      %1987 = vmatmul.f32.gmra.mxu0 %v1453
      %v1988 = vpop.f32.mrf.mxu0
      %v1989 = vadd.f32 0.0, %v1988
      %1990 = vmatmul.f32.gmra.mxu0 %v1454
      %v1991 = vpop.f32.mrf.mxu0
      %v1992 = vadd.f32 0.0, %v1991
      %1993 = vmatmul.f32.gmra.mxu0 %v1455
      %v1994 = vpop.f32.mrf.mxu0
      %v1995 = vadd.f32 0.0, %v1994
      %1996 = vmatmul.f32.gmra.mxu0 %v1456
      %v1997 = vpop.f32.mrf.mxu0
      %v1998 = vadd.f32 0.0, %v1997
      %1999 = vdwg.mxu0
      %2000 = vmatpush.msra.mxu0 %v1942
      %2001 = vmatpush.msra.mxu0 %v1941
      %2002 = vmatpush.msra.mxu0 %v1940
      %2003 = vmatpush.msra.mxu0 %v1939
      %2004 = vmatpush.msra.mxu0 %v1938
      %2005 = vmatpush.msra.mxu0 %v1937
      %2006 = vmatpush.msra.mxu0 %v1936
      %2007 = vmatpush.msra.mxu0 %v1935
      %2008 = vmatpush.msra.mxu0 %v1934
      %2009 = vmatpush.msra.mxu0 %v1933
      %2010 = vmatpush.msra.mxu0 %v1932
      %2011 = vmatpush.msra.mxu0 %v1931
      %2012 = vmatpush.msra.mxu0 %v1930
      %2013 = vmatpush.msra.mxu0 %v1929
      %2014 = vmatpush.msra.mxu0 %v1928
      %2015 = vmatpush.msra.mxu0 %v1927
      %2016 = vmatmul.f32.gmra.mxu0 %v1491
      %v2017 = vpop.f32.mrf.mxu0
      %v2018 = vadd.f32 %v1977, %v2017
      %2019 = vmatmul.f32.gmra.mxu0 %v1494
      %v2020 = vpop.f32.mrf.mxu0
      %v2021 = vadd.f32 %v1980, %v2020
      %2022 = vmatmul.f32.gmra.mxu0 %v1497
      %v2023 = vpop.f32.mrf.mxu0
      %v2024 = vadd.f32 %v1983, %v2023
      %2025 = vmatmul.f32.gmra.mxu0 %v1500
      %v2026 = vpop.f32.mrf.mxu0
      %v2027 = vadd.f32 %v1986, %v2026
      %2028 = vmatmul.f32.gmra.mxu0 %v1503
      %v2029 = vpop.f32.mrf.mxu0
      %v2030 = vadd.f32 %v1989, %v2029
      %2031 = vmatmul.f32.gmra.mxu0 %v1506
      %v2032 = vpop.f32.mrf.mxu0
      %v2033 = vadd.f32 %v1992, %v2032
      %2034 = vmatmul.f32.gmra.mxu0 %v1599
      %v2035 = vpop.f32.mrf.mxu0
      %v2036 = vadd.f32 %v1995, %v2035
      %2037 = vmatmul.f32.gmra.mxu0 %v1904
      %v2038 = vpop.f32.mrf.mxu0
      %v2039 = vadd.f32 %v1998, %v2038
      %2040 = vdwg.mxu0
      %2041 = vmatpush.msra.mxu0 %v1958
      %2042 = vmatpush.msra.mxu0 %v1957
      %2043 = vmatpush.msra.mxu0 %v1956
      %2044 = vmatpush.msra.mxu0 %v1955
      %2045 = vmatpush.msra.mxu0 %v1954
      %2046 = vmatpush.msra.mxu0 %v1953
      %2047 = vmatpush.msra.mxu0 %v1952
      %2048 = vmatpush.msra.mxu0 %v1951
      %2049 = vmatpush.msra.mxu0 %v1950
      %2050 = vmatpush.msra.mxu0 %v1949
      %2051 = vmatpush.msra.mxu0 %v1948
      %2052 = vmatpush.msra.mxu0 %v1947
      %2053 = vmatpush.msra.mxu0 %v1946
      %2054 = vmatpush.msra.mxu0 %v1945
      %2055 = vmatpush.msra.mxu0 %v1944
      %2056 = vmatpush.msra.mxu0 %v1943
      %2057 = vmatmul.f32.gmra.mxu0 %v1523
      %v2058 = vpop.f32.mrf.mxu0
      %v2059 = vadd.f32 %v2018, %v2058
      %2060 = vmatmul.f32.gmra.mxu0 %v1526
      %v2061 = vpop.f32.mrf.mxu0
      %v2062 = vadd.f32 %v2021, %v2061
      %2063 = vmatmul.f32.gmra.mxu0 %v1529
      %v2064 = vpop.f32.mrf.mxu0
      %v2065 = vadd.f32 %v2024, %v2064
      %2066 = vmatmul.f32.gmra.mxu0 %v1532
      %v2067 = vpop.f32.mrf.mxu0
      %v2068 = vadd.f32 %v2027, %v2067
      %2069 = vmatmul.f32.gmra.mxu0 %v1535
      %v2070 = vpop.f32.mrf.mxu0
      %v2071 = vadd.f32 %v2030, %v2070
      %2072 = vmatmul.f32.gmra.mxu0 %v1538
      %v2073 = vpop.f32.mrf.mxu0
      %v2074 = vadd.f32 %v2033, %v2073
      %2075 = vmatmul.f32.gmra.mxu0 %v1603
      %v2076 = vpop.f32.mrf.mxu0
      %v2077 = vadd.f32 %v2036, %v2076
      %2078 = vmatmul.f32.gmra.mxu0 %v1908
      %v2079 = vpop.f32.mrf.mxu0
      %v2080 = vadd.f32 %v2039, %v2079
      %2081 = vdwg.mxu0
      %v2082 = vadd.f32 %v1877, %v2059
      %v2083 = vadd.f32 %v1880, %v2062
      %v2084 = vadd.f32 %v1883, %v2065
      %v2085 = vadd.f32 %v1886, %v2068
      %v2086 = vadd.f32 %v1889, %v2071
      %v2087 = vadd.f32 %v1892, %v2074
      %v2088 = vadd.f32 %v1895, %v2077
      %v2089 = vadd.f32 %v1898, %v2080
      %v2090 = vld [vmem:[%s4] sm:$0x1]
      %v2092 = vperm.slane %v2090, 0
      %v2094 = vadd.f32 %v2082, %v2092
      %v2095 = vadd.f32 %v2083, %v2092
      %v2096 = vadd.f32 %v2084, %v2092
      %v2097 = vadd.f32 %v2085, %v2092
      %v2098 = vadd.f32 %v2086, %v2092
      %v2099 = vadd.f32 %v2087, %v2092
      %v2100 = vadd.f32 %v2088, %v2092
      %v2101 = vadd.f32 %v2089, %v2092
      %v2102 = vmax.f32 %v2094, 0.0
      %v2103 = vmax.f32 %v2095, 0.0
      %v2104 = vmax.f32 %v2096, 0.0
      %v2105 = vmax.f32 %v2097, 0.0
      %v2106 = vmax.f32 %v2098, 0.0
      %v2107 = vmax.f32 %v2099, 0.0
      %v2108 = vmax.f32 %v2100, 0.0
      %v2109 = vmax.f32 %v2101, 0.0
      %v2110 = vld [vmem:[%s5] sm:$0x1]
      %v2112 = vperm.slane %v2110, 0
      %v2114 = vmul.f32 %v2102, %v2112
      %v2115 = vmul.f32 %v2103, %v2112
      %v2116 = vmul.f32 %v2104, %v2112
      %v2117 = vmul.f32 %v2105, %v2112
      %v2118 = vmul.f32 %v2106, %v2112
      %v2119 = vmul.f32 %v2107, %v2112
      %v2120 = vmul.f32 %v2108, %v2112
      %v2121 = vmul.f32 %v2109, %v2112
      %v2122 = vld [vmem:[%s6] sm:$0x1]
      %v2124 = vperm.slane %v2122, 0
      %v2126 = vadd.f32 %v2114, %v2124
      %v2127 = vadd.f32 %v2115, %v2124
      %v2128 = vadd.f32 %v2116, %v2124
      %v2129 = vadd.f32 %v2117, %v2124
      %v2130 = vadd.f32 %v2118, %v2124
      %v2131 = vadd.f32 %v2119, %v2124
      %v2132 = vadd.f32 %v2120, %v2124
      %v2133 = vadd.f32 %v2121, %v2124
      %v2134 = vmul.f32 %v2126, 0.25
      %v2135 = vmul.f32 %v2127, 0.25
      %v2136 = vmul.f32 %v2128, 0.25
      %v2137 = vmul.f32 %v2129, 0.25
      %v2138 = vmul.f32 %v2130, 0.25
      %v2139 = vmul.f32 %v2131, 0.25
      %v2140 = vmul.f32 %v2132, 0.25
      %v2141 = vmul.f32 %v2126, 0.75
      %v2142 = vmul.f32 %v2127, 0.75
      %v2143 = vmul.f32 %v2128, 0.75
      %v2144 = vmul.f32 %v2129, 0.75
      %v2145 = vmul.f32 %v2130, 0.75
      %v2146 = vmul.f32 %v2131, 0.75
      %v2147 = vmul.f32 %v2132, 0.75
      %v2148 = vmul.f32 %v2133, 0.75
      %v2149 = vadd.f32 %v2134, %v2141
      %v2150 = vadd.f32 %v2134, %v2142
      %v2151 = vadd.f32 %v2135, %v2143
      %v2152 = vadd.f32 %v2136, %v2144
      %v2153 = vadd.f32 %v2137, %v2145
      %v2154 = vadd.f32 %v2138, %v2146
      %v2155 = vadd.f32 %v2139, %v2147
      %v2156 = vadd.f32 %v2140, %v2148
      %v2157 = vmul.f32 %v2133, 0.25
      %v2158 = vadd.f32 %v2141, %v2135
      %v2159 = vadd.f32 %v2142, %v2136
      %v2160 = vadd.f32 %v2143, %v2137
      %v2161 = vadd.f32 %v2144, %v2138
      %v2162 = vadd.f32 %v2145, %v2139
      %v2163 = vadd.f32 %v2146, %v2140
      %v2164 = vadd.f32 %v2147, %v2157
      %v2165 = vadd.f32 %v2148, %v2157
      %v2182 = vrot.slane %v2149, 7
      %v2183 = vrot.slane %v2158, 7
      %v2184 = vrot.slane %v2150, 7
      %v2185 = vrot.slane %v2159, 7
      %v2186 = vrot.slane %v2151, 7
      %v2187 = vrot.slane %v2160, 7
      %v2188 = vrot.slane %v2152, 7
      %v2189 = vrot.slane %v2161, 7
      %v2190 = vrot.slane %v2153, 7
      %v2191 = vrot.slane %v2162, 7
      %v2192 = vrot.slane %v2154, 7
      %v2193 = vrot.slane %v2163, 7
      %v2194 = vrot.slane %v2155, 7
      %v2195 = vrot.slane %v2164, 7
      %v2196 = vrot.slane %v2156, 7
      %v2197 = vrot.slane %v2165, 7
      %v2214 = vsel %vm902, %v2149, %v2182
      %v2215 = vsel %vm902, %v2158, %v2183
      %v2216 = vsel %vm902, %v2150, %v2184
      %v2217 = vsel %vm902, %v2159, %v2185
      %v2218 = vsel %vm902, %v2151, %v2186
      %v2219 = vsel %vm902, %v2160, %v2187
      %v2220 = vsel %vm902, %v2152, %v2188
      %v2221 = vsel %vm902, %v2161, %v2189
      %v2222 = vsel %vm902, %v2153, %v2190
      %v2223 = vsel %vm902, %v2162, %v2191
      %v2224 = vsel %vm902, %v2154, %v2192
      %v2225 = vsel %vm902, %v2163, %v2193
      %v2226 = vsel %vm902, %v2155, %v2194
      %v2227 = vsel %vm902, %v2164, %v2195
      %v2228 = vsel %vm902, %v2156, %v2196
      %v2229 = vsel %vm902, %v2165, %v2197
      %v2230 = vrot.slane %v2149, 1
      %v2231 = vrot.slane %v2158, 1
      %v2232 = vrot.slane %v2150, 1
      %v2233 = vrot.slane %v2159, 1
      %v2234 = vrot.slane %v2151, 1
      %v2235 = vrot.slane %v2160, 1
      %v2236 = vrot.slane %v2152, 1
      %v2237 = vrot.slane %v2161, 1
      %v2238 = vrot.slane %v2153, 1
      %v2239 = vrot.slane %v2162, 1
      %v2240 = vrot.slane %v2154, 1
      %v2241 = vrot.slane %v2163, 1
      %v2242 = vrot.slane %v2155, 1
      %v2243 = vrot.slane %v2164, 1
      %v2244 = vrot.slane %v2156, 1
      %v2245 = vrot.slane %v2165, 1
      %v2262 = vsel %vm914, %v2230, %v2149
      %v2263 = vsel %vm914, %v2231, %v2158
      %v2264 = vsel %vm914, %v2232, %v2150
      %v2265 = vsel %vm914, %v2233, %v2159
      %v2266 = vsel %vm914, %v2234, %v2151
      %v2267 = vsel %vm914, %v2235, %v2160
      %v2268 = vsel %vm914, %v2236, %v2152
      %v2269 = vsel %vm914, %v2237, %v2161
      %v2270 = vsel %vm914, %v2238, %v2153
      %v2271 = vsel %vm914, %v2239, %v2162
      %v2272 = vsel %vm914, %v2240, %v2154
      %v2273 = vsel %vm914, %v2241, %v2163
      %v2274 = vsel %vm914, %v2242, %v2155
      %v2275 = vsel %vm914, %v2243, %v2164
      %v2276 = vsel %vm914, %v2244, %v2156
      %v2277 = vsel %vm914, %v2245, %v2165
      %v2278 = vmul.f32 %v2214, 0.25
      %v2279 = vmul.f32 %v2215, 0.25
      %v2280 = vmul.f32 %v2216, 0.25
      %v2281 = vmul.f32 %v2217, 0.25
      %v2282 = vmul.f32 %v2218, 0.25
      %v2283 = vmul.f32 %v2219, 0.25
      %v2284 = vmul.f32 %v2220, 0.25
      %v2285 = vmul.f32 %v2221, 0.25
      %v2286 = vmul.f32 %v2222, 0.25
      %v2287 = vmul.f32 %v2223, 0.25
      %v2288 = vmul.f32 %v2224, 0.25
      %v2289 = vmul.f32 %v2225, 0.25
      %v2290 = vmul.f32 %v2226, 0.25
      %v2291 = vmul.f32 %v2227, 0.25
      %v2292 = vmul.f32 %v2228, 0.25
      %v2293 = vmul.f32 %v2229, 0.25
      %v2294 = vmul.f32 %v2149, 0.75
      %v2295 = vmul.f32 %v2158, 0.75
      %v2296 = vmul.f32 %v2150, 0.75
      %v2297 = vmul.f32 %v2159, 0.75
      %v2298 = vmul.f32 %v2151, 0.75
      %v2299 = vmul.f32 %v2160, 0.75
      %v2300 = vmul.f32 %v2152, 0.75
      %v2301 = vmul.f32 %v2161, 0.75
      %v2302 = vmul.f32 %v2153, 0.75
      %v2303 = vmul.f32 %v2162, 0.75
      %v2304 = vmul.f32 %v2154, 0.75
      %v2305 = vmul.f32 %v2163, 0.75
      %v2306 = vmul.f32 %v2155, 0.75
      %v2307 = vmul.f32 %v2164, 0.75
      %v2308 = vmul.f32 %v2156, 0.75
      %v2309 = vmul.f32 %v2165, 0.75
      %v2310 = vadd.f32 %v2278, %v2294
      %v2311 = vadd.f32 %v2279, %v2295
      %v2312 = vadd.f32 %v2280, %v2296
      %v2313 = vadd.f32 %v2281, %v2297
      %v2314 = vadd.f32 %v2282, %v2298
      %v2315 = vadd.f32 %v2283, %v2299
      %v2316 = vadd.f32 %v2284, %v2300
      %v2317 = vadd.f32 %v2285, %v2301
      %v2318 = vadd.f32 %v2286, %v2302
      %v2319 = vadd.f32 %v2287, %v2303
      %v2320 = vadd.f32 %v2288, %v2304
      %v2321 = vadd.f32 %v2289, %v2305
      %v2322 = vadd.f32 %v2290, %v2306
      %v2323 = vadd.f32 %v2291, %v2307
      %v2324 = vadd.f32 %v2292, %v2308
      %v2325 = vadd.f32 %v2293, %v2309
      %v2326 = vmul.f32 %v2262, 0.25
      %v2327 = vmul.f32 %v2263, 0.25
      %v2328 = vmul.f32 %v2264, 0.25
      %v2329 = vmul.f32 %v2265, 0.25
      %v2330 = vmul.f32 %v2266, 0.25
      %v2331 = vmul.f32 %v2267, 0.25
      %v2332 = vmul.f32 %v2268, 0.25
      %v2333 = vmul.f32 %v2269, 0.25
      %v2334 = vmul.f32 %v2270, 0.25
      %v2335 = vmul.f32 %v2271, 0.25
      %v2336 = vmul.f32 %v2272, 0.25
      %v2337 = vmul.f32 %v2273, 0.25
      %v2338 = vmul.f32 %v2274, 0.25
      %v2339 = vmul.f32 %v2275, 0.25
      %v2340 = vmul.f32 %v2276, 0.25
      %v2341 = vmul.f32 %v2277, 0.25
      %v2342 = vadd.f32 %v2294, %v2326
      %v2343 = vadd.f32 %v2295, %v2327
      %v2344 = vadd.f32 %v2296, %v2328
      %v2345 = vadd.f32 %v2297, %v2329
      %v2346 = vadd.f32 %v2298, %v2330
      %v2347 = vadd.f32 %v2299, %v2331
      %v2348 = vadd.f32 %v2300, %v2332
      %v2349 = vadd.f32 %v2301, %v2333
      %v2350 = vadd.f32 %v2302, %v2334
      %v2351 = vadd.f32 %v2303, %v2335
      %v2352 = vadd.f32 %v2304, %v2336
      %v2353 = vadd.f32 %v2305, %v2337
      %v2354 = vadd.f32 %v2306, %v2338
      %v2355 = vadd.f32 %v2307, %v2339
      %v2356 = vadd.f32 %v2308, %v2340
      %v2357 = vadd.f32 %v2309, %v2341
      %v2374 = vrot.slane %v2310, 1
      %v2375 = vrot.slane %v2310, 2
      %v2376 = vrot.slane %v2310, 3
      %v2377 = vrot.slane %v2310, 4
      %v2378 = vrot.slane %v2310, 5
      %v2379 = vrot.slane %v2310, 6
      %v2380 = vrot.slane %v2310, 7
      %v2381 = vrot.slane %v2311, 1
      %v2382 = vrot.slane %v2311, 2
      %v2383 = vrot.slane %v2311, 3
      %v2384 = vrot.slane %v2311, 4
      %v2385 = vrot.slane %v2311, 5
      %v2386 = vrot.slane %v2311, 6
      %v2387 = vrot.slane %v2311, 7
      %v2388 = vrot.slane %v2312, 1
      %v2389 = vrot.slane %v2312, 2
      %v2390 = vrot.slane %v2312, 3
      %v2391 = vrot.slane %v2312, 4
      %v2392 = vrot.slane %v2312, 5
      %v2393 = vrot.slane %v2312, 6
      %v2394 = vrot.slane %v2312, 7
      %v2395 = vrot.slane %v2313, 1
      %v2396 = vrot.slane %v2313, 2
      %v2397 = vrot.slane %v2313, 3
      %v2398 = vrot.slane %v2313, 4
      %v2399 = vrot.slane %v2313, 5
      %v2400 = vrot.slane %v2313, 6
      %v2401 = vrot.slane %v2313, 7
      %v2402 = vrot.slane %v2314, 1
      %v2403 = vrot.slane %v2314, 2
      %v2404 = vrot.slane %v2314, 3
      %v2405 = vrot.slane %v2314, 4
      %v2406 = vrot.slane %v2314, 5
      %v2407 = vrot.slane %v2314, 6
      %v2408 = vrot.slane %v2314, 7
      %v2409 = vrot.slane %v2315, 1
      %v2410 = vrot.slane %v2315, 2
      %v2411 = vrot.slane %v2315, 3
      %v2412 = vrot.slane %v2315, 4
      %v2413 = vrot.slane %v2315, 5
      %v2414 = vrot.slane %v2315, 6
      %v2415 = vrot.slane %v2315, 7
      %v2416 = vrot.slane %v2316, 1
      %v2417 = vrot.slane %v2316, 2
      %v2418 = vrot.slane %v2316, 3
      %v2419 = vrot.slane %v2316, 4
      %v2420 = vrot.slane %v2316, 5
      %v2421 = vrot.slane %v2316, 6
      %v2422 = vrot.slane %v2316, 7
      %v2423 = vrot.slane %v2317, 1
      %v2424 = vrot.slane %v2317, 2
      %v2425 = vrot.slane %v2317, 3
      %v2426 = vrot.slane %v2317, 4
      %v2427 = vrot.slane %v2317, 5
      %v2428 = vrot.slane %v2317, 6
      %v2429 = vrot.slane %v2317, 7
      %v2430 = vrot.slane %v2318, 1
      %v2431 = vrot.slane %v2318, 2
      %v2432 = vrot.slane %v2318, 3
      %v2433 = vrot.slane %v2318, 4
      %v2434 = vrot.slane %v2318, 5
      %v2435 = vrot.slane %v2318, 6
      %v2436 = vrot.slane %v2318, 7
      %v2437 = vrot.slane %v2319, 1
      %v2438 = vrot.slane %v2319, 2
      %v2439 = vrot.slane %v2319, 3
      %v2440 = vrot.slane %v2319, 4
      %v2441 = vrot.slane %v2319, 5
      %v2442 = vrot.slane %v2319, 6
      %v2443 = vrot.slane %v2319, 7
      %v2444 = vrot.slane %v2320, 1
      %v2445 = vrot.slane %v2320, 2
      %v2446 = vrot.slane %v2320, 3
      %v2447 = vrot.slane %v2320, 4
      %v2448 = vrot.slane %v2320, 5
      %v2449 = vrot.slane %v2320, 6
      %v2450 = vrot.slane %v2320, 7
      %v2451 = vrot.slane %v2321, 1
      %v2452 = vrot.slane %v2321, 2
      %v2453 = vrot.slane %v2321, 3
      %v2454 = vrot.slane %v2321, 4
      %v2455 = vrot.slane %v2321, 5
      %v2456 = vrot.slane %v2321, 6
      %v2457 = vrot.slane %v2321, 7
      %v2458 = vrot.slane %v2322, 1
      %v2459 = vrot.slane %v2322, 2
      %v2460 = vrot.slane %v2322, 3
      %v2461 = vrot.slane %v2322, 4
      %v2462 = vrot.slane %v2322, 5
      %v2463 = vrot.slane %v2322, 6
      %v2464 = vrot.slane %v2322, 7
      %v2465 = vrot.slane %v2323, 1
      %v2466 = vrot.slane %v2323, 2
      %v2467 = vrot.slane %v2323, 3
      %v2468 = vrot.slane %v2323, 4
      %v2469 = vrot.slane %v2323, 5
      %v2470 = vrot.slane %v2323, 6
      %v2471 = vrot.slane %v2323, 7
      %v2472 = vrot.slane %v2324, 1
      %v2473 = vrot.slane %v2324, 2
      %v2474 = vrot.slane %v2324, 3
      %v2475 = vrot.slane %v2324, 4
      %v2476 = vrot.slane %v2324, 5
      %v2477 = vrot.slane %v2324, 6
      %v2478 = vrot.slane %v2324, 7
      %v2479 = vrot.slane %v2325, 1
      %v2480 = vrot.slane %v2325, 2
      %v2481 = vrot.slane %v2325, 3
      %v2482 = vrot.slane %v2325, 4
      %v2483 = vrot.slane %v2325, 5
      %v2484 = vrot.slane %v2325, 6
      %v2485 = vrot.slane %v2325, 7
      %v2614 = vrot.slane %v2342, 1
      %v2615 = vrot.slane %v2342, 2
      %v2616 = vrot.slane %v2342, 3
      %v2617 = vrot.slane %v2342, 4
      %v2618 = vrot.slane %v2342, 5
      %v2619 = vrot.slane %v2342, 6
      %v2620 = vrot.slane %v2342, 7
      %v2621 = vrot.slane %v2343, 1
      %v2622 = vrot.slane %v2343, 2
      %v2623 = vrot.slane %v2343, 3
      %v2624 = vrot.slane %v2343, 4
      %v2625 = vrot.slane %v2343, 5
      %v2626 = vrot.slane %v2343, 6
      %v2627 = vrot.slane %v2343, 7
      %v2628 = vrot.slane %v2344, 1
      %v2629 = vrot.slane %v2344, 2
      %v2630 = vrot.slane %v2344, 3
      %v2631 = vrot.slane %v2344, 4
      %v2632 = vrot.slane %v2344, 5
      %v2633 = vrot.slane %v2344, 6
      %v2634 = vrot.slane %v2344, 7
      %v2635 = vrot.slane %v2345, 1
      %v2636 = vrot.slane %v2345, 2
      %v2637 = vrot.slane %v2345, 3
      %v2638 = vrot.slane %v2345, 4
      %v2639 = vrot.slane %v2345, 5
      %v2640 = vrot.slane %v2345, 6
      %v2641 = vrot.slane %v2345, 7
      %v2642 = vrot.slane %v2346, 1
      %v2643 = vrot.slane %v2346, 2
      %v2644 = vrot.slane %v2346, 3
      %v2645 = vrot.slane %v2346, 4
      %v2646 = vrot.slane %v2346, 5
      %v2647 = vrot.slane %v2346, 6
      %v2648 = vrot.slane %v2346, 7
      %v2649 = vrot.slane %v2347, 1
      %v2650 = vrot.slane %v2347, 2
      %v2651 = vrot.slane %v2347, 3
      %v2652 = vrot.slane %v2347, 4
      %v2653 = vrot.slane %v2347, 5
      %v2654 = vrot.slane %v2347, 6
      %v2655 = vrot.slane %v2347, 7
      %v2656 = vrot.slane %v2348, 1
      %v2657 = vrot.slane %v2348, 2
      %v2658 = vrot.slane %v2348, 3
      %v2659 = vrot.slane %v2348, 4
      %v2660 = vrot.slane %v2348, 5
      %v2661 = vrot.slane %v2348, 6
      %v2662 = vrot.slane %v2348, 7
      %v2663 = vrot.slane %v2349, 1
      %v2664 = vrot.slane %v2349, 2
      %v2665 = vrot.slane %v2349, 3
      %v2666 = vrot.slane %v2349, 4
      %v2667 = vrot.slane %v2349, 5
      %v2668 = vrot.slane %v2349, 6
      %v2669 = vrot.slane %v2349, 7
      %v2670 = vrot.slane %v2350, 1
      %v2671 = vrot.slane %v2350, 2
      %v2672 = vrot.slane %v2350, 3
      %v2673 = vrot.slane %v2350, 4
      %v2674 = vrot.slane %v2350, 5
      %v2675 = vrot.slane %v2350, 6
      %v2676 = vrot.slane %v2350, 7
      %v2677 = vrot.slane %v2351, 1
      %v2678 = vrot.slane %v2351, 2
      %v2679 = vrot.slane %v2351, 3
      %v2680 = vrot.slane %v2351, 4
      %v2681 = vrot.slane %v2351, 5
      %v2682 = vrot.slane %v2351, 6
      %v2683 = vrot.slane %v2351, 7
      %v2684 = vrot.slane %v2352, 1
      %v2685 = vrot.slane %v2352, 2
      %v2686 = vrot.slane %v2352, 3
      %v2687 = vrot.slane %v2352, 4
      %v2688 = vrot.slane %v2352, 5
      %v2689 = vrot.slane %v2352, 6
      %v2690 = vrot.slane %v2352, 7
      %v2691 = vrot.slane %v2353, 1
      %v2692 = vrot.slane %v2353, 2
      %v2693 = vrot.slane %v2353, 3
      %v2694 = vrot.slane %v2353, 4
      %v2695 = vrot.slane %v2353, 5
      %v2696 = vrot.slane %v2353, 6
      %v2697 = vrot.slane %v2353, 7
      %v2698 = vrot.slane %v2354, 1
      %v2699 = vrot.slane %v2354, 2
      %v2700 = vrot.slane %v2354, 3
      %v2701 = vrot.slane %v2354, 4
      %v2702 = vrot.slane %v2354, 5
      %v2703 = vrot.slane %v2354, 6
      %v2704 = vrot.slane %v2354, 7
      %v2705 = vrot.slane %v2355, 1
      %v2706 = vrot.slane %v2355, 2
      %v2707 = vrot.slane %v2355, 3
      %v2708 = vrot.slane %v2355, 4
      %v2709 = vrot.slane %v2355, 5
      %v2710 = vrot.slane %v2355, 6
      %v2711 = vrot.slane %v2355, 7
      %v2712 = vrot.slane %v2356, 1
      %v2713 = vrot.slane %v2356, 2
      %v2714 = vrot.slane %v2356, 3
      %v2715 = vrot.slane %v2356, 4
      %v2716 = vrot.slane %v2356, 5
      %v2717 = vrot.slane %v2356, 6
      %v2718 = vrot.slane %v2356, 7
      %v2719 = vrot.slane %v2357, 1
      %v2720 = vrot.slane %v2357, 2
      %v2721 = vrot.slane %v2357, 3
      %v2722 = vrot.slane %v2357, 4
      %v2723 = vrot.slane %v2357, 5
      %v2724 = vrot.slane %v2357, 6
      %v2725 = vrot.slane %v2357, 7
      %v2726 = vperm.slane %v2342, 0
      %v2727 = vperm.slane %v2614, 0
      %v2728 = vperm.slane %v2615, 0
      %v2729 = vperm.slane %v2616, 0
      %v2730 = vperm.slane %v2617, 0
      %v2731 = vperm.slane %v2618, 0
      %v2732 = vperm.slane %v2619, 0
      %v2733 = vperm.slane %v2620, 0
      %v2734 = vperm.slane %v2343, 0
      %v2735 = vperm.slane %v2621, 0
      %v2736 = vperm.slane %v2622, 0
      %v2737 = vperm.slane %v2623, 0
      %v2738 = vperm.slane %v2624, 0
      %v2739 = vperm.slane %v2625, 0
      %v2740 = vperm.slane %v2626, 0
      %v2741 = vperm.slane %v2627, 0
      %v2742 = vperm.slane %v2344, 0
      %v2743 = vperm.slane %v2628, 0
      %v2744 = vperm.slane %v2629, 0
      %v2745 = vperm.slane %v2630, 0
      %v2746 = vperm.slane %v2631, 0
      %v2747 = vperm.slane %v2632, 0
      %v2748 = vperm.slane %v2633, 0
      %v2749 = vperm.slane %v2634, 0
      %v2750 = vperm.slane %v2345, 0
      %v2751 = vperm.slane %v2635, 0
      %v2752 = vperm.slane %v2636, 0
      %v2753 = vperm.slane %v2637, 0
      %v2754 = vperm.slane %v2638, 0
      %v2755 = vperm.slane %v2639, 0
      %v2756 = vperm.slane %v2640, 0
      %v2757 = vperm.slane %v2641, 0
      %v2758 = vperm.slane %v2346, 0
      %v2759 = vperm.slane %v2642, 0
      %v2760 = vperm.slane %v2643, 0
      %v2761 = vperm.slane %v2644, 0
      %v2762 = vperm.slane %v2645, 0
      %v2763 = vperm.slane %v2646, 0
      %v2764 = vperm.slane %v2647, 0
      %v2765 = vperm.slane %v2648, 0
      %v2766 = vperm.slane %v2347, 0
      %v2767 = vperm.slane %v2649, 0
      %v2768 = vperm.slane %v2650, 0
      %v2769 = vperm.slane %v2651, 0
      %v2770 = vperm.slane %v2652, 0
      %v2771 = vperm.slane %v2653, 0
      %v2772 = vperm.slane %v2654, 0
      %v2773 = vperm.slane %v2655, 0
      %v2774 = vperm.slane %v2348, 0
      %v2775 = vperm.slane %v2656, 0
      %v2776 = vperm.slane %v2657, 0
      %v2777 = vperm.slane %v2658, 0
      %v2778 = vperm.slane %v2659, 0
      %v2779 = vperm.slane %v2660, 0
      %v2780 = vperm.slane %v2661, 0
      %v2781 = vperm.slane %v2662, 0
      %v2782 = vperm.slane %v2349, 0
      %v2783 = vperm.slane %v2663, 0
      %v2784 = vperm.slane %v2664, 0
      %v2785 = vperm.slane %v2665, 0
      %v2786 = vperm.slane %v2666, 0
      %v2787 = vperm.slane %v2667, 0
      %v2788 = vperm.slane %v2668, 0
      %v2789 = vperm.slane %v2669, 0
      %v2790 = vperm.slane %v2350, 0
      %v2791 = vperm.slane %v2670, 0
      %v2792 = vperm.slane %v2671, 0
      %v2793 = vperm.slane %v2672, 0
      %v2794 = vperm.slane %v2673, 0
      %v2795 = vperm.slane %v2674, 0
      %v2796 = vperm.slane %v2675, 0
      %v2797 = vperm.slane %v2676, 0
      %v2798 = vperm.slane %v2351, 0
      %v2799 = vperm.slane %v2677, 0
      %v2800 = vperm.slane %v2678, 0
      %v2801 = vperm.slane %v2679, 0
      %v2802 = vperm.slane %v2680, 0
      %v2803 = vperm.slane %v2681, 0
      %v2804 = vperm.slane %v2682, 0
      %v2805 = vperm.slane %v2683, 0
      %v2806 = vperm.slane %v2352, 0
      %v2807 = vperm.slane %v2684, 0
      %v2808 = vperm.slane %v2685, 0
      %v2809 = vperm.slane %v2686, 0
      %v2810 = vperm.slane %v2687, 0
      %v2811 = vperm.slane %v2688, 0
      %v2812 = vperm.slane %v2689, 0
      %v2813 = vperm.slane %v2690, 0
      %v2814 = vperm.slane %v2353, 0
      %v2815 = vperm.slane %v2691, 0
      %v2816 = vperm.slane %v2692, 0
      %v2817 = vperm.slane %v2693, 0
      %v2818 = vperm.slane %v2694, 0
      %v2819 = vperm.slane %v2695, 0
      %v2820 = vperm.slane %v2696, 0
      %v2821 = vperm.slane %v2697, 0
      %v2822 = vperm.slane %v2354, 0
      %v2823 = vperm.slane %v2698, 0
      %v2824 = vperm.slane %v2699, 0
      %v2825 = vperm.slane %v2700, 0
      %v2826 = vperm.slane %v2701, 0
      %v2827 = vperm.slane %v2702, 0
      %v2828 = vperm.slane %v2703, 0
      %v2829 = vperm.slane %v2704, 0
      %v2830 = vperm.slane %v2355, 0
      %v2831 = vperm.slane %v2705, 0
      %v2832 = vperm.slane %v2706, 0
      %v2833 = vperm.slane %v2707, 0
      %v2834 = vperm.slane %v2708, 0
      %v2835 = vperm.slane %v2709, 0
      %v2836 = vperm.slane %v2710, 0
      %v2837 = vperm.slane %v2711, 0
      %v2838 = vperm.slane %v2356, 0
      %v2839 = vperm.slane %v2712, 0
      %v2840 = vperm.slane %v2713, 0
      %v2841 = vperm.slane %v2714, 0
      %v2842 = vperm.slane %v2715, 0
      %v2843 = vperm.slane %v2716, 0
      %v2844 = vperm.slane %v2717, 0
      %v2845 = vperm.slane %v2718, 0
      %v2846 = vperm.slane %v2357, 0
      %v2847 = vperm.slane %v2719, 0
      %v2848 = vperm.slane %v2720, 0
      %v2849 = vperm.slane %v2721, 0
      %v2850 = vperm.slane %v2722, 0
      %v2851 = vperm.slane %v2723, 0
      %v2852 = vperm.slane %v2724, 0
      %v2853 = vperm.slane %v2725, 0
      %v2982 = vsel %vm902, %v2310, %v2726
      %v2983 = vsel %vm902, %v2374, %v2727
      %v2984 = vsel %vm902, %v2375, %v2728
      %v2985 = vsel %vm902, %v2376, %v2729
      %v2986 = vsel %vm902, %v2377, %v2730
      %v2987 = vsel %vm902, %v2378, %v2731
      %v2988 = vsel %vm902, %v2379, %v2732
      %v2989 = vsel %vm902, %v2380, %v2733
      %v2990 = vsel %vm902, %v2311, %v2734
      %v2991 = vsel %vm902, %v2381, %v2735
      %v2992 = vsel %vm902, %v2382, %v2736
      %v2993 = vsel %vm902, %v2383, %v2737
      %v2994 = vsel %vm902, %v2384, %v2738
      %v2995 = vsel %vm902, %v2385, %v2739
      %v2996 = vsel %vm902, %v2386, %v2740
      %v2997 = vsel %vm902, %v2387, %v2741
      %v2998 = vsel %vm902, %v2312, %v2742
      %v2999 = vsel %vm902, %v2388, %v2743
      %v3000 = vsel %vm902, %v2389, %v2744
      %v3001 = vsel %vm902, %v2390, %v2745
      %v3002 = vsel %vm902, %v2391, %v2746
      %v3003 = vsel %vm902, %v2392, %v2747
      %v3004 = vsel %vm902, %v2393, %v2748
      %v3005 = vsel %vm902, %v2394, %v2749
      %v3006 = vsel %vm902, %v2313, %v2750
      %v3007 = vsel %vm902, %v2395, %v2751
      %v3008 = vsel %vm902, %v2396, %v2752
      %v3009 = vsel %vm902, %v2397, %v2753
      %v3010 = vsel %vm902, %v2398, %v2754
      %v3011 = vsel %vm902, %v2399, %v2755
      %v3012 = vsel %vm902, %v2400, %v2756
      %v3013 = vsel %vm902, %v2401, %v2757
      %v3014 = vsel %vm902, %v2314, %v2758
      %v3015 = vsel %vm902, %v2402, %v2759
      %v3016 = vsel %vm902, %v2403, %v2760
      %v3017 = vsel %vm902, %v2404, %v2761
      %v3018 = vsel %vm902, %v2405, %v2762
      %v3019 = vsel %vm902, %v2406, %v2763
      %v3020 = vsel %vm902, %v2407, %v2764
      %v3021 = vsel %vm902, %v2408, %v2765
      %v3022 = vsel %vm902, %v2315, %v2766
      %v3023 = vsel %vm902, %v2409, %v2767
      %v3024 = vsel %vm902, %v2410, %v2768
      %v3025 = vsel %vm902, %v2411, %v2769
      %v3026 = vsel %vm902, %v2412, %v2770
      %v3027 = vsel %vm902, %v2413, %v2771
      %v3028 = vsel %vm902, %v2414, %v2772
      %v3029 = vsel %vm902, %v2415, %v2773
      %v3030 = vsel %vm902, %v2316, %v2774
      %v3031 = vsel %vm902, %v2416, %v2775
      %v3032 = vsel %vm902, %v2417, %v2776
      %v3033 = vsel %vm902, %v2418, %v2777
      %v3034 = vsel %vm902, %v2419, %v2778
      %v3035 = vsel %vm902, %v2420, %v2779
      %v3036 = vsel %vm902, %v2421, %v2780
      %v3037 = vsel %vm902, %v2422, %v2781
      %v3038 = vsel %vm902, %v2317, %v2782
      %v3039 = vsel %vm902, %v2423, %v2783
      %v3040 = vsel %vm902, %v2424, %v2784
      %v3041 = vsel %vm902, %v2425, %v2785
      %v3042 = vsel %vm902, %v2426, %v2786
      %v3043 = vsel %vm902, %v2427, %v2787
      %v3044 = vsel %vm902, %v2428, %v2788
      %v3045 = vsel %vm902, %v2429, %v2789
      %v3046 = vsel %vm902, %v2318, %v2790
      %v3047 = vsel %vm902, %v2430, %v2791
      %v3048 = vsel %vm902, %v2431, %v2792
      %v3049 = vsel %vm902, %v2432, %v2793
      %v3050 = vsel %vm902, %v2433, %v2794
      %v3051 = vsel %vm902, %v2434, %v2795
      %v3052 = vsel %vm902, %v2435, %v2796
      %v3053 = vsel %vm902, %v2436, %v2797
      %v3054 = vsel %vm902, %v2319, %v2798
      %v3055 = vsel %vm902, %v2437, %v2799
      %v3056 = vsel %vm902, %v2438, %v2800
      %v3057 = vsel %vm902, %v2439, %v2801
      %v3058 = vsel %vm902, %v2440, %v2802
      %v3059 = vsel %vm902, %v2441, %v2803
      %v3060 = vsel %vm902, %v2442, %v2804
      %v3061 = vsel %vm902, %v2443, %v2805
      %v3062 = vsel %vm902, %v2320, %v2806
      %v3063 = vsel %vm902, %v2444, %v2807
      %v3064 = vsel %vm902, %v2445, %v2808
      %v3065 = vsel %vm902, %v2446, %v2809
      %v3066 = vsel %vm902, %v2447, %v2810
      %v3067 = vsel %vm902, %v2448, %v2811
      %v3068 = vsel %vm902, %v2449, %v2812
      %v3069 = vsel %vm902, %v2450, %v2813
      %v3070 = vsel %vm902, %v2321, %v2814
      %v3071 = vsel %vm902, %v2451, %v2815
      %v3072 = vsel %vm902, %v2452, %v2816
      %v3073 = vsel %vm902, %v2453, %v2817
      %v3074 = vsel %vm902, %v2454, %v2818
      %v3075 = vsel %vm902, %v2455, %v2819
      %v3076 = vsel %vm902, %v2456, %v2820
      %v3077 = vsel %vm902, %v2457, %v2821
      %v3078 = vsel %vm902, %v2322, %v2822
      %v3079 = vsel %vm902, %v2458, %v2823
      %v3080 = vsel %vm902, %v2459, %v2824
      %v3081 = vsel %vm902, %v2460, %v2825
      %v3082 = vsel %vm902, %v2461, %v2826
      %v3083 = vsel %vm902, %v2462, %v2827
      %v3084 = vsel %vm902, %v2463, %v2828
      %v3085 = vsel %vm902, %v2464, %v2829
      %v3086 = vsel %vm902, %v2323, %v2830
      %v3087 = vsel %vm902, %v2465, %v2831
      %v3088 = vsel %vm902, %v2466, %v2832
      %v3089 = vsel %vm902, %v2467, %v2833
      %v3090 = vsel %vm902, %v2468, %v2834
      %v3091 = vsel %vm902, %v2469, %v2835
      %v3092 = vsel %vm902, %v2470, %v2836
      %v3093 = vsel %vm902, %v2471, %v2837
      %v3094 = vsel %vm902, %v2324, %v2838
      %v3095 = vsel %vm902, %v2472, %v2839
      %v3096 = vsel %vm902, %v2473, %v2840
      %v3097 = vsel %vm902, %v2474, %v2841
      %v3098 = vsel %vm902, %v2475, %v2842
      %v3099 = vsel %vm902, %v2476, %v2843
      %v3100 = vsel %vm902, %v2477, %v2844
      %v3101 = vsel %vm902, %v2478, %v2845
      %v3102 = vsel %vm902, %v2325, %v2846
      %v3103 = vsel %vm902, %v2479, %v2847
      %v3104 = vsel %vm902, %v2480, %v2848
      %v3105 = vsel %vm902, %v2481, %v2849
      %v3106 = vsel %vm902, %v2482, %v2850
      %v3107 = vsel %vm902, %v2483, %v2851
      %v3108 = vsel %vm902, %v2484, %v2852
      %v3109 = vsel %vm902, %v2485, %v2853
      %v3126 = vperm.slane %v2990, 1
      %v3127 = vperm.slane %v2982, 1
      %v3128 = vperm.slane %v2998, 1
      %v3129 = vperm.slane %v3006, 1
      %v3130 = vperm.slane %v3014, 1
      %v3131 = vperm.slane %v3022, 1
      %v3132 = vperm.slane %v3030, 1
      %v3133 = vperm.slane %v3038, 1
      %v3134 = vperm.slane %v3046, 1
      %v3135 = vperm.slane %v3054, 1
      %v3136 = vperm.slane %v3062, 1
      %v3137 = vperm.slane %v3070, 1
      %v3138 = vperm.slane %v3078, 1
      %v3139 = vperm.slane %v3086, 1
      %v3140 = vperm.slane %v3094, 1
      %v3141 = vperm.slane %v3102, 1
      %3270 = vst [vmem:[#allocation1] ss:$4 sm:$0xff] %v2990
      %s3271 = scalar_lea.vmem [#allocation1], 1
      %3272 = vst [vmem:[%s3271] ss:$4 sm:$0xff] %v2991
      %s3273 = scalar_lea.vmem [#allocation1], 2
      %3274 = vst [vmem:[%s3273] ss:$4 sm:$0xff] %v2992
      %s3275 = scalar_lea.vmem [#allocation1], 3
      %3276 = vst [vmem:[%s3275] ss:$4 sm:$0xff] %v2993
      %s3277 = scalar_lea.vmem [#allocation1], 32
      %3278 = vst [vmem:[%s3277] ss:$4 sm:$0xff] %v2994
      %s3279 = scalar_lea.vmem [#allocation1], 33
      %3280 = vst [vmem:[%s3279] ss:$4 sm:$0xff] %v2995
      %s3281 = scalar_lea.vmem [#allocation1], 34
      %3282 = vst [vmem:[%s3281] ss:$4 sm:$0xff] %v2996
      %s3283 = scalar_lea.vmem [#allocation1], 35
      %3284 = vst [vmem:[%s3283] ss:$4 sm:$0xff] %v2997
      %v3285 = vld.sshfl [vmem:[#allocation1] sm:$0xff pattern:$0x73625140]
      %v3286 = vld.sshfl [vmem:[#allocation1 + $0x20] sm:$0xff pattern:$0x73625140]
      %3287 = vst [vmem:[#allocation1] ss:$4 sm:$0xff] %v2982
      %3288 = vst [vmem:[%s3271] ss:$4 sm:$0xff] %v2983
      %3289 = vst [vmem:[%s3273] ss:$4 sm:$0xff] %v2984
      %3290 = vst [vmem:[%s3275] ss:$4 sm:$0xff] %v2985
      %3291 = vst [vmem:[%s3277] ss:$4 sm:$0xff] %v2986
      %3292 = vst [vmem:[%s3279] ss:$4 sm:$0xff] %v2987
      %3293 = vst [vmem:[%s3281] ss:$4 sm:$0xff] %v2988
      %3294 = vst [vmem:[%s3283] ss:$4 sm:$0xff] %v2989
      %v3295 = vld.sshfl [vmem:[#allocation1] sm:$0xff pattern:$0x73625140]
      %v3296 = vld.sshfl [vmem:[#allocation1 + $0x20] sm:$0xff pattern:$0x73625140]
      %3297 = vst [vmem:[#allocation1] ss:$4 sm:$0xff] %v2990
      %3298 = vst [vmem:[%s3271] ss:$4 sm:$0xff] %v2991
      %3299 = vst [vmem:[%s3273] ss:$4 sm:$0xff] %v2992
      %3300 = vst [vmem:[%s3275] ss:$4 sm:$0xff] %v2993
      %3301 = vst [vmem:[%s3277] ss:$4 sm:$0xff] %v2994
      %3302 = vst [vmem:[%s3279] ss:$4 sm:$0xff] %v2995
      %3303 = vst [vmem:[%s3281] ss:$4 sm:$0xff] %v2996
      %3304 = vst [vmem:[%s3283] ss:$4 sm:$0xff] %v2997
      %v3305 = vld.sshfl [vmem:[#allocation1] sm:$0xff pattern:$0x73625140]
      %v3306 = vld.sshfl [vmem:[#allocation1 + $0x20] sm:$0xff pattern:$0x73625140]
      %3307 = vst [vmem:[#allocation1] ss:$4 sm:$0xff] %v2998
      %3308 = vst [vmem:[%s3271] ss:$4 sm:$0xff] %v2999
      %3309 = vst [vmem:[%s3273] ss:$4 sm:$0xff] %v3000
      %3310 = vst [vmem:[%s3275] ss:$4 sm:$0xff] %v3001
      %3311 = vst [vmem:[%s3277] ss:$4 sm:$0xff] %v3002
      %3312 = vst [vmem:[%s3279] ss:$4 sm:$0xff] %v3003
      %3313 = vst [vmem:[%s3281] ss:$4 sm:$0xff] %v3004
      %3314 = vst [vmem:[%s3283] ss:$4 sm:$0xff] %v3005
      %v3315 = vld.sshfl [vmem:[#allocation1] sm:$0xff pattern:$0x73625140]
      %v3316 = vld.sshfl [vmem:[#allocation1 + $0x20] sm:$0xff pattern:$0x73625140]
      %3317 = vst [vmem:[#allocation1] ss:$4 sm:$0xff] %v3006
      %3318 = vst [vmem:[%s3271] ss:$4 sm:$0xff] %v3007
      %3319 = vst [vmem:[%s3273] ss:$4 sm:$0xff] %v3008
      %3320 = vst [vmem:[%s3275] ss:$4 sm:$0xff] %v3009
      %3321 = vst [vmem:[%s3277] ss:$4 sm:$0xff] %v3010
      %3322 = vst [vmem:[%s3279] ss:$4 sm:$0xff] %v3011
      %3323 = vst [vmem:[%s3281] ss:$4 sm:$0xff] %v3012
      %3324 = vst [vmem:[%s3283] ss:$4 sm:$0xff] %v3013
      %v3325 = vld.sshfl [vmem:[#allocation1] sm:$0xff pattern:$0x73625140]
      %v3326 = vld.sshfl [vmem:[#allocation1 + $0x20] sm:$0xff pattern:$0x73625140]
      %3327 = vst [vmem:[#allocation1] ss:$4 sm:$0xff] %v3014
      %3328 = vst [vmem:[%s3271] ss:$4 sm:$0xff] %v3015
      %3329 = vst [vmem:[%s3273] ss:$4 sm:$0xff] %v3016
      %3330 = vst [vmem:[%s3275] ss:$4 sm:$0xff] %v3017
      %3331 = vst [vmem:[%s3277] ss:$4 sm:$0xff] %v3018
      %3332 = vst [vmem:[%s3279] ss:$4 sm:$0xff] %v3019
      %3333 = vst [vmem:[%s3281] ss:$4 sm:$0xff] %v3020
      %3334 = vst [vmem:[%s3283] ss:$4 sm:$0xff] %v3021
      %v3335 = vld.sshfl [vmem:[#allocation1] sm:$0xff pattern:$0x73625140]
      %v3336 = vld.sshfl [vmem:[#allocation1 + $0x20] sm:$0xff pattern:$0x73625140]
      %3337 = vst [vmem:[#allocation1] ss:$4 sm:$0xff] %v3022
      %3338 = vst [vmem:[%s3271] ss:$4 sm:$0xff] %v3023
      %3339 = vst [vmem:[%s3273] ss:$4 sm:$0xff] %v3024
      %3340 = vst [vmem:[%s3275] ss:$4 sm:$0xff] %v3025
      %3341 = vst [vmem:[%s3277] ss:$4 sm:$0xff] %v3026
      %3342 = vst [vmem:[%s3279] ss:$4 sm:$0xff] %v3027
      %3343 = vst [vmem:[%s3281] ss:$4 sm:$0xff] %v3028
      %3344 = vst [vmem:[%s3283] ss:$4 sm:$0xff] %v3029
      %v3345 = vld.sshfl [vmem:[#allocation1] sm:$0xff pattern:$0x73625140]
      %v3346 = vld.sshfl [vmem:[#allocation1 + $0x20] sm:$0xff pattern:$0x73625140]
      %3347 = vst [vmem:[#allocation1] ss:$4 sm:$0xff] %v3030
      %3348 = vst [vmem:[%s3271] ss:$4 sm:$0xff] %v3031
      %3349 = vst [vmem:[%s3273] ss:$4 sm:$0xff] %v3032
      %3350 = vst [vmem:[%s3275] ss:$4 sm:$0xff] %v3033
      %3351 = vst [vmem:[%s3277] ss:$4 sm:$0xff] %v3034
      %3352 = vst [vmem:[%s3279] ss:$4 sm:$0xff] %v3035
      %3353 = vst [vmem:[%s3281] ss:$4 sm:$0xff] %v3036
      %3354 = vst [vmem:[%s3283] ss:$4 sm:$0xff] %v3037
      %v3355 = vld.sshfl [vmem:[#allocation1] sm:$0xff pattern:$0x73625140]
      %v3356 = vld.sshfl [vmem:[#allocation1 + $0x20] sm:$0xff pattern:$0x73625140]
      %3357 = vst [vmem:[#allocation1] ss:$4 sm:$0xff] %v3038
      %3358 = vst [vmem:[%s3271] ss:$4 sm:$0xff] %v3039
      %3359 = vst [vmem:[%s3273] ss:$4 sm:$0xff] %v3040
      %3360 = vst [vmem:[%s3275] ss:$4 sm:$0xff] %v3041
      %3361 = vst [vmem:[%s3277] ss:$4 sm:$0xff] %v3042
      %3362 = vst [vmem:[%s3279] ss:$4 sm:$0xff] %v3043
      %3363 = vst [vmem:[%s3281] ss:$4 sm:$0xff] %v3044
      %3364 = vst [vmem:[%s3283] ss:$4 sm:$0xff] %v3045
      %v3365 = vld.sshfl [vmem:[#allocation1] sm:$0xff pattern:$0x73625140]
      %v3366 = vld.sshfl [vmem:[#allocation1 + $0x20] sm:$0xff pattern:$0x73625140]
      %3367 = vst [vmem:[#allocation1] ss:$4 sm:$0xff] %v3046
      %3368 = vst [vmem:[%s3271] ss:$4 sm:$0xff] %v3047
      %3369 = vst [vmem:[%s3273] ss:$4 sm:$0xff] %v3048
      %3370 = vst [vmem:[%s3275] ss:$4 sm:$0xff] %v3049
      %3371 = vst [vmem:[%s3277] ss:$4 sm:$0xff] %v3050
      %3372 = vst [vmem:[%s3279] ss:$4 sm:$0xff] %v3051
      %3373 = vst [vmem:[%s3281] ss:$4 sm:$0xff] %v3052
      %3374 = vst [vmem:[%s3283] ss:$4 sm:$0xff] %v3053
      %v3375 = vld.sshfl [vmem:[#allocation1] sm:$0xff pattern:$0x73625140]
      %v3376 = vld.sshfl [vmem:[#allocation1 + $0x20] sm:$0xff pattern:$0x73625140]
      %3377 = vst [vmem:[#allocation1] ss:$4 sm:$0xff] %v3054
      %3378 = vst [vmem:[%s3271] ss:$4 sm:$0xff] %v3055
      %3379 = vst [vmem:[%s3273] ss:$4 sm:$0xff] %v3056
      %3380 = vst [vmem:[%s3275] ss:$4 sm:$0xff] %v3057
      %3381 = vst [vmem:[%s3277] ss:$4 sm:$0xff] %v3058
      %3382 = vst [vmem:[%s3279] ss:$4 sm:$0xff] %v3059
      %3383 = vst [vmem:[%s3281] ss:$4 sm:$0xff] %v3060
      %3384 = vst [vmem:[%s3283] ss:$4 sm:$0xff] %v3061
      %v3385 = vld.sshfl [vmem:[#allocation1] sm:$0xff pattern:$0x73625140]
      %v3386 = vld.sshfl [vmem:[#allocation1 + $0x20] sm:$0xff pattern:$0x73625140]
      %3387 = vst [vmem:[#allocation1] ss:$4 sm:$0xff] %v3062
      %3388 = vst [vmem:[%s3271] ss:$4 sm:$0xff] %v3063
      %3389 = vst [vmem:[%s3273] ss:$4 sm:$0xff] %v3064
      %3390 = vst [vmem:[%s3275] ss:$4 sm:$0xff] %v3065
      %3391 = vst [vmem:[%s3277] ss:$4 sm:$0xff] %v3066
      %3392 = vst [vmem:[%s3279] ss:$4 sm:$0xff] %v3067
      %3393 = vst [vmem:[%s3281] ss:$4 sm:$0xff] %v3068
      %3394 = vst [vmem:[%s3283] ss:$4 sm:$0xff] %v3069
      %v3395 = vld.sshfl [vmem:[#allocation1] sm:$0xff pattern:$0x73625140]
      %v3396 = vld.sshfl [vmem:[#allocation1 + $0x20] sm:$0xff pattern:$0x73625140]
      %3397 = vst [vmem:[#allocation1] ss:$4 sm:$0xff] %v3070
      %3398 = vst [vmem:[%s3271] ss:$4 sm:$0xff] %v3071
      %3399 = vst [vmem:[%s3273] ss:$4 sm:$0xff] %v3072
      %3400 = vst [vmem:[%s3275] ss:$4 sm:$0xff] %v3073
      %3401 = vst [vmem:[%s3277] ss:$4 sm:$0xff] %v3074
      %3402 = vst [vmem:[%s3279] ss:$4 sm:$0xff] %v3075
      %3403 = vst [vmem:[%s3281] ss:$4 sm:$0xff] %v3076
      %3404 = vst [vmem:[%s3283] ss:$4 sm:$0xff] %v3077
      %v3405 = vld.sshfl [vmem:[#allocation1] sm:$0xff pattern:$0x73625140]
      %v3406 = vld.sshfl [vmem:[#allocation1 + $0x20] sm:$0xff pattern:$0x73625140]
      %3407 = vst [vmem:[#allocation1] ss:$4 sm:$0xff] %v3078
      %3408 = vst [vmem:[%s3271] ss:$4 sm:$0xff] %v3079
      %3409 = vst [vmem:[%s3273] ss:$4 sm:$0xff] %v3080
      %3410 = vst [vmem:[%s3275] ss:$4 sm:$0xff] %v3081
      %3411 = vst [vmem:[%s3277] ss:$4 sm:$0xff] %v3082
      %3412 = vst [vmem:[%s3279] ss:$4 sm:$0xff] %v3083
      %3413 = vst [vmem:[%s3281] ss:$4 sm:$0xff] %v3084
      %3414 = vst [vmem:[%s3283] ss:$4 sm:$0xff] %v3085
      %v3415 = vld.sshfl [vmem:[#allocation1] sm:$0xff pattern:$0x73625140]
      %v3416 = vld.sshfl [vmem:[#allocation1 + $0x20] sm:$0xff pattern:$0x73625140]
      %3417 = vst [vmem:[#allocation1] ss:$4 sm:$0xff] %v3086
      %3418 = vst [vmem:[%s3271] ss:$4 sm:$0xff] %v3087
      %3419 = vst [vmem:[%s3273] ss:$4 sm:$0xff] %v3088
      %3420 = vst [vmem:[%s3275] ss:$4 sm:$0xff] %v3089
      %3421 = vst [vmem:[%s3277] ss:$4 sm:$0xff] %v3090
      %3422 = vst [vmem:[%s3279] ss:$4 sm:$0xff] %v3091
      %3423 = vst [vmem:[%s3281] ss:$4 sm:$0xff] %v3092
      %3424 = vst [vmem:[%s3283] ss:$4 sm:$0xff] %v3093
      %v3425 = vld.sshfl [vmem:[#allocation1] sm:$0xff pattern:$0x73625140]
      %v3426 = vld.sshfl [vmem:[#allocation1 + $0x20] sm:$0xff pattern:$0x73625140]
      %3427 = vst [vmem:[#allocation1] ss:$4 sm:$0xff] %v3094
      %3428 = vst [vmem:[%s3271] ss:$4 sm:$0xff] %v3095
      %3429 = vst [vmem:[%s3273] ss:$4 sm:$0xff] %v3096
      %3430 = vst [vmem:[%s3275] ss:$4 sm:$0xff] %v3097
      %3431 = vst [vmem:[%s3277] ss:$4 sm:$0xff] %v3098
      %3432 = vst [vmem:[%s3279] ss:$4 sm:$0xff] %v3099
      %3433 = vst [vmem:[%s3281] ss:$4 sm:$0xff] %v3100
      %3434 = vst [vmem:[%s3283] ss:$4 sm:$0xff] %v3101
      %v3435 = vld.sshfl [vmem:[#allocation1] sm:$0xff pattern:$0x73625140]
      %v3436 = vld.sshfl [vmem:[#allocation1 + $0x20] sm:$0xff pattern:$0x73625140]
      %3437 = vst [vmem:[#allocation1] ss:$4 sm:$0xff] %v3102
      %3438 = vst [vmem:[%s3271] ss:$4 sm:$0xff] %v3103
      %3439 = vst [vmem:[%s3273] ss:$4 sm:$0xff] %v3104
      %3440 = vst [vmem:[%s3275] ss:$4 sm:$0xff] %v3105
      %3441 = vst [vmem:[%s3277] ss:$4 sm:$0xff] %v3106
      %3442 = vst [vmem:[%s3279] ss:$4 sm:$0xff] %v3107
      %3443 = vst [vmem:[%s3281] ss:$4 sm:$0xff] %v3108
      %3444 = vst [vmem:[%s3283] ss:$4 sm:$0xff] %v3109
      %v3445 = vld.sshfl [vmem:[#allocation1] sm:$0xff pattern:$0x73625140]
      %v3446 = vld.sshfl [vmem:[#allocation1 + $0x20] sm:$0xff pattern:$0x73625140]
      %3447 = vst [vmem:[#allocation1] ss:$4 sm:$0xff] %v3094
      %3448 = vst [vmem:[%s3271] ss:$4 sm:$0xff] %v3095
      %3449 = vst [vmem:[%s3273] ss:$4 sm:$0xff] %v3096
      %3450 = vst [vmem:[%s3275] ss:$4 sm:$0xff] %v3097
      %3451 = vst [vmem:[%s3277] ss:$4 sm:$0xff] %v3098
      %3452 = vst [vmem:[%s3279] ss:$4 sm:$0xff] %v3099
      %3453 = vst [vmem:[%s3281] ss:$4 sm:$0xff] %v3100
      %3454 = vst [vmem:[%s3283] ss:$4 sm:$0xff] %v3101
      %v3455 = vld.sshfl [vmem:[#allocation1] sm:$0xff pattern:$0x73625140]
      %v3456 = vld.sshfl [vmem:[#allocation1 + $0x20] sm:$0xff pattern:$0x73625140]
      %v3457 = vrot.slane %v3285, 7
      %v3458 = vrot.slane %v3286, 7
      %v3459 = vsel %vm902, %v3457, %v3458
      %v3460 = vrot.slane %v3295, 7
      %v3461 = vrot.slane %v3296, 7
      %v3462 = vsel %vm902, %v3460, %v3461
      %v3463 = vrot.slane %v3305, 7
      %v3464 = vrot.slane %v3306, 7
      %v3465 = vsel %vm902, %v3463, %v3464
      %v3466 = vrot.slane %v3315, 7
      %v3467 = vrot.slane %v3316, 7
      %v3468 = vsel %vm902, %v3466, %v3467
      %v3469 = vrot.slane %v3325, 7
      %v3470 = vrot.slane %v3326, 7
      %v3471 = vsel %vm902, %v3469, %v3470
      %v3472 = vrot.slane %v3335, 7
      %v3473 = vrot.slane %v3336, 7
      %v3474 = vsel %vm902, %v3472, %v3473
      %v3475 = vrot.slane %v3345, 7
      %v3476 = vrot.slane %v3346, 7
      %v3477 = vsel %vm902, %v3475, %v3476
      %v3478 = vrot.slane %v3355, 7
      %v3479 = vrot.slane %v3356, 7
      %v3480 = vsel %vm902, %v3478, %v3479
      %v3481 = vrot.slane %v3365, 7
      %v3482 = vrot.slane %v3366, 7
      %v3483 = vsel %vm902, %v3481, %v3482
      %v3484 = vrot.slane %v3375, 7
      %v3485 = vrot.slane %v3376, 7
      %v3486 = vsel %vm902, %v3484, %v3485
      %v3487 = vrot.slane %v3385, 7
      %v3488 = vrot.slane %v3386, 7
      %v3489 = vsel %vm902, %v3487, %v3488
      %v3490 = vrot.slane %v3395, 7
      %v3491 = vrot.slane %v3396, 7
      %v3492 = vsel %vm902, %v3490, %v3491
      %v3493 = vrot.slane %v3405, 7
      %v3494 = vrot.slane %v3406, 7
      %v3495 = vsel %vm902, %v3493, %v3494
      %v3496 = vrot.slane %v3415, 7
      %v3497 = vrot.slane %v3416, 7
      %v3498 = vsel %vm902, %v3496, %v3497
      %v3499 = vrot.slane %v3425, 7
      %v3500 = vrot.slane %v3426, 7
      %v3501 = vsel %vm902, %v3499, %v3500
      %v3502 = vrot.slane %v3435, 7
      %v3503 = vrot.slane %v3436, 7
      %v3504 = vsel %vm902, %v3502, %v3503
      %v3505 = vrot.slane %v3445, 7
      %v3506 = vrot.slane %v3446, 7
      %v3507 = vsel %vm902, %v3505, %v3506
      %v3508 = vrot.slane %v3455, 7
      %v3509 = vrot.slane %v3456, 7
      %v3510 = vsel %vm902, %v3508, %v3509
      %v3565 = vperm.slane %v2997, 0
      %v3566 = vperm.slane %v2989, 0
      %v3567 = vperm.slane %v3005, 0
      %v3568 = vperm.slane %v3013, 0
      %v3569 = vperm.slane %v3021, 0
      %v3570 = vperm.slane %v3029, 0
      %v3571 = vperm.slane %v3037, 0
      %v3572 = vperm.slane %v3045, 0
      %v3573 = vperm.slane %v3053, 0
      %v3574 = vperm.slane %v3061, 0
      %v3575 = vperm.slane %v3069, 0
      %v3576 = vperm.slane %v3077, 0
      %v3577 = vperm.slane %v3085, 0
      %v3578 = vperm.slane %v3093, 0
      %v3579 = vperm.slane %v3101, 0
      %v3580 = vperm.slane %v3109, 0
      %v3597 = vsel %vm902, %v3126, %v3457
      %v3598 = vsel %vm902, %v3127, %v3460
      %v3599 = vsel %vm902, %v3126, %v3463
      %v3600 = vsel %vm902, %v3128, %v3466
      %v3601 = vsel %vm902, %v3129, %v3469
      %v3602 = vsel %vm902, %v3130, %v3472
      %v3603 = vsel %vm902, %v3131, %v3475
      %v3604 = vsel %vm902, %v3132, %v3478
      %v3605 = vsel %vm902, %v3133, %v3481
      %v3606 = vsel %vm902, %v3134, %v3484
      %v3607 = vsel %vm902, %v3135, %v3487
      %v3608 = vsel %vm902, %v3136, %v3490
      %v3609 = vsel %vm902, %v3137, %v3493
      %v3610 = vsel %vm902, %v3138, %v3496
      %v3611 = vsel %vm902, %v3139, %v3499
      %v3612 = vsel %vm902, %v3140, %v3502
      %v3613 = vsel %vm902, %v3141, %v3505
      %v3614 = vsel %vm902, %v3140, %v3508
      %v3615 = vsel %vm902, %v3458, %v3565
      %v3616 = vsel %vm902, %v3461, %v3566
      %v3617 = vsel %vm902, %v3464, %v3565
      %v3618 = vsel %vm902, %v3467, %v3567
      %v3619 = vsel %vm902, %v3470, %v3568
      %v3620 = vsel %vm902, %v3473, %v3569
      %v3621 = vsel %vm902, %v3476, %v3570
      %v3622 = vsel %vm902, %v3479, %v3571
      %v3623 = vsel %vm902, %v3482, %v3572
      %v3624 = vsel %vm902, %v3485, %v3573
      %v3625 = vsel %vm902, %v3488, %v3574
      %v3626 = vsel %vm902, %v3491, %v3575
      %v3627 = vsel %vm902, %v3494, %v3576
      %v3628 = vsel %vm902, %v3497, %v3577
      %v3629 = vsel %vm902, %v3500, %v3578
      %v3630 = vsel %vm902, %v3503, %v3579
      %v3631 = vsel %vm902, %v3506, %v3580
      %v3632 = vsel %vm902, %v3509, %v3579
      %v3665 = vrot.slane %v3597, 1
      %v3666 = vrot.slane %v3459, 1
      %v3667 = vsel %vm914, %v3665, %v3666
      %v3668 = vrot.slane %v3615, 1
      %v3669 = vsel %vm914, %v3666, %v3668
      %v3670 = vrot.slane %v3598, 1
      %v3671 = vrot.slane %v3462, 1
      %v3672 = vsel %vm914, %v3670, %v3671
      %v3673 = vrot.slane %v3616, 1
      %v3674 = vsel %vm914, %v3671, %v3673
      %v3675 = vrot.slane %v3599, 1
      %v3676 = vrot.slane %v3465, 1
      %v3677 = vsel %vm914, %v3675, %v3676
      %v3678 = vrot.slane %v3617, 1
      %v3679 = vsel %vm914, %v3676, %v3678
      %v3680 = vrot.slane %v3600, 1
      %v3681 = vrot.slane %v3468, 1
      %v3682 = vsel %vm914, %v3680, %v3681
      %v3683 = vrot.slane %v3618, 1
      %v3684 = vsel %vm914, %v3681, %v3683
      %v3685 = vrot.slane %v3601, 1
      %v3686 = vrot.slane %v3471, 1
      %v3687 = vsel %vm914, %v3685, %v3686
      %v3688 = vrot.slane %v3619, 1
      %v3689 = vsel %vm914, %v3686, %v3688
      %v3690 = vrot.slane %v3602, 1
      %v3691 = vrot.slane %v3474, 1
      %v3692 = vsel %vm914, %v3690, %v3691
      %v3693 = vrot.slane %v3620, 1
      %v3694 = vsel %vm914, %v3691, %v3693
      %v3695 = vrot.slane %v3603, 1
      %v3696 = vrot.slane %v3477, 1
      %v3697 = vsel %vm914, %v3695, %v3696
      %v3698 = vrot.slane %v3621, 1
      %v3699 = vsel %vm914, %v3696, %v3698
      %v3700 = vrot.slane %v3604, 1
      %v3701 = vrot.slane %v3480, 1
      %v3702 = vsel %vm914, %v3700, %v3701
      %v3703 = vrot.slane %v3622, 1
      %v3704 = vsel %vm914, %v3701, %v3703
      %v3705 = vrot.slane %v3605, 1
      %v3706 = vrot.slane %v3483, 1
      %v3707 = vsel %vm914, %v3705, %v3706
      %v3708 = vrot.slane %v3623, 1
      %v3709 = vsel %vm914, %v3706, %v3708
      %v3710 = vrot.slane %v3606, 1
      %v3711 = vrot.slane %v3486, 1
      %v3712 = vsel %vm914, %v3710, %v3711
      %v3713 = vrot.slane %v3624, 1
      %v3714 = vsel %vm914, %v3711, %v3713
      %v3715 = vrot.slane %v3607, 1
      %v3716 = vrot.slane %v3489, 1
      %v3717 = vsel %vm914, %v3715, %v3716
      %v3718 = vrot.slane %v3625, 1
      %v3719 = vsel %vm914, %v3716, %v3718
      %v3720 = vrot.slane %v3608, 1
      %v3721 = vrot.slane %v3492, 1
      %v3722 = vsel %vm914, %v3720, %v3721
      %v3723 = vrot.slane %v3626, 1
      %v3724 = vsel %vm914, %v3721, %v3723
      %v3725 = vrot.slane %v3609, 1
      %v3726 = vrot.slane %v3495, 1
      %v3727 = vsel %vm914, %v3725, %v3726
      %v3728 = vrot.slane %v3627, 1
      %v3729 = vsel %vm914, %v3726, %v3728
      %v3730 = vrot.slane %v3610, 1
      %v3731 = vrot.slane %v3498, 1
      %v3732 = vsel %vm914, %v3730, %v3731
      %v3733 = vrot.slane %v3628, 1
      %v3734 = vsel %vm914, %v3731, %v3733
      %v3735 = vrot.slane %v3611, 1
      %v3736 = vrot.slane %v3501, 1
      %v3737 = vsel %vm914, %v3735, %v3736
      %v3738 = vrot.slane %v3629, 1
      %v3739 = vsel %vm914, %v3736, %v3738
      %v3740 = vrot.slane %v3612, 1
      %v3741 = vrot.slane %v3504, 1
      %v3742 = vsel %vm914, %v3740, %v3741
      %v3743 = vrot.slane %v3630, 1
      %v3744 = vsel %vm914, %v3741, %v3743
      %3745 = vrot.lane.b32.xlu0 %v3667, 64
      %v3746 = vpop.permute.xlu0 %3745
      %3747 = vrot.lane.b32.xlu0 %v3669, 64
      %v3748 = vpop.permute.xlu0 %3747
      %3749 = vrot.lane.b32.xlu0 %v3672, 64
      %v3750 = vpop.permute.xlu0 %3749
      %3751 = vrot.lane.b32.xlu0 %v3674, 64
      %v3752 = vpop.permute.xlu0 %3751
      %3753 = vrot.lane.b32.xlu0 %v3677, 64
      %v3754 = vpop.permute.xlu0 %3753
      %3755 = vrot.lane.b32.xlu0 %v3679, 64
      %v3756 = vpop.permute.xlu0 %3755
      %3757 = vrot.lane.b32.xlu0 %v3682, 64
      %v3758 = vpop.permute.xlu0 %3757
      %3759 = vrot.lane.b32.xlu0 %v3684, 64
      %v3760 = vpop.permute.xlu0 %3759
      %3761 = vrot.lane.b32.xlu0 %v3687, 64
      %v3762 = vpop.permute.xlu0 %3761
      %3763 = vrot.lane.b32.xlu0 %v3689, 64
      %v3764 = vpop.permute.xlu0 %3763
      %3765 = vrot.lane.b32.xlu0 %v3692, 64
      %v3766 = vpop.permute.xlu0 %3765
      %3767 = vrot.lane.b32.xlu0 %v3694, 64
      %v3768 = vpop.permute.xlu0 %3767
      %3769 = vrot.lane.b32.xlu0 %v3697, 64
      %v3770 = vpop.permute.xlu0 %3769
      %3771 = vrot.lane.b32.xlu0 %v3699, 64
      %v3772 = vpop.permute.xlu0 %3771
      %3773 = vrot.lane.b32.xlu0 %v3702, 64
      %v3774 = vpop.permute.xlu0 %3773
      %3775 = vrot.lane.b32.xlu0 %v3704, 64
      %v3776 = vpop.permute.xlu0 %3775
      %3777 = vrot.lane.b32.xlu0 %v3707, 64
      %v3778 = vpop.permute.xlu0 %3777
      %3779 = vrot.lane.b32.xlu0 %v3709, 64
      %v3780 = vpop.permute.xlu0 %3779
      %3781 = vrot.lane.b32.xlu0 %v3712, 64
      %v3782 = vpop.permute.xlu0 %3781
      %3783 = vrot.lane.b32.xlu0 %v3714, 64
      %v3784 = vpop.permute.xlu0 %3783
      %3785 = vrot.lane.b32.xlu0 %v3717, 64
      %v3786 = vpop.permute.xlu0 %3785
      %3787 = vrot.lane.b32.xlu0 %v3719, 64
      %v3788 = vpop.permute.xlu0 %3787
      %3789 = vrot.lane.b32.xlu0 %v3722, 64
      %v3790 = vpop.permute.xlu0 %3789
      %3791 = vrot.lane.b32.xlu0 %v3724, 64
      %v3792 = vpop.permute.xlu0 %3791
      %3793 = vrot.lane.b32.xlu0 %v3727, 64
      %v3794 = vpop.permute.xlu0 %3793
      %3795 = vrot.lane.b32.xlu0 %v3729, 64
      %v3796 = vpop.permute.xlu0 %3795
      %3797 = vrot.lane.b32.xlu0 %v3732, 64
      %v3798 = vpop.permute.xlu0 %3797
      %3799 = vrot.lane.b32.xlu0 %v3734, 64
      %v3800 = vpop.permute.xlu0 %3799
      %3801 = vrot.lane.b32.xlu0 %v3737, 64
      %v3802 = vpop.permute.xlu0 %3801
      %3803 = vrot.lane.b32.xlu0 %v3739, 64
      %v3804 = vpop.permute.xlu0 %3803
      %3805 = vrot.lane.b32.xlu0 %v3742, 64
      %v3806 = vpop.permute.xlu0 %3805
      %3807 = vrot.lane.b32.xlu0 %v3744, 64
      %v3808 = vpop.permute.xlu0 %3807
      %v3841 = vrot.slane %v3597, 2
      %v3842 = vrot.slane %v3459, 2
      %v3843 = vsel %vm912, %v3841, %v3842
      %v3844 = vrot.slane %v3615, 2
      %v3845 = vsel %vm912, %v3842, %v3844
      %v3846 = vrot.slane %v3598, 2
      %v3847 = vrot.slane %v3462, 2
      %v3848 = vsel %vm912, %v3846, %v3847
      %v3849 = vrot.slane %v3616, 2
      %v3850 = vsel %vm912, %v3847, %v3849
      %v3851 = vrot.slane %v3599, 2
      %v3852 = vrot.slane %v3465, 2
      %v3853 = vsel %vm912, %v3851, %v3852
      %v3854 = vrot.slane %v3617, 2
      %v3855 = vsel %vm912, %v3852, %v3854
      %v3856 = vrot.slane %v3600, 2
      %v3857 = vrot.slane %v3468, 2
      %v3858 = vsel %vm912, %v3856, %v3857
      %v3859 = vrot.slane %v3618, 2
      %v3860 = vsel %vm912, %v3857, %v3859
      %v3861 = vrot.slane %v3601, 2
      %v3862 = vrot.slane %v3471, 2
      %v3863 = vsel %vm912, %v3861, %v3862
      %v3864 = vrot.slane %v3619, 2
      %v3865 = vsel %vm912, %v3862, %v3864
      %v3866 = vrot.slane %v3602, 2
      %v3867 = vrot.slane %v3474, 2
      %v3868 = vsel %vm912, %v3866, %v3867
      %v3869 = vrot.slane %v3620, 2
      %v3870 = vsel %vm912, %v3867, %v3869
      %v3871 = vrot.slane %v3603, 2
      %v3872 = vrot.slane %v3477, 2
      %v3873 = vsel %vm912, %v3871, %v3872
      %v3874 = vrot.slane %v3621, 2
      %v3875 = vsel %vm912, %v3872, %v3874
      %v3876 = vrot.slane %v3604, 2
      %v3877 = vrot.slane %v3480, 2
      %v3878 = vsel %vm912, %v3876, %v3877
      %v3879 = vrot.slane %v3622, 2
      %v3880 = vsel %vm912, %v3877, %v3879
      %v3881 = vrot.slane %v3605, 2
      %v3882 = vrot.slane %v3483, 2
      %v3883 = vsel %vm912, %v3881, %v3882
      %v3884 = vrot.slane %v3623, 2
      %v3885 = vsel %vm912, %v3882, %v3884
      %v3886 = vrot.slane %v3606, 2
      %v3887 = vrot.slane %v3486, 2
      %v3888 = vsel %vm912, %v3886, %v3887
      %v3889 = vrot.slane %v3624, 2
      %v3890 = vsel %vm912, %v3887, %v3889
      %v3891 = vrot.slane %v3607, 2
      %v3892 = vrot.slane %v3489, 2
      %v3893 = vsel %vm912, %v3891, %v3892
      %v3894 = vrot.slane %v3625, 2
      %v3895 = vsel %vm912, %v3892, %v3894
      %v3896 = vrot.slane %v3608, 2
      %v3897 = vrot.slane %v3492, 2
      %v3898 = vsel %vm912, %v3896, %v3897
      %v3899 = vrot.slane %v3626, 2
      %v3900 = vsel %vm912, %v3897, %v3899
      %v3901 = vrot.slane %v3609, 2
      %v3902 = vrot.slane %v3495, 2
      %v3903 = vsel %vm912, %v3901, %v3902
      %v3904 = vrot.slane %v3627, 2
      %v3905 = vsel %vm912, %v3902, %v3904
      %v3906 = vrot.slane %v3610, 2
      %v3907 = vrot.slane %v3498, 2
      %v3908 = vsel %vm912, %v3906, %v3907
      %v3909 = vrot.slane %v3628, 2
      %v3910 = vsel %vm912, %v3907, %v3909
      %v3911 = vrot.slane %v3611, 2
      %v3912 = vrot.slane %v3501, 2
      %v3913 = vsel %vm912, %v3911, %v3912
      %v3914 = vrot.slane %v3629, 2
      %v3915 = vsel %vm912, %v3912, %v3914
      %v3916 = vrot.slane %v3612, 2
      %v3917 = vrot.slane %v3504, 2
      %v3918 = vsel %vm912, %v3916, %v3917
      %v3919 = vrot.slane %v3630, 2
      %v3920 = vsel %vm912, %v3917, %v3919
      %vm3921 = vcmask 523264
      %v3922 = vsel %vm3921, %v3597, %v3746
      %v3923 = vsel %vm3921, %v3459, %v3748
      %v3924 = vsel %vm3921, %v3598, %v3750
      %v3925 = vsel %vm3921, %v3462, %v3752
      %v3926 = vsel %vm3921, %v3599, %v3754
      %v3927 = vsel %vm3921, %v3465, %v3756
      %v3928 = vsel %vm3921, %v3600, %v3758
      %v3929 = vsel %vm3921, %v3468, %v3760
      %v3930 = vsel %vm3921, %v3601, %v3762
      %v3931 = vsel %vm3921, %v3471, %v3764
      %v3932 = vsel %vm3921, %v3602, %v3766
      %v3933 = vsel %vm3921, %v3474, %v3768
      %v3934 = vsel %vm3921, %v3603, %v3770
      %v3935 = vsel %vm3921, %v3477, %v3772
      %v3936 = vsel %vm3921, %v3604, %v3774
      %v3937 = vsel %vm3921, %v3480, %v3776
      %v3938 = vsel %vm3921, %v3605, %v3778
      %v3939 = vsel %vm3921, %v3483, %v3780
      %v3940 = vsel %vm3921, %v3606, %v3782
      %v3941 = vsel %vm3921, %v3486, %v3784
      %v3942 = vsel %vm3921, %v3607, %v3786
      %v3943 = vsel %vm3921, %v3489, %v3788
      %v3944 = vsel %vm3921, %v3608, %v3790
      %v3945 = vsel %vm3921, %v3492, %v3792
      %v3946 = vsel %vm3921, %v3609, %v3794
      %v3947 = vsel %vm3921, %v3495, %v3796
      %v3948 = vsel %vm3921, %v3610, %v3798
      %v3949 = vsel %vm3921, %v3498, %v3800
      %v3950 = vsel %vm3921, %v3611, %v3802
      %v3951 = vsel %vm3921, %v3501, %v3804
      %v3952 = vsel %vm3921, %v3612, %v3806
      %v3953 = vsel %vm3921, %v3504, %v3808
      %v3954 = vld [vmem:[%s7] sm:$0xff]
      %v3955 = vld [vmem:[%s7 + $0x8] sm:$0xff]
      %v3956 = vld [vmem:[%s7 + $0x10] sm:$0xff]
      %v3957 = vld [vmem:[%s7 + $0x18] sm:$0xff]
      %v3958 = vld [vmem:[%s7 + $0x20] sm:$0xff]
      %v3959 = vld [vmem:[%s7 + $0x28] sm:$0xff]
      %v3960 = vld [vmem:[%s7 + $0x30] sm:$0xff]
      %v3961 = vld [vmem:[%s7 + $0x38] sm:$0xff]
      %v3962 = vld [vmem:[%s7 + $0x40] sm:$0xff]
      %v3963 = vld [vmem:[%s7 + $0x48] sm:$0xff]
      %v3964 = vld [vmem:[%s7 + $0x50] sm:$0xff]
      %v3965 = vld [vmem:[%s7 + $0x58] sm:$0xff]
      %v3966 = vld [vmem:[%s7 + $0x60] sm:$0xff]
      %v3967 = vld [vmem:[%s7 + $0x68] sm:$0xff]
      %v3968 = vld [vmem:[%s7 + $0x70] sm:$0xff]
      %v3969 = vld [vmem:[%s7 + $0x78] sm:$0xff]
      %v3970 = vld [vmem:[%s7 + $0x80] sm:$0xff]
      %v3971 = vld [vmem:[%s7 + $0x88] sm:$0xff]
      %v3972 = vld [vmem:[%s7 + $0x90] sm:$0xff]
      %v3973 = vld [vmem:[%s7 + $0x98] sm:$0xff]
      %v3974 = vld [vmem:[%s7 + $0xa0] sm:$0xff]
      %v3975 = vld [vmem:[%s7 + $0xa8] sm:$0xff]
      %v3976 = vld [vmem:[%s7 + $0xb0] sm:$0xff]
      %v3977 = vld [vmem:[%s7 + $0xb8] sm:$0xff]
      %v3980 = vrot.slane %v3613, 1
      %v3981 = vrot.slane %v3507, 1
      %v3982 = vsel %vm914, %v3980, %v3981
      %v3983 = vrot.slane %v3631, 1
      %v3984 = vsel %vm914, %v3981, %v3983
      %3985 = vrot.lane.b32.xlu0 %v3982, 64
      %v3986 = vpop.permute.xlu0 %3985
      %3987 = vrot.lane.b32.xlu0 %v3984, 64
      %v3988 = vpop.permute.xlu0 %3987
      %v3991 = vrot.slane %v3613, 2
      %v3992 = vrot.slane %v3507, 2
      %v3993 = vsel %vm912, %v3991, %v3992
      %v3994 = vrot.slane %v3631, 2
      %v3995 = vsel %vm912, %v3992, %v3994
      %v3996 = vsel %vm3921, %v3613, %v3986
      %v3997 = vsel %vm3921, %v3507, %v3988
      %s3998 = scalar_lea.vmem %s7, 192
      %v3999 = vld [vmem:[%s3998] sm:$0xff]
      %v4000 = vld [vmem:[%s3998 + $0x8] sm:$0xff]
      %v4001 = vld [vmem:[%s3998 + $0x10] sm:$0xff]
      %v4002 = vld [vmem:[%s3998 + $0x18] sm:$0xff]
      %v4003 = vld [vmem:[%s3998 + $0x20] sm:$0xff]
      %v4004 = vld [vmem:[%s3998 + $0x28] sm:$0xff]
      %v4005 = vld [vmem:[%s3998 + $0x30] sm:$0xff]
      %v4006 = vld [vmem:[%s3998 + $0x38] sm:$0xff]
      %v4007 = vld [vmem:[%s3998 + $0x40] sm:$0xff]
      %v4008 = vld [vmem:[%s3998 + $0x48] sm:$0xff]
      %v4009 = vld [vmem:[%s3998 + $0x50] sm:$0xff]
      %v4010 = vld [vmem:[%s3998 + $0x58] sm:$0xff]
      %v4011 = vld [vmem:[%s3998 + $0x60] sm:$0xff]
      %v4012 = vld [vmem:[%s3998 + $0x68] sm:$0xff]
      %v4013 = vld [vmem:[%s3998 + $0x70] sm:$0xff]
      %v4014 = vld [vmem:[%s3998 + $0x78] sm:$0xff]
      %v4015 = vld [vmem:[%s3998 + $0x80] sm:$0xff]
      %v4016 = vld [vmem:[%s3998 + $0x88] sm:$0xff]
      %v4017 = vld [vmem:[%s3998 + $0x90] sm:$0xff]
      %v4018 = vld [vmem:[%s3998 + $0x98] sm:$0xff]
      %v4019 = vld [vmem:[%s3998 + $0xa0] sm:$0xff]
      %v4020 = vld [vmem:[%s3998 + $0xa8] sm:$0xff]
      %v4021 = vld [vmem:[%s3998 + $0xb0] sm:$0xff]
      %v4022 = vld [vmem:[%s3998 + $0xb8] sm:$0xff]
      %v4023 = vsel %vm3921, %v3848, 0
      %v4025 = vsel %vm3921, %v3850, 0
      %v4027 = vsel %vm3921, %v3853, 0
      %v4029 = vsel %vm3921, %v3855, 0
      %v4031 = vsel %vm3921, %v3858, 0
      %v4033 = vsel %vm3921, %v3860, 0
      %v4035 = vsel %vm3921, %v3863, 0
      %v4037 = vsel %vm3921, %v3865, 0
      %v4039 = vsel %vm3921, %v3868, 0
      %v4041 = vsel %vm3921, %v3870, 0
      %v4043 = vsel %vm3921, %v3873, 0
      %v4045 = vsel %vm3921, %v3875, 0
      %v4047 = vsel %vm3921, %v3878, 0
      %v4049 = vsel %vm3921, %v3880, 0
      %v4051 = vsel %vm3921, %v3883, 0
      %v4053 = vsel %vm3921, %v3885, 0
      %v4055 = vsel %vm3921, %v3888, 0
      %v4057 = vsel %vm3921, %v3890, 0
      %v4059 = vsel %vm3921, %v3893, 0
      %v4061 = vsel %vm3921, %v3895, 0
      %v4063 = vsel %vm3921, %v3898, 0
      %v4065 = vsel %vm3921, %v3900, 0
      %v4067 = vsel %vm3921, %v3903, 0
      %v4069 = vsel %vm3921, %v3905, 0
      %v4071 = vsel %vm3921, %v3908, 0
      %v4073 = vsel %vm3921, %v3910, 0
      %v4075 = vsel %vm3921, %v3913, 0
      %v4077 = vsel %vm3921, %v3915, 0
      %v4079 = vsel %vm3921, %v3918, 0
      %v4081 = vsel %vm3921, %v3920, 0
      %v4083 = vsel %vm3921, %v3993, 0
      %v4085 = vsel %vm3921, %v3995, 0
      %4087 = vmatpush.msra.mxu0 %v4014
      %4088 = vmatpush.msra.mxu0 %v4013
      %4089 = vmatpush.msra.mxu0 %v4012
      %4090 = vmatpush.msra.mxu0 %v4011
      %4091 = vmatpush.msra.mxu0 %v4010
      %4092 = vmatpush.msra.mxu0 %v4009
      %4093 = vmatpush.msra.mxu0 %v4008
      %4094 = vmatpush.msra.mxu0 %v4007
      %4095 = vmatpush.msra.mxu0 %v4006
      %4096 = vmatpush.msra.mxu0 %v4005
      %4097 = vmatpush.msra.mxu0 %v4004
      %4098 = vmatpush.msra.mxu0 %v4003
      %4099 = vmatpush.msra.mxu0 %v4002
      %4100 = vmatpush.msra.mxu0 %v4001
      %4101 = vmatpush.msra.mxu0 %v4000
      %4102 = vmatpush.msra.mxu0 %v3999
      %4103 = vmatmul.f32.gmra.mxu0 %v3924
      %v4104 = vpop.f32.mrf.mxu0
      %v4105 = vadd.f32 0.0, %v4104
      %4106 = vmatmul.f32.gmra.mxu0 %v3925
      %v4107 = vpop.f32.mrf.mxu0
      %v4108 = vadd.f32 0.0, %v4107
      %4109 = vmatmul.f32.gmra.mxu0 %v3926
      %v4110 = vpop.f32.mrf.mxu0
      %v4111 = vadd.f32 0.0, %v4110
      %4112 = vmatmul.f32.gmra.mxu0 %v3927
      %v4113 = vpop.f32.mrf.mxu0
      %v4114 = vadd.f32 0.0, %v4113
      %4115 = vmatmul.f32.gmra.mxu0 %v3928
      %v4116 = vpop.f32.mrf.mxu0
      %v4117 = vadd.f32 0.0, %v4116
      %4118 = vmatmul.f32.gmra.mxu0 %v3929
      %v4119 = vpop.f32.mrf.mxu0
      %v4120 = vadd.f32 0.0, %v4119
      %4121 = vmatmul.f32.gmra.mxu0 %v3930
      %v4122 = vpop.f32.mrf.mxu0
      %v4123 = vadd.f32 0.0, %v4122
      %4124 = vmatmul.f32.gmra.mxu0 %v3931
      %v4125 = vpop.f32.mrf.mxu0
      %v4126 = vadd.f32 0.0, %v4125
      %4127 = vmatmul.f32.gmra.mxu0 %v3932
      %v4128 = vpop.f32.mrf.mxu0
      %v4129 = vadd.f32 0.0, %v4128
      %4130 = vmatmul.f32.gmra.mxu0 %v3933
      %v4131 = vpop.f32.mrf.mxu0
      %v4132 = vadd.f32 0.0, %v4131
      %4133 = vmatmul.f32.gmra.mxu0 %v3934
      %v4134 = vpop.f32.mrf.mxu0
      %v4135 = vadd.f32 0.0, %v4134
      %4136 = vmatmul.f32.gmra.mxu0 %v3935
      %v4137 = vpop.f32.mrf.mxu0
      %v4138 = vadd.f32 0.0, %v4137
      %4139 = vmatmul.f32.gmra.mxu0 %v3936
      %v4140 = vpop.f32.mrf.mxu0
      %v4141 = vadd.f32 0.0, %v4140
      %4142 = vmatmul.f32.gmra.mxu0 %v3937
      %v4143 = vpop.f32.mrf.mxu0
      %v4144 = vadd.f32 0.0, %v4143
      %4145 = vmatmul.f32.gmra.mxu0 %v3938
      %v4146 = vpop.f32.mrf.mxu0
      %v4147 = vadd.f32 0.0, %v4146
      %4148 = vmatmul.f32.gmra.mxu0 %v3939
      %v4149 = vpop.f32.mrf.mxu0
      %v4150 = vadd.f32 0.0, %v4149
      %4151 = vmatmul.f32.gmra.mxu0 %v3940
      %v4152 = vpop.f32.mrf.mxu0
      %v4153 = vadd.f32 0.0, %v4152
      %4154 = vmatmul.f32.gmra.mxu0 %v3941
      %v4155 = vpop.f32.mrf.mxu0
      %v4156 = vadd.f32 0.0, %v4155
      %4157 = vmatmul.f32.gmra.mxu0 %v3942
      %v4158 = vpop.f32.mrf.mxu0
      %v4159 = vadd.f32 0.0, %v4158
      %4160 = vmatmul.f32.gmra.mxu0 %v3943
      %v4161 = vpop.f32.mrf.mxu0
      %v4162 = vadd.f32 0.0, %v4161
      %4163 = vmatmul.f32.gmra.mxu0 %v3944
      %v4164 = vpop.f32.mrf.mxu0
      %v4165 = vadd.f32 0.0, %v4164
      %4166 = vmatmul.f32.gmra.mxu0 %v3945
      %v4167 = vpop.f32.mrf.mxu0
      %v4168 = vadd.f32 0.0, %v4167
      %4169 = vmatmul.f32.gmra.mxu0 %v3946
      %v4170 = vpop.f32.mrf.mxu0
      %v4171 = vadd.f32 0.0, %v4170
      %4172 = vmatmul.f32.gmra.mxu0 %v3947
      %v4173 = vpop.f32.mrf.mxu0
      %v4174 = vadd.f32 0.0, %v4173
      %4175 = vmatmul.f32.gmra.mxu0 %v3948
      %v4176 = vpop.f32.mrf.mxu0
      %v4177 = vadd.f32 0.0, %v4176
      %4178 = vmatmul.f32.gmra.mxu0 %v3949
      %v4179 = vpop.f32.mrf.mxu0
      %v4180 = vadd.f32 0.0, %v4179
      %4181 = vmatmul.f32.gmra.mxu0 %v3950
      %v4182 = vpop.f32.mrf.mxu0
      %v4183 = vadd.f32 0.0, %v4182
      %4184 = vmatmul.f32.gmra.mxu0 %v3951
      %v4185 = vpop.f32.mrf.mxu0
      %v4186 = vadd.f32 0.0, %v4185
      %4187 = vmatmul.f32.gmra.mxu0 %v3952
      %v4188 = vpop.f32.mrf.mxu0
      %v4189 = vadd.f32 0.0, %v4188
      %4190 = vmatmul.f32.gmra.mxu0 %v3953
      %v4191 = vpop.f32.mrf.mxu0
      %v4192 = vadd.f32 0.0, %v4191
      %4193 = vmatmul.f32.gmra.mxu0 %v3996
      %v4194 = vpop.f32.mrf.mxu0
      %v4195 = vadd.f32 0.0, %v4194
      %4196 = vmatmul.f32.gmra.mxu0 %v3997
      %v4197 = vpop.f32.mrf.mxu0
      %v4198 = vadd.f32 0.0, %v4197
      %4199 = vdwg.mxu0
      %4200 = vmatpush.msra.mxu0 0.0
      %4201 = vmatpush.msra.mxu0 0.0
      %4202 = vmatpush.msra.mxu0 0.0
      %4203 = vmatpush.msra.mxu0 0.0
      %4204 = vmatpush.msra.mxu0 0.0
      %4205 = vmatpush.msra.mxu0 0.0
      %4206 = vmatpush.msra.mxu0 0.0
      %4207 = vmatpush.msra.mxu0 0.0
      %4208 = vmatpush.msra.mxu0 %v4022
      %4209 = vmatpush.msra.mxu0 %v4021
      %4210 = vmatpush.msra.mxu0 %v4020
      %4211 = vmatpush.msra.mxu0 %v4019
      %4212 = vmatpush.msra.mxu0 %v4018
      %4213 = vmatpush.msra.mxu0 %v4017
      %4214 = vmatpush.msra.mxu0 %v4016
      %4215 = vmatpush.msra.mxu0 %v4015
      %4216 = vmatmul.f32.gmra.mxu0 %v4023
      %v4217 = vpop.f32.mrf.mxu0
      %v4218 = vadd.f32 %v4105, %v4217
      %4219 = vmatmul.f32.gmra.mxu0 %v4025
      %v4220 = vpop.f32.mrf.mxu0
      %v4221 = vadd.f32 %v4108, %v4220
      %4222 = vmatmul.f32.gmra.mxu0 %v4027
      %v4223 = vpop.f32.mrf.mxu0
      %v4224 = vadd.f32 %v4111, %v4223
      %4225 = vmatmul.f32.gmra.mxu0 %v4029
      %v4226 = vpop.f32.mrf.mxu0
      %v4227 = vadd.f32 %v4114, %v4226
      %4228 = vmatmul.f32.gmra.mxu0 %v4031
      %v4229 = vpop.f32.mrf.mxu0
      %v4230 = vadd.f32 %v4117, %v4229
      %4231 = vmatmul.f32.gmra.mxu0 %v4033
      %v4232 = vpop.f32.mrf.mxu0
      %v4233 = vadd.f32 %v4120, %v4232
      %4234 = vmatmul.f32.gmra.mxu0 %v4035
      %v4235 = vpop.f32.mrf.mxu0
      %v4236 = vadd.f32 %v4123, %v4235
      %4237 = vmatmul.f32.gmra.mxu0 %v4037
      %v4238 = vpop.f32.mrf.mxu0
      %v4239 = vadd.f32 %v4126, %v4238
      %4240 = vmatmul.f32.gmra.mxu0 %v4039
      %v4241 = vpop.f32.mrf.mxu0
      %v4242 = vadd.f32 %v4129, %v4241
      %4243 = vmatmul.f32.gmra.mxu0 %v4041
      %v4244 = vpop.f32.mrf.mxu0
      %v4245 = vadd.f32 %v4132, %v4244
      %4246 = vmatmul.f32.gmra.mxu0 %v4043
      %v4247 = vpop.f32.mrf.mxu0
      %v4248 = vadd.f32 %v4135, %v4247
      %4249 = vmatmul.f32.gmra.mxu0 %v4045
      %v4250 = vpop.f32.mrf.mxu0
      %v4251 = vadd.f32 %v4138, %v4250
      %4252 = vmatmul.f32.gmra.mxu0 %v4047
      %v4253 = vpop.f32.mrf.mxu0
      %v4254 = vadd.f32 %v4141, %v4253
      %4255 = vmatmul.f32.gmra.mxu0 %v4049
      %v4256 = vpop.f32.mrf.mxu0
      %v4257 = vadd.f32 %v4144, %v4256
      %4258 = vmatmul.f32.gmra.mxu0 %v4051
      %v4259 = vpop.f32.mrf.mxu0
      %v4260 = vadd.f32 %v4147, %v4259
      %4261 = vmatmul.f32.gmra.mxu0 %v4053
      %v4262 = vpop.f32.mrf.mxu0
      %v4263 = vadd.f32 %v4150, %v4262
      %4264 = vmatmul.f32.gmra.mxu0 %v4055
      %v4265 = vpop.f32.mrf.mxu0
      %v4266 = vadd.f32 %v4153, %v4265
      %4267 = vmatmul.f32.gmra.mxu0 %v4057
      %v4268 = vpop.f32.mrf.mxu0
      %v4269 = vadd.f32 %v4156, %v4268
      %4270 = vmatmul.f32.gmra.mxu0 %v4059
      %v4271 = vpop.f32.mrf.mxu0
      %v4272 = vadd.f32 %v4159, %v4271
      %4273 = vmatmul.f32.gmra.mxu0 %v4061
      %v4274 = vpop.f32.mrf.mxu0
      %v4275 = vadd.f32 %v4162, %v4274
      %4276 = vmatmul.f32.gmra.mxu0 %v4063
      %v4277 = vpop.f32.mrf.mxu0
      %v4278 = vadd.f32 %v4165, %v4277
      %4279 = vmatmul.f32.gmra.mxu0 %v4065
      %v4280 = vpop.f32.mrf.mxu0
      %v4281 = vadd.f32 %v4168, %v4280
      %4282 = vmatmul.f32.gmra.mxu0 %v4067
      %v4283 = vpop.f32.mrf.mxu0
      %v4284 = vadd.f32 %v4171, %v4283
      %4285 = vmatmul.f32.gmra.mxu0 %v4069
      %v4286 = vpop.f32.mrf.mxu0
      %v4287 = vadd.f32 %v4174, %v4286
      %4288 = vmatmul.f32.gmra.mxu0 %v4071
      %v4289 = vpop.f32.mrf.mxu0
      %v4290 = vadd.f32 %v4177, %v4289
      %4291 = vmatmul.f32.gmra.mxu0 %v4073
      %v4292 = vpop.f32.mrf.mxu0
      %v4293 = vadd.f32 %v4180, %v4292
      %4294 = vmatmul.f32.gmra.mxu0 %v4075
      %v4295 = vpop.f32.mrf.mxu0
      %v4296 = vadd.f32 %v4183, %v4295
      %4297 = vmatmul.f32.gmra.mxu0 %v4077
      %v4298 = vpop.f32.mrf.mxu0
      %v4299 = vadd.f32 %v4186, %v4298
      %4300 = vmatmul.f32.gmra.mxu0 %v4079
      %v4301 = vpop.f32.mrf.mxu0
      %v4302 = vadd.f32 %v4189, %v4301
      %4303 = vmatmul.f32.gmra.mxu0 %v4081
      %v4304 = vpop.f32.mrf.mxu0
      %v4305 = vadd.f32 %v4192, %v4304
      %4306 = vmatmul.f32.gmra.mxu0 %v4083
      %v4307 = vpop.f32.mrf.mxu0
      %v4308 = vadd.f32 %v4195, %v4307
      %4309 = vmatmul.f32.gmra.mxu0 %v4085
      %v4310 = vpop.f32.mrf.mxu0
      %v4311 = vadd.f32 %v4198, %v4310
      %4312 = vdwg.mxu0
      %v4313 = vsel %vm3921, %v3843, 0
      %v4315 = vsel %vm3921, %v3845, 0
      %4317 = vmatpush.msra.mxu0 %v3969
      %4318 = vmatpush.msra.mxu0 %v3968
      %4319 = vmatpush.msra.mxu0 %v3967
      %4320 = vmatpush.msra.mxu0 %v3966
      %4321 = vmatpush.msra.mxu0 %v3965
      %4322 = vmatpush.msra.mxu0 %v3964
      %4323 = vmatpush.msra.mxu0 %v3963
      %4324 = vmatpush.msra.mxu0 %v3962
      %4325 = vmatpush.msra.mxu0 %v3961
      %4326 = vmatpush.msra.mxu0 %v3960
      %4327 = vmatpush.msra.mxu0 %v3959
      %4328 = vmatpush.msra.mxu0 %v3958
      %4329 = vmatpush.msra.mxu0 %v3957
      %4330 = vmatpush.msra.mxu0 %v3956
      %4331 = vmatpush.msra.mxu0 %v3955
      %4332 = vmatpush.msra.mxu0 %v3954
      %4333 = vmatmul.f32.gmra.mxu0 %v3922
      %v4334 = vpop.f32.mrf.mxu0
      %v4335 = vadd.f32 %v4218, %v4334
      %4336 = vmatmul.f32.gmra.mxu0 %v3923
      %v4337 = vpop.f32.mrf.mxu0
      %v4338 = vadd.f32 %v4221, %v4337
      %4339 = vmatmul.f32.gmra.mxu0 %v3924
      %v4340 = vpop.f32.mrf.mxu0
      %v4341 = vadd.f32 %v4224, %v4340
      %4342 = vmatmul.f32.gmra.mxu0 %v3925
      %v4343 = vpop.f32.mrf.mxu0
      %v4344 = vadd.f32 %v4227, %v4343
      %4345 = vmatmul.f32.gmra.mxu0 %v3926
      %v4346 = vpop.f32.mrf.mxu0
      %v4347 = vadd.f32 %v4230, %v4346
      %4348 = vmatmul.f32.gmra.mxu0 %v3927
      %v4349 = vpop.f32.mrf.mxu0
      %v4350 = vadd.f32 %v4233, %v4349
      %4351 = vmatmul.f32.gmra.mxu0 %v3928
      %v4352 = vpop.f32.mrf.mxu0
      %v4353 = vadd.f32 %v4236, %v4352
      %4354 = vmatmul.f32.gmra.mxu0 %v3929
      %v4355 = vpop.f32.mrf.mxu0
      %v4356 = vadd.f32 %v4239, %v4355
      %4357 = vmatmul.f32.gmra.mxu0 %v3930
      %v4358 = vpop.f32.mrf.mxu0
      %v4359 = vadd.f32 %v4242, %v4358
      %4360 = vmatmul.f32.gmra.mxu0 %v3931
      %v4361 = vpop.f32.mrf.mxu0
      %v4362 = vadd.f32 %v4245, %v4361
      %4363 = vmatmul.f32.gmra.mxu0 %v3932
      %v4364 = vpop.f32.mrf.mxu0
      %v4365 = vadd.f32 %v4248, %v4364
      %4366 = vmatmul.f32.gmra.mxu0 %v3933
      %v4367 = vpop.f32.mrf.mxu0
      %v4368 = vadd.f32 %v4251, %v4367
      %4369 = vmatmul.f32.gmra.mxu0 %v3934
      %v4370 = vpop.f32.mrf.mxu0
      %v4371 = vadd.f32 %v4254, %v4370
      %4372 = vmatmul.f32.gmra.mxu0 %v3935
      %v4373 = vpop.f32.mrf.mxu0
      %v4374 = vadd.f32 %v4257, %v4373
      %4375 = vmatmul.f32.gmra.mxu0 %v3936
      %v4376 = vpop.f32.mrf.mxu0
      %v4377 = vadd.f32 %v4260, %v4376
      %4378 = vmatmul.f32.gmra.mxu0 %v3937
      %v4379 = vpop.f32.mrf.mxu0
      %v4380 = vadd.f32 %v4263, %v4379
      %4381 = vmatmul.f32.gmra.mxu0 %v3938
      %v4382 = vpop.f32.mrf.mxu0
      %v4383 = vadd.f32 %v4266, %v4382
      %4384 = vmatmul.f32.gmra.mxu0 %v3939
      %v4385 = vpop.f32.mrf.mxu0
      %v4386 = vadd.f32 %v4269, %v4385
      %4387 = vmatmul.f32.gmra.mxu0 %v3940
      %v4388 = vpop.f32.mrf.mxu0
      %v4389 = vadd.f32 %v4272, %v4388
      %4390 = vmatmul.f32.gmra.mxu0 %v3941
      %v4391 = vpop.f32.mrf.mxu0
      %v4392 = vadd.f32 %v4275, %v4391
      %4393 = vmatmul.f32.gmra.mxu0 %v3942
      %v4394 = vpop.f32.mrf.mxu0
      %v4395 = vadd.f32 %v4278, %v4394
      %4396 = vmatmul.f32.gmra.mxu0 %v3943
      %v4397 = vpop.f32.mrf.mxu0
      %v4398 = vadd.f32 %v4281, %v4397
      %4399 = vmatmul.f32.gmra.mxu0 %v3944
      %v4400 = vpop.f32.mrf.mxu0
      %v4401 = vadd.f32 %v4284, %v4400
      %4402 = vmatmul.f32.gmra.mxu0 %v3945
      %v4403 = vpop.f32.mrf.mxu0
      %v4404 = vadd.f32 %v4287, %v4403
      %4405 = vmatmul.f32.gmra.mxu0 %v3946
      %v4406 = vpop.f32.mrf.mxu0
      %v4407 = vadd.f32 %v4290, %v4406
      %4408 = vmatmul.f32.gmra.mxu0 %v3947
      %v4409 = vpop.f32.mrf.mxu0
      %v4410 = vadd.f32 %v4293, %v4409
      %4411 = vmatmul.f32.gmra.mxu0 %v3948
      %v4412 = vpop.f32.mrf.mxu0
      %v4413 = vadd.f32 %v4296, %v4412
      %4414 = vmatmul.f32.gmra.mxu0 %v3949
      %v4415 = vpop.f32.mrf.mxu0
      %v4416 = vadd.f32 %v4299, %v4415
      %4417 = vmatmul.f32.gmra.mxu0 %v3950
      %v4418 = vpop.f32.mrf.mxu0
      %v4419 = vadd.f32 %v4302, %v4418
      %4420 = vmatmul.f32.gmra.mxu0 %v3951
      %v4421 = vpop.f32.mrf.mxu0
      %v4422 = vadd.f32 %v4305, %v4421
      %4423 = vmatmul.f32.gmra.mxu0 %v3952
      %v4424 = vpop.f32.mrf.mxu0
      %v4425 = vadd.f32 %v4308, %v4424
      %4426 = vmatmul.f32.gmra.mxu0 %v3953
      %v4427 = vpop.f32.mrf.mxu0
      %v4428 = vadd.f32 %v4311, %v4427
      %4429 = vdwg.mxu0
      %4430 = vmatpush.msra.mxu0 0.0
      %4431 = vmatpush.msra.mxu0 0.0
      %4432 = vmatpush.msra.mxu0 0.0
      %4433 = vmatpush.msra.mxu0 0.0
      %4434 = vmatpush.msra.mxu0 0.0
      %4435 = vmatpush.msra.mxu0 0.0
      %4436 = vmatpush.msra.mxu0 0.0
      %4437 = vmatpush.msra.mxu0 0.0
      %4438 = vmatpush.msra.mxu0 %v3977
      %4439 = vmatpush.msra.mxu0 %v3976
      %4440 = vmatpush.msra.mxu0 %v3975
      %4441 = vmatpush.msra.mxu0 %v3974
      %4442 = vmatpush.msra.mxu0 %v3973
      %4443 = vmatpush.msra.mxu0 %v3972
      %4444 = vmatpush.msra.mxu0 %v3971
      %4445 = vmatpush.msra.mxu0 %v3970
      %4446 = vmatmul.f32.gmra.mxu0 %v4313
      %v4447 = vpop.f32.mrf.mxu0
      %v4448 = vadd.f32 %v4335, %v4447
      %4449 = vmatmul.f32.gmra.mxu0 %v4315
      %v4450 = vpop.f32.mrf.mxu0
      %v4451 = vadd.f32 %v4338, %v4450
      %4452 = vmatmul.f32.gmra.mxu0 %v4023
      %v4453 = vpop.f32.mrf.mxu0
      %v4454 = vadd.f32 %v4341, %v4453
      %4455 = vmatmul.f32.gmra.mxu0 %v4025
      %v4456 = vpop.f32.mrf.mxu0
      %v4457 = vadd.f32 %v4344, %v4456
      %4458 = vmatmul.f32.gmra.mxu0 %v4027
      %v4459 = vpop.f32.mrf.mxu0
      %v4460 = vadd.f32 %v4347, %v4459
      %4461 = vmatmul.f32.gmra.mxu0 %v4029
      %v4462 = vpop.f32.mrf.mxu0
      %v4463 = vadd.f32 %v4350, %v4462
      %4464 = vmatmul.f32.gmra.mxu0 %v4031
      %v4465 = vpop.f32.mrf.mxu0
      %v4466 = vadd.f32 %v4353, %v4465
      %4467 = vmatmul.f32.gmra.mxu0 %v4033
      %v4468 = vpop.f32.mrf.mxu0
      %v4469 = vadd.f32 %v4356, %v4468
      %4470 = vmatmul.f32.gmra.mxu0 %v4035
      %v4471 = vpop.f32.mrf.mxu0
      %v4472 = vadd.f32 %v4359, %v4471
      %4473 = vmatmul.f32.gmra.mxu0 %v4037
      %v4474 = vpop.f32.mrf.mxu0
      %v4475 = vadd.f32 %v4362, %v4474
      %4476 = vmatmul.f32.gmra.mxu0 %v4039
      %v4477 = vpop.f32.mrf.mxu0
      %v4478 = vadd.f32 %v4365, %v4477
      %4479 = vmatmul.f32.gmra.mxu0 %v4041
      %v4480 = vpop.f32.mrf.mxu0
      %v4481 = vadd.f32 %v4368, %v4480
      %4482 = vmatmul.f32.gmra.mxu0 %v4043
      %v4483 = vpop.f32.mrf.mxu0
      %v4484 = vadd.f32 %v4371, %v4483
      %4485 = vmatmul.f32.gmra.mxu0 %v4045
      %v4486 = vpop.f32.mrf.mxu0
      %v4487 = vadd.f32 %v4374, %v4486
      %4488 = vmatmul.f32.gmra.mxu0 %v4047
      %v4489 = vpop.f32.mrf.mxu0
      %v4490 = vadd.f32 %v4377, %v4489
      %4491 = vmatmul.f32.gmra.mxu0 %v4049
      %v4492 = vpop.f32.mrf.mxu0
      %v4493 = vadd.f32 %v4380, %v4492
      %4494 = vmatmul.f32.gmra.mxu0 %v4051
      %v4495 = vpop.f32.mrf.mxu0
      %v4496 = vadd.f32 %v4383, %v4495
      %4497 = vmatmul.f32.gmra.mxu0 %v4053
      %v4498 = vpop.f32.mrf.mxu0
      %v4499 = vadd.f32 %v4386, %v4498
      %4500 = vmatmul.f32.gmra.mxu0 %v4055
      %v4501 = vpop.f32.mrf.mxu0
      %v4502 = vadd.f32 %v4389, %v4501
      %4503 = vmatmul.f32.gmra.mxu0 %v4057
      %v4504 = vpop.f32.mrf.mxu0
      %v4505 = vadd.f32 %v4392, %v4504
      %4506 = vmatmul.f32.gmra.mxu0 %v4059
      %v4507 = vpop.f32.mrf.mxu0
      %v4508 = vadd.f32 %v4395, %v4507
      %4509 = vmatmul.f32.gmra.mxu0 %v4061
      %v4510 = vpop.f32.mrf.mxu0
      %v4511 = vadd.f32 %v4398, %v4510
      %4512 = vmatmul.f32.gmra.mxu0 %v4063
      %v4513 = vpop.f32.mrf.mxu0
      %v4514 = vadd.f32 %v4401, %v4513
      %4515 = vmatmul.f32.gmra.mxu0 %v4065
      %v4516 = vpop.f32.mrf.mxu0
      %v4517 = vadd.f32 %v4404, %v4516
      %4518 = vmatmul.f32.gmra.mxu0 %v4067
      %v4519 = vpop.f32.mrf.mxu0
      %v4520 = vadd.f32 %v4407, %v4519
      %4521 = vmatmul.f32.gmra.mxu0 %v4069
      %v4522 = vpop.f32.mrf.mxu0
      %v4523 = vadd.f32 %v4410, %v4522
      %4524 = vmatmul.f32.gmra.mxu0 %v4071
      %v4525 = vpop.f32.mrf.mxu0
      %v4526 = vadd.f32 %v4413, %v4525
      %4527 = vmatmul.f32.gmra.mxu0 %v4073
      %v4528 = vpop.f32.mrf.mxu0
      %v4529 = vadd.f32 %v4416, %v4528
      %4530 = vmatmul.f32.gmra.mxu0 %v4075
      %v4531 = vpop.f32.mrf.mxu0
      %v4532 = vadd.f32 %v4419, %v4531
      %4533 = vmatmul.f32.gmra.mxu0 %v4077
      %v4534 = vpop.f32.mrf.mxu0
      %v4535 = vadd.f32 %v4422, %v4534
      %4536 = vmatmul.f32.gmra.mxu0 %v4079
      %v4537 = vpop.f32.mrf.mxu0
      %v4538 = vadd.f32 %v4425, %v4537
      %4539 = vmatmul.f32.gmra.mxu0 %v4081
      %v4540 = vpop.f32.mrf.mxu0
      %v4541 = vadd.f32 %v4428, %v4540
      %4542 = vdwg.mxu0
      %v4545 = vrot.slane %v3614, 1
      %v4546 = vrot.slane %v3510, 1
      %v4547 = vsel %vm914, %v4545, %v4546
      %v4548 = vrot.slane %v3632, 1
      %v4549 = vsel %vm914, %v4546, %v4548
      %4550 = vrot.lane.b32.xlu0 %v4547, 64
      %v4551 = vpop.permute.xlu0 %4550
      %4552 = vrot.lane.b32.xlu0 %v4549, 64
      %v4553 = vpop.permute.xlu0 %4552
      %v4556 = vrot.slane %v3614, 2
      %v4557 = vrot.slane %v3510, 2
      %v4558 = vsel %vm912, %v4556, %v4557
      %v4559 = vrot.slane %v3632, 2
      %v4560 = vsel %vm912, %v4557, %v4559
      %v4561 = vsel %vm3921, %v3614, %v4551
      %v4562 = vsel %vm3921, %v3510, %v4553
      %s4563 = scalar_lea.vmem %s7, 384
      %v4564 = vld [vmem:[%s4563] sm:$0xff]
      %v4565 = vld [vmem:[%s4563 + $0x8] sm:$0xff]
      %v4566 = vld [vmem:[%s4563 + $0x10] sm:$0xff]
      %v4567 = vld [vmem:[%s4563 + $0x18] sm:$0xff]
      %v4568 = vld [vmem:[%s4563 + $0x20] sm:$0xff]
      %v4569 = vld [vmem:[%s4563 + $0x28] sm:$0xff]
      %v4570 = vld [vmem:[%s4563 + $0x30] sm:$0xff]
      %v4571 = vld [vmem:[%s4563 + $0x38] sm:$0xff]
      %v4572 = vld [vmem:[%s4563 + $0x40] sm:$0xff]
      %v4573 = vld [vmem:[%s4563 + $0x48] sm:$0xff]
      %v4574 = vld [vmem:[%s4563 + $0x50] sm:$0xff]
      %v4575 = vld [vmem:[%s4563 + $0x58] sm:$0xff]
      %v4576 = vld [vmem:[%s4563 + $0x60] sm:$0xff]
      %v4577 = vld [vmem:[%s4563 + $0x68] sm:$0xff]
      %v4578 = vld [vmem:[%s4563 + $0x70] sm:$0xff]
      %v4579 = vld [vmem:[%s4563 + $0x78] sm:$0xff]
      %v4580 = vld [vmem:[%s4563 + $0x80] sm:$0xff]
      %v4581 = vld [vmem:[%s4563 + $0x88] sm:$0xff]
      %v4582 = vld [vmem:[%s4563 + $0x90] sm:$0xff]
      %v4583 = vld [vmem:[%s4563 + $0x98] sm:$0xff]
      %v4584 = vld [vmem:[%s4563 + $0xa0] sm:$0xff]
      %v4585 = vld [vmem:[%s4563 + $0xa8] sm:$0xff]
      %v4586 = vld [vmem:[%s4563 + $0xb0] sm:$0xff]
      %v4587 = vld [vmem:[%s4563 + $0xb8] sm:$0xff]
      %v4588 = vsel %vm3921, %v4558, 0
      %v4590 = vsel %vm3921, %v4560, 0
      %4592 = vmatpush.msra.mxu0 %v4579
      %4593 = vmatpush.msra.mxu0 %v4578
      %4594 = vmatpush.msra.mxu0 %v4577
      %4595 = vmatpush.msra.mxu0 %v4576
      %4596 = vmatpush.msra.mxu0 %v4575
      %4597 = vmatpush.msra.mxu0 %v4574
      %4598 = vmatpush.msra.mxu0 %v4573
      %4599 = vmatpush.msra.mxu0 %v4572
      %4600 = vmatpush.msra.mxu0 %v4571
      %4601 = vmatpush.msra.mxu0 %v4570
      %4602 = vmatpush.msra.mxu0 %v4569
      %4603 = vmatpush.msra.mxu0 %v4568
      %4604 = vmatpush.msra.mxu0 %v4567
      %4605 = vmatpush.msra.mxu0 %v4566
      %4606 = vmatpush.msra.mxu0 %v4565
      %4607 = vmatpush.msra.mxu0 %v4564
      %4608 = vmatmul.f32.gmra.mxu0 %v3926
      %v4609 = vpop.f32.mrf.mxu0
      %v4610 = vadd.f32 0.0, %v4609
      %4611 = vmatmul.f32.gmra.mxu0 %v3927
      %v4612 = vpop.f32.mrf.mxu0
      %v4613 = vadd.f32 0.0, %v4612
      %4614 = vmatmul.f32.gmra.mxu0 %v3928
      %v4615 = vpop.f32.mrf.mxu0
      %v4616 = vadd.f32 0.0, %v4615
      %4617 = vmatmul.f32.gmra.mxu0 %v3929
      %v4618 = vpop.f32.mrf.mxu0
      %v4619 = vadd.f32 0.0, %v4618
      %4620 = vmatmul.f32.gmra.mxu0 %v3930
      %v4621 = vpop.f32.mrf.mxu0
      %v4622 = vadd.f32 0.0, %v4621
      %4623 = vmatmul.f32.gmra.mxu0 %v3931
      %v4624 = vpop.f32.mrf.mxu0
      %v4625 = vadd.f32 0.0, %v4624
      %4626 = vmatmul.f32.gmra.mxu0 %v3932
      %v4627 = vpop.f32.mrf.mxu0
      %v4628 = vadd.f32 0.0, %v4627
      %4629 = vmatmul.f32.gmra.mxu0 %v3933
      %v4630 = vpop.f32.mrf.mxu0
      %v4631 = vadd.f32 0.0, %v4630
      %4632 = vmatmul.f32.gmra.mxu0 %v3934
      %v4633 = vpop.f32.mrf.mxu0
      %v4634 = vadd.f32 0.0, %v4633
      %4635 = vmatmul.f32.gmra.mxu0 %v3935
      %v4636 = vpop.f32.mrf.mxu0
      %v4637 = vadd.f32 0.0, %v4636
      %4638 = vmatmul.f32.gmra.mxu0 %v3936
      %v4639 = vpop.f32.mrf.mxu0
      %v4640 = vadd.f32 0.0, %v4639
      %4641 = vmatmul.f32.gmra.mxu0 %v3937
      %v4642 = vpop.f32.mrf.mxu0
      %v4643 = vadd.f32 0.0, %v4642
      %4644 = vmatmul.f32.gmra.mxu0 %v3938
      %v4645 = vpop.f32.mrf.mxu0
      %v4646 = vadd.f32 0.0, %v4645
      %4647 = vmatmul.f32.gmra.mxu0 %v3939
      %v4648 = vpop.f32.mrf.mxu0
      %v4649 = vadd.f32 0.0, %v4648
      %4650 = vmatmul.f32.gmra.mxu0 %v3940
      %v4651 = vpop.f32.mrf.mxu0
      %v4652 = vadd.f32 0.0, %v4651
      %4653 = vmatmul.f32.gmra.mxu0 %v3941
      %v4654 = vpop.f32.mrf.mxu0
      %v4655 = vadd.f32 0.0, %v4654
      %4656 = vmatmul.f32.gmra.mxu0 %v3942
      %v4657 = vpop.f32.mrf.mxu0
      %v4658 = vadd.f32 0.0, %v4657
      %4659 = vmatmul.f32.gmra.mxu0 %v3943
      %v4660 = vpop.f32.mrf.mxu0
      %v4661 = vadd.f32 0.0, %v4660
      %4662 = vmatmul.f32.gmra.mxu0 %v3944
      %v4663 = vpop.f32.mrf.mxu0
      %v4664 = vadd.f32 0.0, %v4663
      %4665 = vmatmul.f32.gmra.mxu0 %v3945
      %v4666 = vpop.f32.mrf.mxu0
      %v4667 = vadd.f32 0.0, %v4666
      %4668 = vmatmul.f32.gmra.mxu0 %v3946
      %v4669 = vpop.f32.mrf.mxu0
      %v4670 = vadd.f32 0.0, %v4669
      %4671 = vmatmul.f32.gmra.mxu0 %v3947
      %v4672 = vpop.f32.mrf.mxu0
      %v4673 = vadd.f32 0.0, %v4672
      %4674 = vmatmul.f32.gmra.mxu0 %v3948
      %v4675 = vpop.f32.mrf.mxu0
      %v4676 = vadd.f32 0.0, %v4675
      %4677 = vmatmul.f32.gmra.mxu0 %v3949
      %v4678 = vpop.f32.mrf.mxu0
      %v4679 = vadd.f32 0.0, %v4678
      %4680 = vmatmul.f32.gmra.mxu0 %v3950
      %v4681 = vpop.f32.mrf.mxu0
      %v4682 = vadd.f32 0.0, %v4681
      %4683 = vmatmul.f32.gmra.mxu0 %v3951
      %v4684 = vpop.f32.mrf.mxu0
      %v4685 = vadd.f32 0.0, %v4684
      %4686 = vmatmul.f32.gmra.mxu0 %v3952
      %v4687 = vpop.f32.mrf.mxu0
      %v4688 = vadd.f32 0.0, %v4687
      %4689 = vmatmul.f32.gmra.mxu0 %v3953
      %v4690 = vpop.f32.mrf.mxu0
      %v4691 = vadd.f32 0.0, %v4690
      %4692 = vmatmul.f32.gmra.mxu0 %v3996
      %v4693 = vpop.f32.mrf.mxu0
      %v4694 = vadd.f32 0.0, %v4693
      %4695 = vmatmul.f32.gmra.mxu0 %v3997
      %v4696 = vpop.f32.mrf.mxu0
      %v4697 = vadd.f32 0.0, %v4696
      %4698 = vmatmul.f32.gmra.mxu0 %v4561
      %v4699 = vpop.f32.mrf.mxu0
      %v4700 = vadd.f32 0.0, %v4699
      %4701 = vmatmul.f32.gmra.mxu0 %v4562
      %v4702 = vpop.f32.mrf.mxu0
      %v4703 = vadd.f32 0.0, %v4702
      %4704 = vdwg.mxu0
      %4705 = vmatpush.msra.mxu0 0.0
      %4706 = vmatpush.msra.mxu0 0.0
      %4707 = vmatpush.msra.mxu0 0.0
      %4708 = vmatpush.msra.mxu0 0.0
      %4709 = vmatpush.msra.mxu0 0.0
      %4710 = vmatpush.msra.mxu0 0.0
      %4711 = vmatpush.msra.mxu0 0.0
      %4712 = vmatpush.msra.mxu0 0.0
      %4713 = vmatpush.msra.mxu0 %v4587
      %4714 = vmatpush.msra.mxu0 %v4586
      %4715 = vmatpush.msra.mxu0 %v4585
      %4716 = vmatpush.msra.mxu0 %v4584
      %4717 = vmatpush.msra.mxu0 %v4583
      %4718 = vmatpush.msra.mxu0 %v4582
      %4719 = vmatpush.msra.mxu0 %v4581
      %4720 = vmatpush.msra.mxu0 %v4580
      %4721 = vmatmul.f32.gmra.mxu0 %v4027
      %v4722 = vpop.f32.mrf.mxu0
      %v4723 = vadd.f32 %v4610, %v4722
      %4724 = vmatmul.f32.gmra.mxu0 %v4029
      %v4725 = vpop.f32.mrf.mxu0
      %v4726 = vadd.f32 %v4613, %v4725
      %4727 = vmatmul.f32.gmra.mxu0 %v4031
      %v4728 = vpop.f32.mrf.mxu0
      %v4729 = vadd.f32 %v4616, %v4728
      %4730 = vmatmul.f32.gmra.mxu0 %v4033
      %v4731 = vpop.f32.mrf.mxu0
      %v4732 = vadd.f32 %v4619, %v4731
      %4733 = vmatmul.f32.gmra.mxu0 %v4035
      %v4734 = vpop.f32.mrf.mxu0
      %v4735 = vadd.f32 %v4622, %v4734
      %4736 = vmatmul.f32.gmra.mxu0 %v4037
      %v4737 = vpop.f32.mrf.mxu0
      %v4738 = vadd.f32 %v4625, %v4737
      %4739 = vmatmul.f32.gmra.mxu0 %v4039
      %v4740 = vpop.f32.mrf.mxu0
      %v4741 = vadd.f32 %v4628, %v4740
      %4742 = vmatmul.f32.gmra.mxu0 %v4041
      %v4743 = vpop.f32.mrf.mxu0
      %v4744 = vadd.f32 %v4631, %v4743
      %4745 = vmatmul.f32.gmra.mxu0 %v4043
      %v4746 = vpop.f32.mrf.mxu0
      %v4747 = vadd.f32 %v4634, %v4746
      %4748 = vmatmul.f32.gmra.mxu0 %v4045
      %v4749 = vpop.f32.mrf.mxu0
      %v4750 = vadd.f32 %v4637, %v4749
      %4751 = vmatmul.f32.gmra.mxu0 %v4047
      %v4752 = vpop.f32.mrf.mxu0
      %v4753 = vadd.f32 %v4640, %v4752
      %4754 = vmatmul.f32.gmra.mxu0 %v4049
      %v4755 = vpop.f32.mrf.mxu0
      %v4756 = vadd.f32 %v4643, %v4755
      %4757 = vmatmul.f32.gmra.mxu0 %v4051
      %v4758 = vpop.f32.mrf.mxu0
      %v4759 = vadd.f32 %v4646, %v4758
      %4760 = vmatmul.f32.gmra.mxu0 %v4053
      %v4761 = vpop.f32.mrf.mxu0
      %v4762 = vadd.f32 %v4649, %v4761
      %4763 = vmatmul.f32.gmra.mxu0 %v4055
      %v4764 = vpop.f32.mrf.mxu0
      %v4765 = vadd.f32 %v4652, %v4764
      %4766 = vmatmul.f32.gmra.mxu0 %v4057
      %v4767 = vpop.f32.mrf.mxu0
      %v4768 = vadd.f32 %v4655, %v4767
      %4769 = vmatmul.f32.gmra.mxu0 %v4059
      %v4770 = vpop.f32.mrf.mxu0
      %v4771 = vadd.f32 %v4658, %v4770
      %4772 = vmatmul.f32.gmra.mxu0 %v4061
      %v4773 = vpop.f32.mrf.mxu0
      %v4774 = vadd.f32 %v4661, %v4773
      %4775 = vmatmul.f32.gmra.mxu0 %v4063
      %v4776 = vpop.f32.mrf.mxu0
      %v4777 = vadd.f32 %v4664, %v4776
      %4778 = vmatmul.f32.gmra.mxu0 %v4065
      %v4779 = vpop.f32.mrf.mxu0
      %v4780 = vadd.f32 %v4667, %v4779
      %4781 = vmatmul.f32.gmra.mxu0 %v4067
      %v4782 = vpop.f32.mrf.mxu0
      %v4783 = vadd.f32 %v4670, %v4782
      %4784 = vmatmul.f32.gmra.mxu0 %v4069
      %v4785 = vpop.f32.mrf.mxu0
      %v4786 = vadd.f32 %v4673, %v4785
      %4787 = vmatmul.f32.gmra.mxu0 %v4071
      %v4788 = vpop.f32.mrf.mxu0
      %v4789 = vadd.f32 %v4676, %v4788
      %4790 = vmatmul.f32.gmra.mxu0 %v4073
      %v4791 = vpop.f32.mrf.mxu0
      %v4792 = vadd.f32 %v4679, %v4791
      %4793 = vmatmul.f32.gmra.mxu0 %v4075
      %v4794 = vpop.f32.mrf.mxu0
      %v4795 = vadd.f32 %v4682, %v4794
      %4796 = vmatmul.f32.gmra.mxu0 %v4077
      %v4797 = vpop.f32.mrf.mxu0
      %v4798 = vadd.f32 %v4685, %v4797
      %4799 = vmatmul.f32.gmra.mxu0 %v4079
      %v4800 = vpop.f32.mrf.mxu0
      %v4801 = vadd.f32 %v4688, %v4800
      %4802 = vmatmul.f32.gmra.mxu0 %v4081
      %v4803 = vpop.f32.mrf.mxu0
      %v4804 = vadd.f32 %v4691, %v4803
      %4805 = vmatmul.f32.gmra.mxu0 %v4083
      %v4806 = vpop.f32.mrf.mxu0
      %v4807 = vadd.f32 %v4694, %v4806
      %4808 = vmatmul.f32.gmra.mxu0 %v4085
      %v4809 = vpop.f32.mrf.mxu0
      %v4810 = vadd.f32 %v4697, %v4809
      %4811 = vmatmul.f32.gmra.mxu0 %v4588
      %v4812 = vpop.f32.mrf.mxu0
      %v4813 = vadd.f32 %v4700, %v4812
      %4814 = vmatmul.f32.gmra.mxu0 %v4590
      %v4815 = vpop.f32.mrf.mxu0
      %v4816 = vadd.f32 %v4703, %v4815
      %4817 = vdwg.mxu0
      %v4818 = vadd.f32 %v4448, %v4723
      %v4819 = vadd.f32 %v4451, %v4726
      %v4820 = vadd.f32 %v4454, %v4729
      %v4821 = vadd.f32 %v4457, %v4732
      %v4822 = vadd.f32 %v4460, %v4735
      %v4823 = vadd.f32 %v4463, %v4738
      %v4824 = vadd.f32 %v4466, %v4741
      %v4825 = vadd.f32 %v4469, %v4744
      %v4826 = vadd.f32 %v4472, %v4747
      %v4827 = vadd.f32 %v4475, %v4750
      %v4828 = vadd.f32 %v4478, %v4753
      %v4829 = vadd.f32 %v4481, %v4756
      %v4830 = vadd.f32 %v4484, %v4759
      %v4831 = vadd.f32 %v4487, %v4762
      %v4832 = vadd.f32 %v4490, %v4765
      %v4833 = vadd.f32 %v4493, %v4768
      %v4834 = vadd.f32 %v4496, %v4771
      %v4835 = vadd.f32 %v4499, %v4774
      %v4836 = vadd.f32 %v4502, %v4777
      %v4837 = vadd.f32 %v4505, %v4780
      %v4838 = vadd.f32 %v4508, %v4783
      %v4839 = vadd.f32 %v4511, %v4786
      %v4840 = vadd.f32 %v4514, %v4789
      %v4841 = vadd.f32 %v4517, %v4792
      %v4842 = vadd.f32 %v4520, %v4795
      %v4843 = vadd.f32 %v4523, %v4798
      %v4844 = vadd.f32 %v4526, %v4801
      %v4845 = vadd.f32 %v4529, %v4804
      %v4846 = vadd.f32 %v4532, %v4807
      %v4847 = vadd.f32 %v4535, %v4810
      %v4848 = vadd.f32 %v4538, %v4813
      %v4849 = vadd.f32 %v4541, %v4816
      %v4850 = vld [vmem:[%s8] sm:$0x1]
      %v4852 = vperm.slane %v4850, 0
      %v4854 = vadd.f32 %v4818, %v4852
      %v4855 = vadd.f32 %v4819, %v4852
      %v4856 = vadd.f32 %v4820, %v4852
      %v4857 = vadd.f32 %v4821, %v4852
      %v4858 = vadd.f32 %v4822, %v4852
      %v4859 = vadd.f32 %v4823, %v4852
      %v4860 = vadd.f32 %v4824, %v4852
      %v4861 = vadd.f32 %v4825, %v4852
      %v4862 = vadd.f32 %v4826, %v4852
      %v4863 = vadd.f32 %v4827, %v4852
      %v4864 = vadd.f32 %v4828, %v4852
      %v4865 = vadd.f32 %v4829, %v4852
      %v4866 = vadd.f32 %v4830, %v4852
      %v4867 = vadd.f32 %v4831, %v4852
      %v4868 = vadd.f32 %v4832, %v4852
      %v4869 = vadd.f32 %v4833, %v4852
      %v4870 = vadd.f32 %v4834, %v4852
      %v4871 = vadd.f32 %v4835, %v4852
      %v4872 = vadd.f32 %v4836, %v4852
      %v4873 = vadd.f32 %v4837, %v4852
      %v4874 = vadd.f32 %v4838, %v4852
      %v4875 = vadd.f32 %v4839, %v4852
      %v4876 = vadd.f32 %v4840, %v4852
      %v4877 = vadd.f32 %v4841, %v4852
      %v4878 = vadd.f32 %v4842, %v4852
      %v4879 = vadd.f32 %v4843, %v4852
      %v4880 = vadd.f32 %v4844, %v4852
      %v4881 = vadd.f32 %v4845, %v4852
      %v4882 = vadd.f32 %v4846, %v4852
      %v4883 = vadd.f32 %v4847, %v4852
      %v4884 = vadd.f32 %v4848, %v4852
      %v4885 = vadd.f32 %v4849, %v4852
      %v4886 = vmax.f32 %v4854, 0.0
      %v4887 = vmax.f32 %v4855, 0.0
      %v4888 = vmax.f32 %v4856, 0.0
      %v4889 = vmax.f32 %v4857, 0.0
      %v4890 = vmax.f32 %v4858, 0.0
      %v4891 = vmax.f32 %v4859, 0.0
      %v4892 = vmax.f32 %v4860, 0.0
      %v4893 = vmax.f32 %v4861, 0.0
      %v4894 = vmax.f32 %v4862, 0.0
      %v4895 = vmax.f32 %v4863, 0.0
      %v4896 = vmax.f32 %v4864, 0.0
      %v4897 = vmax.f32 %v4865, 0.0
      %v4898 = vmax.f32 %v4866, 0.0
      %v4899 = vmax.f32 %v4867, 0.0
      %v4900 = vmax.f32 %v4868, 0.0
      %v4901 = vmax.f32 %v4869, 0.0
      %v4902 = vmax.f32 %v4870, 0.0
      %v4903 = vmax.f32 %v4871, 0.0
      %v4904 = vmax.f32 %v4872, 0.0
      %v4905 = vmax.f32 %v4873, 0.0
      %v4906 = vmax.f32 %v4874, 0.0
      %v4907 = vmax.f32 %v4875, 0.0
      %v4908 = vmax.f32 %v4876, 0.0
      %v4909 = vmax.f32 %v4877, 0.0
      %v4910 = vmax.f32 %v4878, 0.0
      %v4911 = vmax.f32 %v4879, 0.0
      %v4912 = vmax.f32 %v4880, 0.0
      %v4913 = vmax.f32 %v4881, 0.0
      %v4914 = vmax.f32 %v4882, 0.0
      %v4915 = vmax.f32 %v4883, 0.0
      %v4916 = vmax.f32 %v4884, 0.0
      %v4917 = vmax.f32 %v4885, 0.0
      %v4918 = vld [vmem:[%s9] sm:$0x1]
      %v4920 = vperm.slane %v4918, 0
      %v4922 = vmul.f32 %v4886, %v4920
      %v4923 = vmul.f32 %v4887, %v4920
      %v4924 = vmul.f32 %v4888, %v4920
      %v4925 = vmul.f32 %v4889, %v4920
      %v4926 = vmul.f32 %v4890, %v4920
      %v4927 = vmul.f32 %v4891, %v4920
      %v4928 = vmul.f32 %v4892, %v4920
      %v4929 = vmul.f32 %v4893, %v4920
      %v4930 = vmul.f32 %v4894, %v4920
      %v4931 = vmul.f32 %v4895, %v4920
      %v4932 = vmul.f32 %v4896, %v4920
      %v4933 = vmul.f32 %v4897, %v4920
      %v4934 = vmul.f32 %v4898, %v4920
      %v4935 = vmul.f32 %v4899, %v4920
      %v4936 = vmul.f32 %v4900, %v4920
      %v4937 = vmul.f32 %v4901, %v4920
      %v4938 = vmul.f32 %v4902, %v4920
      %v4939 = vmul.f32 %v4903, %v4920
      %v4940 = vmul.f32 %v4904, %v4920
      %v4941 = vmul.f32 %v4905, %v4920
      %v4942 = vmul.f32 %v4906, %v4920
      %v4943 = vmul.f32 %v4907, %v4920
      %v4944 = vmul.f32 %v4908, %v4920
      %v4945 = vmul.f32 %v4909, %v4920
      %v4946 = vmul.f32 %v4910, %v4920
      %v4947 = vmul.f32 %v4911, %v4920
      %v4948 = vmul.f32 %v4912, %v4920
      %v4949 = vmul.f32 %v4913, %v4920
      %v4950 = vmul.f32 %v4914, %v4920
      %v4951 = vmul.f32 %v4915, %v4920
      %v4952 = vmul.f32 %v4916, %v4920
      %v4953 = vmul.f32 %v4917, %v4920
      %v4954 = vld [vmem:[%s10] sm:$0x1]
      %v4956 = vperm.slane %v4954, 0
      %v4958 = vadd.f32 %v4922, %v4956
      %v4959 = vadd.f32 %v4923, %v4956
      %v4960 = vadd.f32 %v4924, %v4956
      %v4961 = vadd.f32 %v4925, %v4956
      %v4962 = vadd.f32 %v4926, %v4956
      %v4963 = vadd.f32 %v4927, %v4956
      %v4964 = vadd.f32 %v4928, %v4956
      %v4965 = vadd.f32 %v4929, %v4956
      %v4966 = vadd.f32 %v4930, %v4956
      %v4967 = vadd.f32 %v4931, %v4956
      %v4968 = vadd.f32 %v4932, %v4956
      %v4969 = vadd.f32 %v4933, %v4956
      %v4970 = vadd.f32 %v4934, %v4956
      %v4971 = vadd.f32 %v4935, %v4956
      %v4972 = vadd.f32 %v4936, %v4956
      %v4973 = vadd.f32 %v4937, %v4956
      %v4974 = vadd.f32 %v4938, %v4956
      %v4975 = vadd.f32 %v4939, %v4956
      %v4976 = vadd.f32 %v4940, %v4956
      %v4977 = vadd.f32 %v4941, %v4956
      %v4978 = vadd.f32 %v4942, %v4956
      %v4979 = vadd.f32 %v4943, %v4956
      %v4980 = vadd.f32 %v4944, %v4956
      %v4981 = vadd.f32 %v4945, %v4956
      %v4982 = vadd.f32 %v4946, %v4956
      %v4983 = vadd.f32 %v4947, %v4956
      %v4984 = vadd.f32 %v4948, %v4956
      %v4985 = vadd.f32 %v4949, %v4956
      %v4986 = vadd.f32 %v4950, %v4956
      %v4987 = vadd.f32 %v4951, %v4956
      %v4988 = vadd.f32 %v4952, %v4956
      %v4989 = vadd.f32 %v4953, %v4956
      %v5006 = vrot.slane %v4960, 1
      %v5007 = vrot.slane %v4958, 1
      %v5008 = vrot.slane %v4962, 1
      %v5009 = vrot.slane %v4964, 1
      %v5010 = vrot.slane %v4966, 1
      %v5011 = vrot.slane %v4968, 1
      %v5012 = vrot.slane %v4970, 1
      %v5013 = vrot.slane %v4972, 1
      %v5014 = vrot.slane %v4974, 1
      %v5015 = vrot.slane %v4976, 1
      %v5016 = vrot.slane %v4978, 1
      %v5017 = vrot.slane %v4980, 1
      %v5018 = vrot.slane %v4982, 1
      %v5019 = vrot.slane %v4984, 1
      %v5020 = vrot.slane %v4986, 1
      %v5021 = vrot.slane %v4988, 1
      %v5054 = vrot.slane %v4960, 7
      %v5055 = vrot.slane %v4961, 7
      %v5056 = vsel %vm902, %v5054, %v5055
      %v5057 = vrot.slane %v4958, 7
      %v5058 = vrot.slane %v4959, 7
      %v5059 = vsel %vm902, %v5057, %v5058
      %v5060 = vrot.slane %v4962, 7
      %v5061 = vrot.slane %v4963, 7
      %v5062 = vsel %vm902, %v5060, %v5061
      %v5063 = vrot.slane %v4964, 7
      %v5064 = vrot.slane %v4965, 7
      %v5065 = vsel %vm902, %v5063, %v5064
      %v5066 = vrot.slane %v4966, 7
      %v5067 = vrot.slane %v4967, 7
      %v5068 = vsel %vm902, %v5066, %v5067
      %v5069 = vrot.slane %v4968, 7
      %v5070 = vrot.slane %v4969, 7
      %v5071 = vsel %vm902, %v5069, %v5070
      %v5072 = vrot.slane %v4970, 7
      %v5073 = vrot.slane %v4971, 7
      %v5074 = vsel %vm902, %v5072, %v5073
      %v5075 = vrot.slane %v4972, 7
      %v5076 = vrot.slane %v4973, 7
      %v5077 = vsel %vm902, %v5075, %v5076
      %v5078 = vrot.slane %v4974, 7
      %v5079 = vrot.slane %v4975, 7
      %v5080 = vsel %vm902, %v5078, %v5079
      %v5081 = vrot.slane %v4976, 7
      %v5082 = vrot.slane %v4977, 7
      %v5083 = vsel %vm902, %v5081, %v5082
      %v5084 = vrot.slane %v4978, 7
      %v5085 = vrot.slane %v4979, 7
      %v5086 = vsel %vm902, %v5084, %v5085
      %v5087 = vrot.slane %v4980, 7
      %v5088 = vrot.slane %v4981, 7
      %v5089 = vsel %vm902, %v5087, %v5088
      %v5090 = vrot.slane %v4982, 7
      %v5091 = vrot.slane %v4983, 7
      %v5092 = vsel %vm902, %v5090, %v5091
      %v5093 = vrot.slane %v4984, 7
      %v5094 = vrot.slane %v4985, 7
      %v5095 = vsel %vm902, %v5093, %v5094
      %v5096 = vrot.slane %v4986, 7
      %v5097 = vrot.slane %v4987, 7
      %v5098 = vsel %vm902, %v5096, %v5097
      %v5099 = vrot.slane %v4988, 7
      %v5100 = vrot.slane %v4989, 7
      %v5101 = vsel %vm902, %v5099, %v5100
      %v5150 = vrot.slane %v4961, 5
      %v5151 = vrot.slane %v4959, 5
      %v5152 = vrot.slane %v4963, 5
      %v5153 = vrot.slane %v4965, 5
      %v5154 = vrot.slane %v4967, 5
      %v5155 = vrot.slane %v4969, 5
      %v5156 = vrot.slane %v4971, 5
      %v5157 = vrot.slane %v4973, 5
      %v5158 = vrot.slane %v4975, 5
      %v5159 = vrot.slane %v4977, 5
      %v5160 = vrot.slane %v4979, 5
      %v5161 = vrot.slane %v4981, 5
      %v5162 = vrot.slane %v4983, 5
      %v5163 = vrot.slane %v4985, 5
      %v5164 = vrot.slane %v4987, 5
      %v5165 = vrot.slane %v4989, 5
      %v5182 = vsel %vm902, %v5006, %v5054
      %v5183 = vsel %vm902, %v5007, %v5057
      %v5184 = vsel %vm902, %v5008, %v5060
      %v5185 = vsel %vm902, %v5009, %v5063
      %v5186 = vsel %vm902, %v5010, %v5066
      %v5187 = vsel %vm902, %v5011, %v5069
      %v5188 = vsel %vm902, %v5012, %v5072
      %v5189 = vsel %vm902, %v5013, %v5075
      %v5190 = vsel %vm902, %v5014, %v5078
      %v5191 = vsel %vm902, %v5015, %v5081
      %v5192 = vsel %vm902, %v5016, %v5084
      %v5193 = vsel %vm902, %v5017, %v5087
      %v5194 = vsel %vm902, %v5018, %v5090
      %v5195 = vsel %vm902, %v5019, %v5093
      %v5196 = vsel %vm902, %v5020, %v5096
      %v5197 = vsel %vm902, %v5021, %v5099
      %v5198 = vsel %vm902, %v5055, %v5150
      %v5199 = vsel %vm902, %v5058, %v5151
      %v5200 = vsel %vm902, %v5061, %v5152
      %v5201 = vsel %vm902, %v5064, %v5153
      %v5202 = vsel %vm902, %v5067, %v5154
      %v5203 = vsel %vm902, %v5070, %v5155
      %v5204 = vsel %vm902, %v5073, %v5156
      %v5205 = vsel %vm902, %v5076, %v5157
      %v5206 = vsel %vm902, %v5079, %v5158
      %v5207 = vsel %vm902, %v5082, %v5159
      %v5208 = vsel %vm902, %v5085, %v5160
      %v5209 = vsel %vm902, %v5088, %v5161
      %v5210 = vsel %vm902, %v5091, %v5162
      %v5211 = vsel %vm902, %v5094, %v5163
      %v5212 = vsel %vm902, %v5097, %v5164
      %v5213 = vsel %vm902, %v5100, %v5165
      %v5244 = vrot.slane %v5182, 1
      %v5245 = vrot.slane %v5056, 1
      %v5246 = vsel %vm914, %v5244, %v5245
      %v5247 = vrot.slane %v5198, 1
      %v5248 = vsel %vm914, %v5245, %v5247
      %v5249 = vrot.slane %v5183, 1
      %v5250 = vrot.slane %v5059, 1
      %v5251 = vsel %vm914, %v5249, %v5250
      %v5252 = vrot.slane %v5199, 1
      %v5253 = vsel %vm914, %v5250, %v5252
      %v5254 = vrot.slane %v5184, 1
      %v5255 = vrot.slane %v5062, 1
      %v5256 = vsel %vm914, %v5254, %v5255
      %v5257 = vrot.slane %v5200, 1
      %v5258 = vsel %vm914, %v5255, %v5257
      %v5259 = vrot.slane %v5185, 1
      %v5260 = vrot.slane %v5065, 1
      %v5261 = vsel %vm914, %v5259, %v5260
      %v5262 = vrot.slane %v5201, 1
      %v5263 = vsel %vm914, %v5260, %v5262
      %v5264 = vrot.slane %v5186, 1
      %v5265 = vrot.slane %v5068, 1
      %v5266 = vsel %vm914, %v5264, %v5265
      %v5267 = vrot.slane %v5202, 1
      %v5268 = vsel %vm914, %v5265, %v5267
      %v5269 = vrot.slane %v5187, 1
      %v5270 = vrot.slane %v5071, 1
      %v5271 = vsel %vm914, %v5269, %v5270
      %v5272 = vrot.slane %v5203, 1
      %v5273 = vsel %vm914, %v5270, %v5272
      %v5274 = vrot.slane %v5188, 1
      %v5275 = vrot.slane %v5074, 1
      %v5276 = vsel %vm914, %v5274, %v5275
      %v5277 = vrot.slane %v5204, 1
      %v5278 = vsel %vm914, %v5275, %v5277
      %v5279 = vrot.slane %v5189, 1
      %v5280 = vrot.slane %v5077, 1
      %v5281 = vsel %vm914, %v5279, %v5280
      %v5282 = vrot.slane %v5205, 1
      %v5283 = vsel %vm914, %v5280, %v5282
      %v5284 = vrot.slane %v5190, 1
      %v5285 = vrot.slane %v5080, 1
      %v5286 = vsel %vm914, %v5284, %v5285
      %v5287 = vrot.slane %v5206, 1
      %v5288 = vsel %vm914, %v5285, %v5287
      %v5289 = vrot.slane %v5191, 1
      %v5290 = vrot.slane %v5083, 1
      %v5291 = vsel %vm914, %v5289, %v5290
      %v5292 = vrot.slane %v5207, 1
      %v5293 = vsel %vm914, %v5290, %v5292
      %v5294 = vrot.slane %v5192, 1
      %v5295 = vrot.slane %v5086, 1
      %v5296 = vsel %vm914, %v5294, %v5295
      %v5297 = vrot.slane %v5208, 1
      %v5298 = vsel %vm914, %v5295, %v5297
      %v5299 = vrot.slane %v5193, 1
      %v5300 = vrot.slane %v5089, 1
      %v5301 = vsel %vm914, %v5299, %v5300
      %v5302 = vrot.slane %v5209, 1
      %v5303 = vsel %vm914, %v5300, %v5302
      %v5304 = vrot.slane %v5194, 1
      %v5305 = vrot.slane %v5092, 1
      %v5306 = vsel %vm914, %v5304, %v5305
      %v5307 = vrot.slane %v5210, 1
      %v5308 = vsel %vm914, %v5305, %v5307
      %v5309 = vrot.slane %v5195, 1
      %v5310 = vrot.slane %v5095, 1
      %v5311 = vsel %vm914, %v5309, %v5310
      %v5312 = vrot.slane %v5211, 1
      %v5313 = vsel %vm914, %v5310, %v5312
      %v5314 = vrot.slane %v5196, 1
      %v5315 = vrot.slane %v5098, 1
      %v5316 = vsel %vm914, %v5314, %v5315
      %v5317 = vrot.slane %v5212, 1
      %v5318 = vsel %vm914, %v5315, %v5317
      %5319 = vrot.lane.b32.xlu0 %v5246, 32
      %v5320 = vpop.permute.xlu0 %5319
      %5321 = vrot.lane.b32.xlu0 %v5248, 32
      %v5322 = vpop.permute.xlu0 %5321
      %5323 = vrot.lane.b32.xlu0 %v5251, 32
      %v5324 = vpop.permute.xlu0 %5323
      %5325 = vrot.lane.b32.xlu0 %v5253, 32
      %v5326 = vpop.permute.xlu0 %5325
      %5327 = vrot.lane.b32.xlu0 %v5256, 32
      %v5328 = vpop.permute.xlu0 %5327
      %5329 = vrot.lane.b32.xlu0 %v5258, 32
      %v5330 = vpop.permute.xlu0 %5329
      %5331 = vrot.lane.b32.xlu0 %v5261, 32
      %v5332 = vpop.permute.xlu0 %5331
      %5333 = vrot.lane.b32.xlu0 %v5263, 32
      %v5334 = vpop.permute.xlu0 %5333
      %5335 = vrot.lane.b32.xlu0 %v5266, 32
      %v5336 = vpop.permute.xlu0 %5335
      %5337 = vrot.lane.b32.xlu0 %v5268, 32
      %v5338 = vpop.permute.xlu0 %5337
      %5339 = vrot.lane.b32.xlu0 %v5271, 32
      %v5340 = vpop.permute.xlu0 %5339
      %5341 = vrot.lane.b32.xlu0 %v5273, 32
      %v5342 = vpop.permute.xlu0 %5341
      %5343 = vrot.lane.b32.xlu0 %v5276, 32
      %v5344 = vpop.permute.xlu0 %5343
      %5345 = vrot.lane.b32.xlu0 %v5278, 32
      %v5346 = vpop.permute.xlu0 %5345
      %5347 = vrot.lane.b32.xlu0 %v5281, 32
      %v5348 = vpop.permute.xlu0 %5347
      %5349 = vrot.lane.b32.xlu0 %v5283, 32
      %v5350 = vpop.permute.xlu0 %5349
      %5351 = vrot.lane.b32.xlu0 %v5286, 32
      %v5352 = vpop.permute.xlu0 %5351
      %5353 = vrot.lane.b32.xlu0 %v5288, 32
      %v5354 = vpop.permute.xlu0 %5353
      %5355 = vrot.lane.b32.xlu0 %v5291, 32
      %v5356 = vpop.permute.xlu0 %5355
      %5357 = vrot.lane.b32.xlu0 %v5293, 32
      %v5358 = vpop.permute.xlu0 %5357
      %5359 = vrot.lane.b32.xlu0 %v5296, 32
      %v5360 = vpop.permute.xlu0 %5359
      %5361 = vrot.lane.b32.xlu0 %v5298, 32
      %v5362 = vpop.permute.xlu0 %5361
      %5363 = vrot.lane.b32.xlu0 %v5301, 32
      %v5364 = vpop.permute.xlu0 %5363
      %5365 = vrot.lane.b32.xlu0 %v5303, 32
      %v5366 = vpop.permute.xlu0 %5365
      %5367 = vrot.lane.b32.xlu0 %v5306, 32
      %v5368 = vpop.permute.xlu0 %5367
      %5369 = vrot.lane.b32.xlu0 %v5308, 32
      %v5370 = vpop.permute.xlu0 %5369
      %5371 = vrot.lane.b32.xlu0 %v5311, 32
      %v5372 = vpop.permute.xlu0 %5371
      %5373 = vrot.lane.b32.xlu0 %v5313, 32
      %v5374 = vpop.permute.xlu0 %5373
      %5375 = vrot.lane.b32.xlu0 %v5316, 32
      %v5376 = vpop.permute.xlu0 %5375
      %5377 = vrot.lane.b32.xlu0 %v5318, 32
      %v5378 = vpop.permute.xlu0 %5377
      %v5409 = vrot.slane %v5182, 2
      %v5410 = vrot.slane %v5056, 2
      %v5411 = vsel %vm912, %v5409, %v5410
      %v5412 = vrot.slane %v5198, 2
      %v5413 = vsel %vm912, %v5410, %v5412
      %v5414 = vrot.slane %v5183, 2
      %v5415 = vrot.slane %v5059, 2
      %v5416 = vsel %vm912, %v5414, %v5415
      %v5417 = vrot.slane %v5199, 2
      %v5418 = vsel %vm912, %v5415, %v5417
      %v5419 = vrot.slane %v5184, 2
      %v5420 = vrot.slane %v5062, 2
      %v5421 = vsel %vm912, %v5419, %v5420
      %v5422 = vrot.slane %v5200, 2
      %v5423 = vsel %vm912, %v5420, %v5422
      %v5424 = vrot.slane %v5185, 2
      %v5425 = vrot.slane %v5065, 2
      %v5426 = vsel %vm912, %v5424, %v5425
      %v5427 = vrot.slane %v5201, 2
      %v5428 = vsel %vm912, %v5425, %v5427
      %v5429 = vrot.slane %v5186, 2
      %v5430 = vrot.slane %v5068, 2
      %v5431 = vsel %vm912, %v5429, %v5430
      %v5432 = vrot.slane %v5202, 2
      %v5433 = vsel %vm912, %v5430, %v5432
      %v5434 = vrot.slane %v5187, 2
      %v5435 = vrot.slane %v5071, 2
      %v5436 = vsel %vm912, %v5434, %v5435
      %v5437 = vrot.slane %v5203, 2
      %v5438 = vsel %vm912, %v5435, %v5437
      %v5439 = vrot.slane %v5188, 2
      %v5440 = vrot.slane %v5074, 2
      %v5441 = vsel %vm912, %v5439, %v5440
      %v5442 = vrot.slane %v5204, 2
      %v5443 = vsel %vm912, %v5440, %v5442
      %v5444 = vrot.slane %v5189, 2
      %v5445 = vrot.slane %v5077, 2
      %v5446 = vsel %vm912, %v5444, %v5445
      %v5447 = vrot.slane %v5205, 2
      %v5448 = vsel %vm912, %v5445, %v5447
      %v5449 = vrot.slane %v5190, 2
      %v5450 = vrot.slane %v5080, 2
      %v5451 = vsel %vm912, %v5449, %v5450
      %v5452 = vrot.slane %v5206, 2
      %v5453 = vsel %vm912, %v5450, %v5452
      %v5454 = vrot.slane %v5191, 2
      %v5455 = vrot.slane %v5083, 2
      %v5456 = vsel %vm912, %v5454, %v5455
      %v5457 = vrot.slane %v5207, 2
      %v5458 = vsel %vm912, %v5455, %v5457
      %v5459 = vrot.slane %v5192, 2
      %v5460 = vrot.slane %v5086, 2
      %v5461 = vsel %vm912, %v5459, %v5460
      %v5462 = vrot.slane %v5208, 2
      %v5463 = vsel %vm912, %v5460, %v5462
      %v5464 = vrot.slane %v5193, 2
      %v5465 = vrot.slane %v5089, 2
      %v5466 = vsel %vm912, %v5464, %v5465
      %v5467 = vrot.slane %v5209, 2
      %v5468 = vsel %vm912, %v5465, %v5467
      %v5469 = vrot.slane %v5194, 2
      %v5470 = vrot.slane %v5092, 2
      %v5471 = vsel %vm912, %v5469, %v5470
      %v5472 = vrot.slane %v5210, 2
      %v5473 = vsel %vm912, %v5470, %v5472
      %v5474 = vrot.slane %v5195, 2
      %v5475 = vrot.slane %v5095, 2
      %v5476 = vsel %vm912, %v5474, %v5475
      %v5477 = vrot.slane %v5211, 2
      %v5478 = vsel %vm912, %v5475, %v5477
      %v5479 = vrot.slane %v5196, 2
      %v5480 = vrot.slane %v5098, 2
      %v5481 = vsel %vm912, %v5479, %v5480
      %v5482 = vrot.slane %v5212, 2
      %v5483 = vsel %vm912, %v5480, %v5482
      %5484 = vrot.lane.b32.xlu0 %v5411, 64
      %v5485 = vpop.permute.xlu0 %5484
      %5486 = vrot.lane.b32.xlu0 %v5413, 64
      %v5487 = vpop.permute.xlu0 %5486
      %5488 = vrot.lane.b32.xlu0 %v5416, 64
      %v5489 = vpop.permute.xlu0 %5488
      %5490 = vrot.lane.b32.xlu0 %v5418, 64
      %v5491 = vpop.permute.xlu0 %5490
      %5492 = vrot.lane.b32.xlu0 %v5421, 64
      %v5493 = vpop.permute.xlu0 %5492
      %5494 = vrot.lane.b32.xlu0 %v5423, 64
      %v5495 = vpop.permute.xlu0 %5494
      %5496 = vrot.lane.b32.xlu0 %v5426, 64
      %v5497 = vpop.permute.xlu0 %5496
      %5498 = vrot.lane.b32.xlu0 %v5428, 64
      %v5499 = vpop.permute.xlu0 %5498
      %5500 = vrot.lane.b32.xlu0 %v5431, 64
      %v5501 = vpop.permute.xlu0 %5500
      %5502 = vrot.lane.b32.xlu0 %v5433, 64
      %v5503 = vpop.permute.xlu0 %5502
      %5504 = vrot.lane.b32.xlu0 %v5436, 64
      %v5505 = vpop.permute.xlu0 %5504
      %5506 = vrot.lane.b32.xlu0 %v5438, 64
      %v5507 = vpop.permute.xlu0 %5506
      %5508 = vrot.lane.b32.xlu0 %v5441, 64
      %v5509 = vpop.permute.xlu0 %5508
      %5510 = vrot.lane.b32.xlu0 %v5443, 64
      %v5511 = vpop.permute.xlu0 %5510
      %5512 = vrot.lane.b32.xlu0 %v5446, 64
      %v5513 = vpop.permute.xlu0 %5512
      %5514 = vrot.lane.b32.xlu0 %v5448, 64
      %v5515 = vpop.permute.xlu0 %5514
      %5516 = vrot.lane.b32.xlu0 %v5451, 64
      %v5517 = vpop.permute.xlu0 %5516
      %5518 = vrot.lane.b32.xlu0 %v5453, 64
      %v5519 = vpop.permute.xlu0 %5518
      %5520 = vrot.lane.b32.xlu0 %v5456, 64
      %v5521 = vpop.permute.xlu0 %5520
      %5522 = vrot.lane.b32.xlu0 %v5458, 64
      %v5523 = vpop.permute.xlu0 %5522
      %5524 = vrot.lane.b32.xlu0 %v5461, 64
      %v5525 = vpop.permute.xlu0 %5524
      %5526 = vrot.lane.b32.xlu0 %v5463, 64
      %v5527 = vpop.permute.xlu0 %5526
      %5528 = vrot.lane.b32.xlu0 %v5466, 64
      %v5529 = vpop.permute.xlu0 %5528
      %5530 = vrot.lane.b32.xlu0 %v5468, 64
      %v5531 = vpop.permute.xlu0 %5530
      %5532 = vrot.lane.b32.xlu0 %v5471, 64
      %v5533 = vpop.permute.xlu0 %5532
      %5534 = vrot.lane.b32.xlu0 %v5473, 64
      %v5535 = vpop.permute.xlu0 %5534
      %5536 = vrot.lane.b32.xlu0 %v5476, 64
      %v5537 = vpop.permute.xlu0 %5536
      %5538 = vrot.lane.b32.xlu0 %v5478, 64
      %v5539 = vpop.permute.xlu0 %5538
      %5540 = vrot.lane.b32.xlu0 %v5481, 64
      %v5541 = vpop.permute.xlu0 %5540
      %5542 = vrot.lane.b32.xlu0 %v5483, 64
      %v5543 = vpop.permute.xlu0 %5542
      %v5574 = vsel %vm536, %v5182, %v5320
      %v5575 = vsel %vm536, %v5056, %v5322
      %v5576 = vsel %vm536, %v5183, %v5324
      %v5577 = vsel %vm536, %v5059, %v5326
      %v5578 = vsel %vm536, %v5184, %v5328
      %v5579 = vsel %vm536, %v5062, %v5330
      %v5580 = vsel %vm536, %v5185, %v5332
      %v5581 = vsel %vm536, %v5065, %v5334
      %v5582 = vsel %vm536, %v5186, %v5336
      %v5583 = vsel %vm536, %v5068, %v5338
      %v5584 = vsel %vm536, %v5187, %v5340
      %v5585 = vsel %vm536, %v5071, %v5342
      %v5586 = vsel %vm536, %v5188, %v5344
      %v5587 = vsel %vm536, %v5074, %v5346
      %v5588 = vsel %vm536, %v5189, %v5348
      %v5589 = vsel %vm536, %v5077, %v5350
      %v5590 = vsel %vm536, %v5190, %v5352
      %v5591 = vsel %vm536, %v5080, %v5354
      %v5592 = vsel %vm536, %v5191, %v5356
      %v5593 = vsel %vm536, %v5083, %v5358
      %v5594 = vsel %vm536, %v5192, %v5360
      %v5595 = vsel %vm536, %v5086, %v5362
      %v5596 = vsel %vm536, %v5193, %v5364
      %v5597 = vsel %vm536, %v5089, %v5366
      %v5598 = vsel %vm536, %v5194, %v5368
      %v5599 = vsel %vm536, %v5092, %v5370
      %v5600 = vsel %vm536, %v5195, %v5372
      %v5601 = vsel %vm536, %v5095, %v5374
      %v5602 = vsel %vm536, %v5196, %v5376
      %v5603 = vsel %vm536, %v5098, %v5378
      %v5604 = vsel %vm3921, %v5574, %v5485
      %v5605 = vsel %vm3921, %v5575, %v5487
      %v5606 = vsel %vm3921, %v5576, %v5489
      %v5607 = vsel %vm3921, %v5577, %v5491
      %v5608 = vsel %vm3921, %v5578, %v5493
      %v5609 = vsel %vm3921, %v5579, %v5495
      %v5610 = vsel %vm3921, %v5580, %v5497
      %v5611 = vsel %vm3921, %v5581, %v5499
      %v5612 = vsel %vm3921, %v5582, %v5501
      %v5613 = vsel %vm3921, %v5583, %v5503
      %v5614 = vsel %vm3921, %v5584, %v5505
      %v5615 = vsel %vm3921, %v5585, %v5507
      %v5616 = vsel %vm3921, %v5586, %v5509
      %v5617 = vsel %vm3921, %v5587, %v5511
      %v5618 = vsel %vm3921, %v5588, %v5513
      %v5619 = vsel %vm3921, %v5589, %v5515
      %v5620 = vsel %vm3921, %v5590, %v5517
      %v5621 = vsel %vm3921, %v5591, %v5519
      %v5622 = vsel %vm3921, %v5592, %v5521
      %v5623 = vsel %vm3921, %v5593, %v5523
      %v5624 = vsel %vm3921, %v5594, %v5525
      %v5625 = vsel %vm3921, %v5595, %v5527
      %v5626 = vsel %vm3921, %v5596, %v5529
      %v5627 = vsel %vm3921, %v5597, %v5531
      %v5628 = vsel %vm3921, %v5598, %v5533
      %v5629 = vsel %vm3921, %v5599, %v5535
      %v5630 = vsel %vm3921, %v5600, %v5537
      %v5631 = vsel %vm3921, %v5601, %v5539
      %v5632 = vsel %vm3921, %v5602, %v5541
      %v5633 = vsel %vm3921, %v5603, %v5543
      %v5634 = vld [vmem:[%s11] sm:$0xff]
      %v5635 = vld [vmem:[%s11 + $0x8] sm:$0xff]
      %v5636 = vld [vmem:[%s11 + $0x10] sm:$0xff]
      %v5637 = vld [vmem:[%s11 + $0x18] sm:$0xff]
      %v5638 = vld [vmem:[%s11 + $0x20] sm:$0xff]
      %v5639 = vld [vmem:[%s11 + $0x28] sm:$0xff]
      %v5640 = vld [vmem:[%s11 + $0x30] sm:$0xff]
      %v5641 = vld [vmem:[%s11 + $0x38] sm:$0xff]
      %v5642 = vld [vmem:[%s11 + $0x40] sm:$0xff]
      %v5643 = vld [vmem:[%s11 + $0x48] sm:$0xff]
      %v5644 = vld [vmem:[%s11 + $0x50] sm:$0xff]
      %v5645 = vld [vmem:[%s11 + $0x58] sm:$0xff]
      %v5648 = vrot.slane %v5197, 1
      %v5649 = vrot.slane %v5101, 1
      %v5650 = vsel %vm914, %v5648, %v5649
      %v5651 = vrot.slane %v5213, 1
      %v5652 = vsel %vm914, %v5649, %v5651
      %5653 = vrot.lane.b32.xlu0 %v5650, 32
      %v5654 = vpop.permute.xlu0 %5653
      %5655 = vrot.lane.b32.xlu0 %v5652, 32
      %v5656 = vpop.permute.xlu0 %5655
      %v5659 = vrot.slane %v5197, 2
      %v5660 = vrot.slane %v5101, 2
      %v5661 = vsel %vm912, %v5659, %v5660
      %v5662 = vrot.slane %v5213, 2
      %v5663 = vsel %vm912, %v5660, %v5662
      %5664 = vrot.lane.b32.xlu0 %v5661, 64
      %v5665 = vpop.permute.xlu0 %5664
      %5666 = vrot.lane.b32.xlu0 %v5663, 64
      %v5667 = vpop.permute.xlu0 %5666
      %v5670 = vsel %vm536, %v5197, %v5654
      %v5671 = vsel %vm536, %v5101, %v5656
      %v5672 = vsel %vm3921, %v5670, %v5665
      %v5673 = vsel %vm3921, %v5671, %v5667
      %s5674 = scalar_lea.vmem %s11, 96
      %v5675 = vld [vmem:[%s5674] sm:$0xff]
      %v5676 = vld [vmem:[%s5674 + $0x8] sm:$0xff]
      %v5677 = vld [vmem:[%s5674 + $0x10] sm:$0xff]
      %v5678 = vld [vmem:[%s5674 + $0x18] sm:$0xff]
      %v5679 = vld [vmem:[%s5674 + $0x20] sm:$0xff]
      %v5680 = vld [vmem:[%s5674 + $0x28] sm:$0xff]
      %v5681 = vld [vmem:[%s5674 + $0x30] sm:$0xff]
      %v5682 = vld [vmem:[%s5674 + $0x38] sm:$0xff]
      %v5683 = vld [vmem:[%s5674 + $0x40] sm:$0xff]
      %v5684 = vld [vmem:[%s5674 + $0x48] sm:$0xff]
      %v5685 = vld [vmem:[%s5674 + $0x50] sm:$0xff]
      %v5686 = vld [vmem:[%s5674 + $0x58] sm:$0xff]
      %vm5687 = vcmask 785408
      %v5689 = vsel %vm5687, %v5606, 0
      %v5692 = vsel %vm5687, %v5607, 0
      %v5695 = vsel %vm5687, %v5604, 0
      %v5698 = vsel %vm5687, %v5605, 0
      %v5701 = vsel %vm5687, %v5608, 0
      %v5704 = vsel %vm5687, %v5609, 0
      %v5707 = vsel %vm5687, %v5610, 0
      %v5710 = vsel %vm5687, %v5611, 0
      %v5713 = vsel %vm5687, %v5612, 0
      %v5716 = vsel %vm5687, %v5613, 0
      %v5719 = vsel %vm5687, %v5614, 0
      %v5722 = vsel %vm5687, %v5615, 0
      %v5725 = vsel %vm5687, %v5616, 0
      %v5728 = vsel %vm5687, %v5617, 0
      %v5731 = vsel %vm5687, %v5618, 0
      %v5734 = vsel %vm5687, %v5619, 0
      %v5737 = vsel %vm5687, %v5620, 0
      %v5740 = vsel %vm5687, %v5621, 0
      %v5743 = vsel %vm5687, %v5622, 0
      %v5746 = vsel %vm5687, %v5623, 0
      %v5749 = vsel %vm5687, %v5624, 0
      %v5752 = vsel %vm5687, %v5625, 0
      %v5755 = vsel %vm5687, %v5626, 0
      %v5758 = vsel %vm5687, %v5627, 0
      %v5761 = vsel %vm5687, %v5628, 0
      %v5764 = vsel %vm5687, %v5629, 0
      %v5767 = vsel %vm5687, %v5630, 0
      %v5770 = vsel %vm5687, %v5631, 0
      %v5773 = vsel %vm5687, %v5632, 0
      %v5776 = vsel %vm5687, %v5633, 0
      %v5779 = vsel %vm5687, %v5672, 0
      %v5782 = vsel %vm5687, %v5673, 0
      %5784 = vmatpush.msra.mxu0 0.0
      %5785 = vmatpush.msra.mxu0 0.0
      %5786 = vmatpush.msra.mxu0 0.0
      %5787 = vmatpush.msra.mxu0 0.0
      %5788 = vmatpush.msra.mxu0 %v5686
      %5789 = vmatpush.msra.mxu0 %v5685
      %5790 = vmatpush.msra.mxu0 %v5684
      %5791 = vmatpush.msra.mxu0 %v5683
      %5792 = vmatpush.msra.mxu0 %v5682
      %5793 = vmatpush.msra.mxu0 %v5681
      %5794 = vmatpush.msra.mxu0 %v5680
      %5795 = vmatpush.msra.mxu0 %v5679
      %5796 = vmatpush.msra.mxu0 %v5678
      %5797 = vmatpush.msra.mxu0 %v5677
      %5798 = vmatpush.msra.mxu0 %v5676
      %5799 = vmatpush.msra.mxu0 %v5675
      %5800 = vmatmul.f32.gmra.mxu0 %v5689
      %v5801 = vpop.f32.mrf.mxu0
      %v5802 = vadd.f32 0.0, %v5801
      %5803 = vmatmul.f32.gmra.mxu0 %v5692
      %v5804 = vpop.f32.mrf.mxu0
      %v5805 = vadd.f32 0.0, %v5804
      %5806 = vmatmul.f32.gmra.mxu0 %v5695
      %v5807 = vpop.f32.mrf.mxu0
      %v5808 = vadd.f32 0.0, %v5807
      %5809 = vmatmul.f32.gmra.mxu0 %v5698
      %v5810 = vpop.f32.mrf.mxu0
      %v5811 = vadd.f32 0.0, %v5810
      %5812 = vmatmul.f32.gmra.mxu0 %v5701
      %v5813 = vpop.f32.mrf.mxu0
      %v5814 = vadd.f32 0.0, %v5813
      %5815 = vmatmul.f32.gmra.mxu0 %v5704
      %v5816 = vpop.f32.mrf.mxu0
      %v5817 = vadd.f32 0.0, %v5816
      %5818 = vmatmul.f32.gmra.mxu0 %v5707
      %v5819 = vpop.f32.mrf.mxu0
      %v5820 = vadd.f32 0.0, %v5819
      %5821 = vmatmul.f32.gmra.mxu0 %v5710
      %v5822 = vpop.f32.mrf.mxu0
      %v5823 = vadd.f32 0.0, %v5822
      %5824 = vmatmul.f32.gmra.mxu0 %v5713
      %v5825 = vpop.f32.mrf.mxu0
      %v5826 = vadd.f32 0.0, %v5825
      %5827 = vmatmul.f32.gmra.mxu0 %v5716
      %v5828 = vpop.f32.mrf.mxu0
      %v5829 = vadd.f32 0.0, %v5828
      %5830 = vmatmul.f32.gmra.mxu0 %v5719
      %v5831 = vpop.f32.mrf.mxu0
      %v5832 = vadd.f32 0.0, %v5831
      %5833 = vmatmul.f32.gmra.mxu0 %v5722
      %v5834 = vpop.f32.mrf.mxu0
      %v5835 = vadd.f32 0.0, %v5834
      %5836 = vmatmul.f32.gmra.mxu0 %v5725
      %v5837 = vpop.f32.mrf.mxu0
      %v5838 = vadd.f32 0.0, %v5837
      %5839 = vmatmul.f32.gmra.mxu0 %v5728
      %v5840 = vpop.f32.mrf.mxu0
      %v5841 = vadd.f32 0.0, %v5840
      %5842 = vmatmul.f32.gmra.mxu0 %v5731
      %v5843 = vpop.f32.mrf.mxu0
      %v5844 = vadd.f32 0.0, %v5843
      %5845 = vmatmul.f32.gmra.mxu0 %v5734
      %v5846 = vpop.f32.mrf.mxu0
      %v5847 = vadd.f32 0.0, %v5846
      %5848 = vmatmul.f32.gmra.mxu0 %v5737
      %v5849 = vpop.f32.mrf.mxu0
      %v5850 = vadd.f32 0.0, %v5849
      %5851 = vmatmul.f32.gmra.mxu0 %v5740
      %v5852 = vpop.f32.mrf.mxu0
      %v5853 = vadd.f32 0.0, %v5852
      %5854 = vmatmul.f32.gmra.mxu0 %v5743
      %v5855 = vpop.f32.mrf.mxu0
      %v5856 = vadd.f32 0.0, %v5855
      %5857 = vmatmul.f32.gmra.mxu0 %v5746
      %v5858 = vpop.f32.mrf.mxu0
      %v5859 = vadd.f32 0.0, %v5858
      %5860 = vmatmul.f32.gmra.mxu0 %v5749
      %v5861 = vpop.f32.mrf.mxu0
      %v5862 = vadd.f32 0.0, %v5861
      %5863 = vmatmul.f32.gmra.mxu0 %v5752
      %v5864 = vpop.f32.mrf.mxu0
      %v5865 = vadd.f32 0.0, %v5864
      %5866 = vmatmul.f32.gmra.mxu0 %v5755
      %v5867 = vpop.f32.mrf.mxu0
      %v5868 = vadd.f32 0.0, %v5867
      %5869 = vmatmul.f32.gmra.mxu0 %v5758
      %v5870 = vpop.f32.mrf.mxu0
      %v5871 = vadd.f32 0.0, %v5870
      %5872 = vmatmul.f32.gmra.mxu0 %v5761
      %v5873 = vpop.f32.mrf.mxu0
      %v5874 = vadd.f32 0.0, %v5873
      %5875 = vmatmul.f32.gmra.mxu0 %v5764
      %v5876 = vpop.f32.mrf.mxu0
      %v5877 = vadd.f32 0.0, %v5876
      %5878 = vmatmul.f32.gmra.mxu0 %v5767
      %v5879 = vpop.f32.mrf.mxu0
      %v5880 = vadd.f32 0.0, %v5879
      %5881 = vmatmul.f32.gmra.mxu0 %v5770
      %v5882 = vpop.f32.mrf.mxu0
      %v5883 = vadd.f32 0.0, %v5882
      %5884 = vmatmul.f32.gmra.mxu0 %v5773
      %v5885 = vpop.f32.mrf.mxu0
      %v5886 = vadd.f32 0.0, %v5885
      %5887 = vmatmul.f32.gmra.mxu0 %v5776
      %v5888 = vpop.f32.mrf.mxu0
      %v5889 = vadd.f32 0.0, %v5888
      %5890 = vmatmul.f32.gmra.mxu0 %v5779
      %v5891 = vpop.f32.mrf.mxu0
      %v5892 = vadd.f32 0.0, %v5891
      %5893 = vmatmul.f32.gmra.mxu0 %v5782
      %v5894 = vpop.f32.mrf.mxu0
      %v5895 = vadd.f32 0.0, %v5894
      %5896 = vdwg.mxu0
      %5897 = vmatpush.msra.mxu0 0.0
      %5898 = vmatpush.msra.mxu0 0.0
      %5899 = vmatpush.msra.mxu0 0.0
      %5900 = vmatpush.msra.mxu0 0.0
      %5901 = vmatpush.msra.mxu0 %v5645
      %5902 = vmatpush.msra.mxu0 %v5644
      %5903 = vmatpush.msra.mxu0 %v5643
      %5904 = vmatpush.msra.mxu0 %v5642
      %5905 = vmatpush.msra.mxu0 %v5641
      %5906 = vmatpush.msra.mxu0 %v5640
      %5907 = vmatpush.msra.mxu0 %v5639
      %5908 = vmatpush.msra.mxu0 %v5638
      %5909 = vmatpush.msra.mxu0 %v5637
      %5910 = vmatpush.msra.mxu0 %v5636
      %5911 = vmatpush.msra.mxu0 %v5635
      %5912 = vmatpush.msra.mxu0 %v5634
      %5913 = vmatmul.f32.gmra.mxu0 %v5695
      %v5914 = vpop.f32.mrf.mxu0
      %v5915 = vadd.f32 %v5802, %v5914
      %5916 = vmatmul.f32.gmra.mxu0 %v5698
      %v5917 = vpop.f32.mrf.mxu0
      %v5918 = vadd.f32 %v5805, %v5917
      %5919 = vmatmul.f32.gmra.mxu0 %v5689
      %v5920 = vpop.f32.mrf.mxu0
      %v5921 = vadd.f32 %v5808, %v5920
      %5922 = vmatmul.f32.gmra.mxu0 %v5692
      %v5923 = vpop.f32.mrf.mxu0
      %v5924 = vadd.f32 %v5811, %v5923
      %5925 = vmatmul.f32.gmra.mxu0 %v5695
      %v5926 = vpop.f32.mrf.mxu0
      %v5927 = vadd.f32 %v5814, %v5926
      %5928 = vmatmul.f32.gmra.mxu0 %v5698
      %v5929 = vpop.f32.mrf.mxu0
      %v5930 = vadd.f32 %v5817, %v5929
      %5931 = vmatmul.f32.gmra.mxu0 %v5701
      %v5932 = vpop.f32.mrf.mxu0
      %v5933 = vadd.f32 %v5820, %v5932
      %5934 = vmatmul.f32.gmra.mxu0 %v5704
      %v5935 = vpop.f32.mrf.mxu0
      %v5936 = vadd.f32 %v5823, %v5935
      %5937 = vmatmul.f32.gmra.mxu0 %v5707
      %v5938 = vpop.f32.mrf.mxu0
      %v5939 = vadd.f32 %v5826, %v5938
      %5940 = vmatmul.f32.gmra.mxu0 %v5710
      %v5941 = vpop.f32.mrf.mxu0
      %v5942 = vadd.f32 %v5829, %v5941
      %5943 = vmatmul.f32.gmra.mxu0 %v5713
      %v5944 = vpop.f32.mrf.mxu0
      %v5945 = vadd.f32 %v5832, %v5944
      %5946 = vmatmul.f32.gmra.mxu0 %v5716
      %v5947 = vpop.f32.mrf.mxu0
      %v5948 = vadd.f32 %v5835, %v5947
      %5949 = vmatmul.f32.gmra.mxu0 %v5719
      %v5950 = vpop.f32.mrf.mxu0
      %v5951 = vadd.f32 %v5838, %v5950
      %5952 = vmatmul.f32.gmra.mxu0 %v5722
      %v5953 = vpop.f32.mrf.mxu0
      %v5954 = vadd.f32 %v5841, %v5953
      %5955 = vmatmul.f32.gmra.mxu0 %v5725
      %v5956 = vpop.f32.mrf.mxu0
      %v5957 = vadd.f32 %v5844, %v5956
      %5958 = vmatmul.f32.gmra.mxu0 %v5728
      %v5959 = vpop.f32.mrf.mxu0
      %v5960 = vadd.f32 %v5847, %v5959
      %5961 = vmatmul.f32.gmra.mxu0 %v5731
      %v5962 = vpop.f32.mrf.mxu0
      %v5963 = vadd.f32 %v5850, %v5962
      %5964 = vmatmul.f32.gmra.mxu0 %v5734
      %v5965 = vpop.f32.mrf.mxu0
      %v5966 = vadd.f32 %v5853, %v5965
      %5967 = vmatmul.f32.gmra.mxu0 %v5737
      %v5968 = vpop.f32.mrf.mxu0
      %v5969 = vadd.f32 %v5856, %v5968
      %5970 = vmatmul.f32.gmra.mxu0 %v5740
      %v5971 = vpop.f32.mrf.mxu0
      %v5972 = vadd.f32 %v5859, %v5971
      %5973 = vmatmul.f32.gmra.mxu0 %v5743
      %v5974 = vpop.f32.mrf.mxu0
      %v5975 = vadd.f32 %v5862, %v5974
      %5976 = vmatmul.f32.gmra.mxu0 %v5746
      %v5977 = vpop.f32.mrf.mxu0
      %v5978 = vadd.f32 %v5865, %v5977
      %5979 = vmatmul.f32.gmra.mxu0 %v5749
      %v5980 = vpop.f32.mrf.mxu0
      %v5981 = vadd.f32 %v5868, %v5980
      %5982 = vmatmul.f32.gmra.mxu0 %v5752
      %v5983 = vpop.f32.mrf.mxu0
      %v5984 = vadd.f32 %v5871, %v5983
      %5985 = vmatmul.f32.gmra.mxu0 %v5755
      %v5986 = vpop.f32.mrf.mxu0
      %v5987 = vadd.f32 %v5874, %v5986
      %5988 = vmatmul.f32.gmra.mxu0 %v5758
      %v5989 = vpop.f32.mrf.mxu0
      %v5990 = vadd.f32 %v5877, %v5989
      %5991 = vmatmul.f32.gmra.mxu0 %v5761
      %v5992 = vpop.f32.mrf.mxu0
      %v5993 = vadd.f32 %v5880, %v5992
      %5994 = vmatmul.f32.gmra.mxu0 %v5764
      %v5995 = vpop.f32.mrf.mxu0
      %v5996 = vadd.f32 %v5883, %v5995
      %5997 = vmatmul.f32.gmra.mxu0 %v5767
      %v5998 = vpop.f32.mrf.mxu0
      %v5999 = vadd.f32 %v5886, %v5998
      %6000 = vmatmul.f32.gmra.mxu0 %v5770
      %v6001 = vpop.f32.mrf.mxu0
      %v6002 = vadd.f32 %v5889, %v6001
      %6003 = vmatmul.f32.gmra.mxu0 %v5773
      %v6004 = vpop.f32.mrf.mxu0
      %v6005 = vadd.f32 %v5892, %v6004
      %6006 = vmatmul.f32.gmra.mxu0 %v5776
      %v6007 = vpop.f32.mrf.mxu0
      %v6008 = vadd.f32 %v5895, %v6007
      %6009 = vdwg.mxu0
      %s6010 = scalar_lea.vmem %s11, 192
      %v6011 = vld [vmem:[%s6010] sm:$0xff]
      %v6012 = vld [vmem:[%s6010 + $0x8] sm:$0xff]
      %v6013 = vld [vmem:[%s6010 + $0x10] sm:$0xff]
      %v6014 = vld [vmem:[%s6010 + $0x18] sm:$0xff]
      %v6015 = vld [vmem:[%s6010 + $0x20] sm:$0xff]
      %v6016 = vld [vmem:[%s6010 + $0x28] sm:$0xff]
      %v6017 = vld [vmem:[%s6010 + $0x30] sm:$0xff]
      %v6018 = vld [vmem:[%s6010 + $0x38] sm:$0xff]
      %v6019 = vld [vmem:[%s6010 + $0x40] sm:$0xff]
      %v6020 = vld [vmem:[%s6010 + $0x48] sm:$0xff]
      %v6021 = vld [vmem:[%s6010 + $0x50] sm:$0xff]
      %v6022 = vld [vmem:[%s6010 + $0x58] sm:$0xff]
      %6023 = vmatpush.msra.mxu0 0.0
      %6024 = vmatpush.msra.mxu0 0.0
      %6025 = vmatpush.msra.mxu0 0.0
      %6026 = vmatpush.msra.mxu0 0.0
      %6027 = vmatpush.msra.mxu0 %v6022
      %6028 = vmatpush.msra.mxu0 %v6021
      %6029 = vmatpush.msra.mxu0 %v6020
      %6030 = vmatpush.msra.mxu0 %v6019
      %6031 = vmatpush.msra.mxu0 %v6018
      %6032 = vmatpush.msra.mxu0 %v6017
      %6033 = vmatpush.msra.mxu0 %v6016
      %6034 = vmatpush.msra.mxu0 %v6015
      %6035 = vmatpush.msra.mxu0 %v6014
      %6036 = vmatpush.msra.mxu0 %v6013
      %6037 = vmatpush.msra.mxu0 %v6012
      %6038 = vmatpush.msra.mxu0 %v6011
      %6039 = vmatmul.f32.gmra.mxu0 %v5695
      %v6040 = vpop.f32.mrf.mxu0
      %v6041 = vadd.f32 0.0, %v6040
      %6042 = vmatmul.f32.gmra.mxu0 %v5698
      %v6043 = vpop.f32.mrf.mxu0
      %v6044 = vadd.f32 0.0, %v6043
      %6045 = vmatmul.f32.gmra.mxu0 %v5701
      %v6046 = vpop.f32.mrf.mxu0
      %v6047 = vadd.f32 0.0, %v6046
      %6048 = vmatmul.f32.gmra.mxu0 %v5704
      %v6049 = vpop.f32.mrf.mxu0
      %v6050 = vadd.f32 0.0, %v6049
      %6051 = vmatmul.f32.gmra.mxu0 %v5707
      %v6052 = vpop.f32.mrf.mxu0
      %v6053 = vadd.f32 0.0, %v6052
      %6054 = vmatmul.f32.gmra.mxu0 %v5710
      %v6055 = vpop.f32.mrf.mxu0
      %v6056 = vadd.f32 0.0, %v6055
      %6057 = vmatmul.f32.gmra.mxu0 %v5713
      %v6058 = vpop.f32.mrf.mxu0
      %v6059 = vadd.f32 0.0, %v6058
      %6060 = vmatmul.f32.gmra.mxu0 %v5716
      %v6061 = vpop.f32.mrf.mxu0
      %v6062 = vadd.f32 0.0, %v6061
      %6063 = vmatmul.f32.gmra.mxu0 %v5719
      %v6064 = vpop.f32.mrf.mxu0
      %v6065 = vadd.f32 0.0, %v6064
      %6066 = vmatmul.f32.gmra.mxu0 %v5722
      %v6067 = vpop.f32.mrf.mxu0
      %v6068 = vadd.f32 0.0, %v6067
      %6069 = vmatmul.f32.gmra.mxu0 %v5725
      %v6070 = vpop.f32.mrf.mxu0
      %v6071 = vadd.f32 0.0, %v6070
      %6072 = vmatmul.f32.gmra.mxu0 %v5728
      %v6073 = vpop.f32.mrf.mxu0
      %v6074 = vadd.f32 0.0, %v6073
      %6075 = vmatmul.f32.gmra.mxu0 %v5731
      %v6076 = vpop.f32.mrf.mxu0
      %v6077 = vadd.f32 0.0, %v6076
      %6078 = vmatmul.f32.gmra.mxu0 %v5734
      %v6079 = vpop.f32.mrf.mxu0
      %v6080 = vadd.f32 0.0, %v6079
      %6081 = vmatmul.f32.gmra.mxu0 %v5737
      %v6082 = vpop.f32.mrf.mxu0
      %v6083 = vadd.f32 0.0, %v6082
      %6084 = vmatmul.f32.gmra.mxu0 %v5740
      %v6085 = vpop.f32.mrf.mxu0
      %v6086 = vadd.f32 0.0, %v6085
      %6087 = vmatmul.f32.gmra.mxu0 %v5743
      %v6088 = vpop.f32.mrf.mxu0
      %v6089 = vadd.f32 0.0, %v6088
      %6090 = vmatmul.f32.gmra.mxu0 %v5746
      %v6091 = vpop.f32.mrf.mxu0
      %v6092 = vadd.f32 0.0, %v6091
      %6093 = vmatmul.f32.gmra.mxu0 %v5749
      %v6094 = vpop.f32.mrf.mxu0
      %v6095 = vadd.f32 0.0, %v6094
      %6096 = vmatmul.f32.gmra.mxu0 %v5752
      %v6097 = vpop.f32.mrf.mxu0
      %v6098 = vadd.f32 0.0, %v6097
      %6099 = vmatmul.f32.gmra.mxu0 %v5755
      %v6100 = vpop.f32.mrf.mxu0
      %v6101 = vadd.f32 0.0, %v6100
      %6102 = vmatmul.f32.gmra.mxu0 %v5758
      %v6103 = vpop.f32.mrf.mxu0
      %v6104 = vadd.f32 0.0, %v6103
      %6105 = vmatmul.f32.gmra.mxu0 %v5761
      %v6106 = vpop.f32.mrf.mxu0
      %v6107 = vadd.f32 0.0, %v6106
      %6108 = vmatmul.f32.gmra.mxu0 %v5764
      %v6109 = vpop.f32.mrf.mxu0
      %v6110 = vadd.f32 0.0, %v6109
      %6111 = vmatmul.f32.gmra.mxu0 %v5767
      %v6112 = vpop.f32.mrf.mxu0
      %v6113 = vadd.f32 0.0, %v6112
      %6114 = vmatmul.f32.gmra.mxu0 %v5770
      %v6115 = vpop.f32.mrf.mxu0
      %v6116 = vadd.f32 0.0, %v6115
      %6117 = vmatmul.f32.gmra.mxu0 %v5773
      %v6118 = vpop.f32.mrf.mxu0
      %v6119 = vadd.f32 0.0, %v6118
      %6120 = vmatmul.f32.gmra.mxu0 %v5776
      %v6121 = vpop.f32.mrf.mxu0
      %v6122 = vadd.f32 0.0, %v6121
      %6123 = vmatmul.f32.gmra.mxu0 %v5779
      %v6124 = vpop.f32.mrf.mxu0
      %v6125 = vadd.f32 0.0, %v6124
      %6126 = vmatmul.f32.gmra.mxu0 %v5782
      %v6127 = vpop.f32.mrf.mxu0
      %v6128 = vadd.f32 0.0, %v6127
      %6129 = vmatmul.f32.gmra.mxu0 %v5773
      %v6130 = vpop.f32.mrf.mxu0
      %v6131 = vadd.f32 0.0, %v6130
      %6132 = vmatmul.f32.gmra.mxu0 %v5776
      %v6133 = vpop.f32.mrf.mxu0
      %v6134 = vadd.f32 0.0, %v6133
      %6135 = vdwg.mxu0
      %v6136 = vadd.f32 %v5915, %v6041
      %v6137 = vadd.f32 %v5918, %v6044
      %v6138 = vadd.f32 %v5921, %v6047
      %v6139 = vadd.f32 %v5924, %v6050
      %v6140 = vadd.f32 %v5927, %v6053
      %v6141 = vadd.f32 %v5930, %v6056
      %v6142 = vadd.f32 %v5933, %v6059
      %v6143 = vadd.f32 %v5936, %v6062
      %v6144 = vadd.f32 %v5939, %v6065
      %v6145 = vadd.f32 %v5942, %v6068
      %v6146 = vadd.f32 %v5945, %v6071
      %v6147 = vadd.f32 %v5948, %v6074
      %v6148 = vadd.f32 %v5951, %v6077
      %v6149 = vadd.f32 %v5954, %v6080
      %v6150 = vadd.f32 %v5957, %v6083
      %v6151 = vadd.f32 %v5960, %v6086
      %v6152 = vadd.f32 %v5963, %v6089
      %v6153 = vadd.f32 %v5966, %v6092
      %v6154 = vadd.f32 %v5969, %v6095
      %v6155 = vadd.f32 %v5972, %v6098
      %v6156 = vadd.f32 %v5975, %v6101
      %v6157 = vadd.f32 %v5978, %v6104
      %v6158 = vadd.f32 %v5981, %v6107
      %v6159 = vadd.f32 %v5984, %v6110
      %v6160 = vadd.f32 %v5987, %v6113
      %v6161 = vadd.f32 %v5990, %v6116
      %v6162 = vadd.f32 %v5993, %v6119
      %v6163 = vadd.f32 %v5996, %v6122
      %v6164 = vadd.f32 %v5999, %v6125
      %v6165 = vadd.f32 %v6002, %v6128
      %v6166 = vadd.f32 %v6005, %v6131
      %v6167 = vadd.f32 %v6008, %v6134
      %v6168 = vld [vmem:[%s12] sm:$0x1]
      %v6170 = vperm.slane %v6168, 0
      %v6172 = vadd.f32 %v6136, %v6170
      %v6173 = vadd.f32 %v6137, %v6170
      %v6174 = vadd.f32 %v6138, %v6170
      %v6175 = vadd.f32 %v6139, %v6170
      %v6176 = vadd.f32 %v6140, %v6170
      %v6177 = vadd.f32 %v6141, %v6170
      %v6178 = vadd.f32 %v6142, %v6170
      %v6179 = vadd.f32 %v6143, %v6170
      %v6180 = vadd.f32 %v6144, %v6170
      %v6181 = vadd.f32 %v6145, %v6170
      %v6182 = vadd.f32 %v6146, %v6170
      %v6183 = vadd.f32 %v6147, %v6170
      %v6184 = vadd.f32 %v6148, %v6170
      %v6185 = vadd.f32 %v6149, %v6170
      %v6186 = vadd.f32 %v6150, %v6170
      %v6187 = vadd.f32 %v6151, %v6170
      %v6188 = vadd.f32 %v6152, %v6170
      %v6189 = vadd.f32 %v6153, %v6170
      %v6190 = vadd.f32 %v6154, %v6170
      %v6191 = vadd.f32 %v6155, %v6170
      %v6192 = vadd.f32 %v6156, %v6170
      %v6193 = vadd.f32 %v6157, %v6170
      %v6194 = vadd.f32 %v6158, %v6170
      %v6195 = vadd.f32 %v6159, %v6170
      %v6196 = vadd.f32 %v6160, %v6170
      %v6197 = vadd.f32 %v6161, %v6170
      %v6198 = vadd.f32 %v6162, %v6170
      %v6199 = vadd.f32 %v6163, %v6170
      %v6200 = vadd.f32 %v6164, %v6170
      %v6201 = vadd.f32 %v6165, %v6170
      %v6202 = vadd.f32 %v6166, %v6170
      %v6203 = vadd.f32 %v6167, %v6170
      %v6204 = vtanh.pop %v6172
      %v6205 = vtanh.pop %v6173
      %v6206 = vtanh.pop %v6174
      %v6207 = vtanh.pop %v6175
      %v6208 = vtanh.pop %v6176
      %v6209 = vtanh.pop %v6177
      %v6210 = vtanh.pop %v6178
      %v6211 = vtanh.pop %v6179
      %v6212 = vtanh.pop %v6180
      %v6213 = vtanh.pop %v6181
      %v6214 = vtanh.pop %v6182
      %v6215 = vtanh.pop %v6183
      %v6216 = vtanh.pop %v6184
      %v6217 = vtanh.pop %v6185
      %v6218 = vtanh.pop %v6186
      %v6219 = vtanh.pop %v6187
      %v6220 = vtanh.pop %v6188
      %v6221 = vtanh.pop %v6189
      %v6222 = vtanh.pop %v6190
      %v6223 = vtanh.pop %v6191
      %v6224 = vtanh.pop %v6192
      %v6225 = vtanh.pop %v6193
      %v6226 = vtanh.pop %v6194
      %v6227 = vtanh.pop %v6195
      %v6228 = vtanh.pop %v6196
      %v6229 = vtanh.pop %v6197
      %v6230 = vtanh.pop %v6198
      %v6231 = vtanh.pop %v6199
      %v6232 = vtanh.pop %v6200
      %v6233 = vtanh.pop %v6201
      %v6234 = vtanh.pop %v6202
      %v6235 = vtanh.pop %v6203
      %vm6236 = vcmask 23552
      %6237 = vst.msk [vmem:[%s434] sm:$0xff] %vm6236, %v6204
      %6238 = vst.msk [vmem:[%s434 + $0x8] sm:$0xff] %vm6236, %v6205
      %6239 = vst.msk [vmem:[%s434 + $0x10] sm:$0xff] %vm6236, %v6206
      %6240 = vst.msk [vmem:[%s434 + $0x18] sm:$0xff] %vm6236, %v6207
      %6241 = vst.msk [vmem:[%s434 + $0x20] sm:$0xff] %vm6236, %v6208
      %6242 = vst.msk [vmem:[%s434 + $0x28] sm:$0xff] %vm6236, %v6209
      %6243 = vst.msk [vmem:[%s434 + $0x30] sm:$0xff] %vm6236, %v6210
      %6244 = vst.msk [vmem:[%s434 + $0x38] sm:$0xff] %vm6236, %v6211
      %6245 = vst.msk [vmem:[%s434 + $0x40] sm:$0xff] %vm6236, %v6212
      %6246 = vst.msk [vmem:[%s434 + $0x48] sm:$0xff] %vm6236, %v6213
      %6247 = vst.msk [vmem:[%s434 + $0x50] sm:$0xff] %vm6236, %v6214
      %6248 = vst.msk [vmem:[%s434 + $0x58] sm:$0xff] %vm6236, %v6215
      %6249 = vst.msk [vmem:[%s434 + $0x60] sm:$0xff] %vm6236, %v6216
      %6250 = vst.msk [vmem:[%s434 + $0x68] sm:$0xff] %vm6236, %v6217
      %6251 = vst.msk [vmem:[%s434 + $0x70] sm:$0xff] %vm6236, %v6218
      %6252 = vst.msk [vmem:[%s434 + $0x78] sm:$0xff] %vm6236, %v6219
      %6253 = vst.msk [vmem:[%s434 + $0x80] sm:$0xff] %vm6236, %v6220
      %6254 = vst.msk [vmem:[%s434 + $0x88] sm:$0xff] %vm6236, %v6221
      %6255 = vst.msk [vmem:[%s434 + $0x90] sm:$0xff] %vm6236, %v6222
      %6256 = vst.msk [vmem:[%s434 + $0x98] sm:$0xff] %vm6236, %v6223
      %6257 = vst.msk [vmem:[%s434 + $0xa0] sm:$0xff] %vm6236, %v6224
      %6258 = vst.msk [vmem:[%s434 + $0xa8] sm:$0xff] %vm6236, %v6225
      %6259 = vst.msk [vmem:[%s434 + $0xb0] sm:$0xff] %vm6236, %v6226
      %6260 = vst.msk [vmem:[%s434 + $0xb8] sm:$0xff] %vm6236, %v6227
      %6261 = vst.msk [vmem:[%s434 + $0xc0] sm:$0xff] %vm6236, %v6228
      %6262 = vst.msk [vmem:[%s434 + $0xc8] sm:$0xff] %vm6236, %v6229
      %6263 = vst.msk [vmem:[%s434 + $0xd0] sm:$0xff] %vm6236, %v6230
      %6264 = vst.msk [vmem:[%s434 + $0xd8] sm:$0xff] %vm6236, %v6231
      %6265 = vst.msk [vmem:[%s434 + $0xe0] sm:$0xff] %vm6236, %v6232
      %6266 = vst.msk [vmem:[%s434 + $0xe8] sm:$0xff] %vm6236, %v6233
      %6267 = vst.msk [vmem:[%s434 + $0xf0] sm:$0xff] %vm6236, %v6234
      %6268 = vst.msk [vmem:[%s434 + $0xf8] sm:$0xff] %vm6236, %v6235
      %p6269 = scmp.lt.s32.totalorder %s24, 1
      %s6270 = scalar_select %p6269, %s24, 1
      %s6271 = smul.addr %s6270, 32
      %s6272 = smul.addr %s6271, 8
      %s6273 = scalar_lea.vmem %s13, %s6272
      // Predicated region
      $region73: #{tpu_custom_call.1} parent=71 // pred_check
        %p6274 = pneg %p320
      $region74: #{tpu_custom_call.1} parent=71 // pred_check_branch
        %6276 = sbr.rel (%p6274) target = $region76
      $region75: #{tpu_custom_call.1} parent=71 // pred_region
        _
      $region76: #{tpu_custom_call.1} parent=71 // pred_fallthru
        _
    $region72: #{tpu_custom_call.1} parent=5 // pred_fallthru
      _
    %p6277 = scmp.le.s32.totalorder 2, %s19
    // Predicated region
    $region77: #{tpu_custom_call.1} parent=5 // pred_check
      %p6278 = pneg %p6277
    $region78: #{tpu_custom_call.1} parent=5 // pred_check_branch
      %6280 = sbr.rel (%p6278) target = $region80
    $region79: #{tpu_custom_call.1} parent=5 // pred_region
      %s6281 = ssub.s32 %s19, 2
      // Predicated region
      $region81: #{tpu_custom_call.1} parent=79 // pred_check
        %p6282 = pneg %p326
      $region82: #{tpu_custom_call.1} parent=79 // pred_check_branch
        %6284 = sbr.rel (%p6282) target = $region84
      $region83: #{tpu_custom_call.1} parent=79 // pred_region
        %p6285 = scmp.lt.s32.totalorder %s25, 1
        %s6286 = scalar_select %p6285, %s25, 1
        %s6287 = smul.addr %s6286, 32
        %s6288 = smul.addr %s6287, 8
        %s6289 = scalar_lea.vmem %s13, %s6288
      $region84: #{tpu_custom_call.1} parent=79 // pred_fallthru
        _
    $region80: #{tpu_custom_call.1} parent=5 // pred_fallthru
      _
  $region6: #{tpu_custom_call.1} parent=0 // loop_footer
    %s23 = sadd.s32 1, %s19
  $region7: #{tpu_custom_call.1} parent=0 // loop_footer_branch
    %18 = sbr.rel target = $region3
  $region8: #{tpu_custom_call.1} parent=0 // loop_exit
    _

</llo_original>
